<compile_context>
chip_gen: v7x
topology: tpu7x:2x2x1
jax: 0.10.0
libtpu: 0.0.40
codegen_flags: <defaults>
</compile_context>

<pallas_src>
import functools
import math

import jax
import jax.numpy as jnp
from jax import lax
from jax.experimental import pallas as pl
from jax.experimental.pallas import tpu as pltpu

LN_EPS = 1e-12          # BertConfig default layer_norm_eps
_ROWS_PER_LAYER = 8     # packed bias/LN rows per BertLayer


# ----------------------------- fused forward kernel -----------------------------
def _fwd_kernel(*refs, n_layers, nH, dh, scale, eps, num_classes):
    x_ref, add_ref, bias_ref, vecs_ref = refs[:4]
    w_refs = refs[4:4 + 4 * n_layers]                  # per layer: qkv_w, ao_w, i_w, o_w (bf16)
    pool_w_ref, cls_w_ref, out_ref = refs[4 + 4 * n_layers:]

    H = nH * dh
    f32, bf16 = jnp.float32, jnp.bfloat16

    def vrow(r, n):                                    # static row slice of the packed table
        return vecs_ref[r:r + 1, 0:n]                  # [1, n] f32

    def layernorm(v, g, b):
        mu = jnp.mean(v, axis=-1, keepdims=True)
        var = jnp.mean(jnp.square(v - mu), axis=-1, keepdims=True)
        return (v - mu) * lax.rsqrt(var + eps) * g + b

    def matmul(v, w_ref, bias_row, n_out):
        # bf16 MXU inputs, f32 accumulation, f32 bias add.
        return jnp.dot(v.astype(bf16), w_ref[...],
                       preferred_element_type=f32) + vrow(bias_row, n_out)

    att_bias = bias_ref[...]                           # [1, 1, S] additive attention mask

    # Embeddings: inputs_embeds + (position + token_type(0)) -> LayerNorm (dropout = identity).
    h = layernorm(x_ref[0] + add_ref[...], vrow(0, H), vrow(1, H))        # [S, H] f32

    for l in range(n_layers):                          # static unroll (n_layers = 2)
        qkv_w, ao_w, i_w, o_w = w_refs[4 * l: 4 * (l + 1)]
        base = 2 + _ROWS_PER_LAYER * l

        # Fused QKV projection: one [S, H] @ [H, 3H] MXU pass; single bf16 cast per layer.
        qkv = matmul(h, qkv_w, base + 0, 3 * H).astype(bf16)              # [S, 3H] bf16

        # Head-major [nH, S, dh] views for batched attention matmuls.
        def split_heads(col0):
            return jnp.stack([qkv[:, col0 + hh * dh: col0 + (hh + 1) * dh]
                              for hh in range(nH)], axis=0)               # [nH, S, dh]
        qh, kh, vh = split_heads(0), split_heads(H), split_heads(2 * H)

        # Batched scores / softmax / context (one MXU push each for all heads).
        s = jnp.einsum('hqd,hkd->hqk', qh, kh, preferred_element_type=f32)  # [nH, S, S]
        s = s * scale + att_bias
        s = s - jnp.max(s, axis=-1, keepdims=True)
        p = jnp.exp(s)
        p = p / jnp.sum(p, axis=-1, keepdims=True)                         # exact softmax
        ctx = jnp.einsum('hqk,hkd->hqd', p.astype(bf16), vh,
                         preferred_element_type=f32)                       # [nH, S, dh]
        ctx = jnp.concatenate([ctx[hh] for hh in range(nH)], axis=-1)      # [S, H] lane-dense

        # Attention output projection + residual + LayerNorm.
        h = layernorm(matmul(ctx, ao_w, base + 1, H) + h,
                      vrow(base + 2, H), vrow(base + 3, H))

        # FFN: intermediate (exact erf-GELU) -> output projection + residual + LayerNorm.
        inter = matmul(h, i_w, base + 4, 4 * H)
        inter = 0.5 * inter * (1.0 + lax.erf(inter * 0.7071067811865476))
        h = layernorm(matmul(inter, o_w, base + 5, H) + h,
                      vrow(base + 6, H), vrow(base + 7, H))

    # Pooler on the [CLS] token (row 0 of this sequence) + classifier epilogue.
    pool_row = 2 + _ROWS_PER_LAYER * n_layers
    pooled = jnp.tanh(matmul(h[0:1, :], pool_w_ref, pool_row, H))          # [1, H]
    logits = matmul(pooled, cls_w_ref, pool_row + 1, num_classes)          # [1, C]
    out_ref[...] = logits.reshape((1, 1, num_classes)).astype(out_ref.dtype)


# ----------------------------- parameters -----------------------------
def init_params(key, hidden, num_classes, num_layers=2, max_pos=512, type_vocab=2):
    """HF-BERT-style init; biases / LN gammas+betas packed into one [n_rows, 4H] table."""
    nH = hidden // 64
    inter = hidden * 4
    std = 0.02
    bf16 = jnp.bfloat16
    width = 4 * hidden

    keys = iter(jax.random.split(key, 8 * num_layers + 8))
    normal = lambda k, s: std * jax.random.normal(k, s, jnp.float32)

    def row(v):
        v = jnp.asarray(v, jnp.float32).reshape(1, -1)
        return jnp.pad(v, ((0, 0), (0, width - v.shape[1])))

    vec_rows = [row(jnp.ones(hidden)), row(jnp.zeros(hidden))]             # embedding LN g/b
    layer_weights = []
    for _ in range(num_layers):
        q_w = normal(next(keys), (hidden, hidden))
        k_w = normal(next(keys), (hidden, hidden))
        v_w = normal(next(keys), (hidden, hidden))
        layer_weights.append((
            jnp.concatenate([q_w, k_w, v_w], axis=1).astype(bf16),        # fused QKV [H, 3H]
            normal(next(keys), (hidden, hidden)).astype(bf16),            # attn out  [H, H]
            normal(next(keys), (hidden, inter)).astype(bf16),             # FFN in    [H, 4H]
            normal(next(keys), (inter, hidden)).astype(bf16),             # FFN out   [4H, H]
        ))
        vec_rows += [row(jnp.zeros(3 * hidden)),                          # qkv bias
                     row(jnp.zeros(hidden)),                              # attn-out bias
                     row(jnp.ones(hidden)), row(jnp.zeros(hidden)),       # attn-out LN g/b
                     row(jnp.zeros(inter)),                               # intermediate bias
                     row(jnp.zeros(hidden)),                              # FFN-out bias
                     row(jnp.ones(hidden)), row(jnp.zeros(hidden))]       # FFN-out LN g/b
    vec_rows += [row(jnp.zeros(hidden)),                                  # pooler bias
                 row(jnp.zeros(num_classes))]                             # classifier bias

    return {
        "num_heads": nH,
        "num_classes": num_classes,
        "pos_emb": normal(next(keys), (max_pos, hidden)),
        "tok_emb": normal(next(keys), (type_vocab, hidden)),
        "vecs": jnp.concatenate(vec_rows, axis=0),                        # [n_rows, 4H] f32
        "layer_weights": layer_weights,
        "pool_w": normal(next(keys), (hidden, hidden)).astype(bf16),
        "cls_w": normal(next(keys), (hidden, num_classes)).astype(bf16),
    }


# ----------------------------- forward -----------------------------
def transformer_classifier_forward(params, x, attention_mask=None, labels=None):
    B, S, H = x.shape
    nH = params["num_heads"]
    dh = H // nH
    C = params["num_classes"]
    n_layers = len(params["layer_weights"])
    scale = 1.0 / math.sqrt(dh)

    if attention_mask is None:
        attention_mask = jnp.ones((B, S), jnp.float32)
    # BERT extended additive mask: (1 - mask) * -10000, broadcast over heads / query rows.
    bias = ((1.0 - attention_mask.astype(jnp.float32)) * -10000.0).reshape(B, 1, S)

    # position + token_type(0) embedding term, [S, H]; added per sequence inside the kernel.
    add = (params["pos_emb"][:S] + params["tok_emb"][0][None, :]).astype(jnp.float32)

    inputs = [x.astype(jnp.float32), add, bias, params["vecs"]]
    for lw in params["layer_weights"]:
        inputs += list(lw)
    inputs += [params["pool_w"], params["cls_w"]]

    const2 = lambda b: (0, 0)                          # weights stay resident across grid steps
    in_specs = [
        pl.BlockSpec((1, S, H), lambda b: (b, 0, 0)),  # this sequence's embeddings
        pl.BlockSpec((S, H), const2),                  # pos+tok embedding term (shared)
        pl.BlockSpec((1, 1, S), lambda b: (b, 0, 0)),  # this sequence's attention bias
        pl.BlockSpec(params["vecs"].shape, const2),    # packed biases / LN params
    ]
    for lw in params["layer_weights"]:
        in_specs += [pl.BlockSpec(w.shape, const2) for w in lw]
    in_specs += [pl.BlockSpec(params["pool_w"].shape, const2),
                 pl.BlockSpec(params["cls_w"].shape, const2)]

    kernel = functools.partial(_fwd_kernel, n_layers=n_layers, nH=nH, dh=dh,
                               scale=scale, eps=LN_EPS, num_classes=C)

    logits = pl.pallas_call(
        kernel,
        grid=(B,),
        out_shape=jax.ShapeDtypeStruct((B, 1, C), jnp.float32),
        in_specs=in_specs,
        out_specs=pl.BlockSpec((1, 1, C), lambda b: (b, 0, 0)),
        compiler_params=pltpu.CompilerParams(dimension_semantics=("parallel",)),
    )(*inputs)

    # TODO(synk): CrossEntropy loss branch only applies when labels are given; the reference
    # call path uses labels=None, so loss is None here as well.
    return logits.reshape(B, C), None


if __name__ == "__main__":
    B, S = 2, 8
    HIDDEN = 128          # input_dim; num_attention_heads = 128 // 64 = 2
    NUM_CLASSES = 4

    kx, _ = jax.random.split(jax.random.PRNGKey(0))
    x = jax.random.normal(kx, (B, S, HIDDEN), jnp.float32)
    attention_mask = jnp.ones((B, S), jnp.float32)

    params = init_params(jax.random.PRNGKey(42), HIDDEN, NUM_CLASSES)

    logits, loss = transformer_classifier_forward(params, x, attention_mask)
    logits = jax.block_until_ready(logits)
    assert logits.shape == (B, NUM_CLASSES)
    assert loss is None
    assert not bool(jnp.isnan(logits).any())
    print("KERNEL_OK")
</pallas_src>

<mosaic_0001>
module attributes {stable_mosaic.version = 11 : i64} {
  func.func @_fwd_kernel(%arg0: i32, %arg1: memref<1x8x128xf32, #tpu.memory_space<vmem>>, %arg2: memref<8x128xf32, #tpu.memory_space<vmem>>, %arg3: memref<1x1x8xf32, #tpu.memory_space<vmem>>, %arg4: memref<20x512xf32, #tpu.memory_space<vmem>>, %arg5: memref<128x384xbf16, #tpu.memory_space<vmem>>, %arg6: memref<128x128xbf16, #tpu.memory_space<vmem>>, %arg7: memref<128x512xbf16, #tpu.memory_space<vmem>>, %arg8: memref<512x128xbf16, #tpu.memory_space<vmem>>, %arg9: memref<128x384xbf16, #tpu.memory_space<vmem>>, %arg10: memref<128x128xbf16, #tpu.memory_space<vmem>>, %arg11: memref<128x512xbf16, #tpu.memory_space<vmem>>, %arg12: memref<512x128xbf16, #tpu.memory_space<vmem>>, %arg13: memref<128x128xbf16, #tpu.memory_space<vmem>>, %arg14: memref<128x4xbf16, #tpu.memory_space<vmem>>, %arg15: memref<1x1x4xf32, #tpu.memory_space<vmem>>) attributes {dimension_semantics = [#tpu.dimension_semantics<parallel>], iteration_bounds = array<i64: 2>, scalar_prefetch = 0 : i64, scratch_operands = 0 : i64, tpu.core_type = #tpu.core_type<tc>, window_params = [{transform_indices = @transform_0, window_bounds = array<i64: 1, 8, 128>}, {pipeline_mode = #tpu.pipeline_mode<synchronous>, transform_indices = @transform_1, window_bounds = array<i64: 8, 128>}, {transform_indices = @transform_2, window_bounds = array<i64: 1, 1, 8>}, {pipeline_mode = #tpu.pipeline_mode<synchronous>, transform_indices = @transform_3, window_bounds = array<i64: 20, 512>}, {pipeline_mode = #tpu.pipeline_mode<synchronous>, transform_indices = @transform_4, window_bounds = array<i64: 128, 384>}, {pipeline_mode = #tpu.pipeline_mode<synchronous>, transform_indices = @transform_5, window_bounds = array<i64: 128, 128>}, {pipeline_mode = #tpu.pipeline_mode<synchronous>, transform_indices = @transform_6, window_bounds = array<i64: 128, 512>}, {pipeline_mode = #tpu.pipeline_mode<synchronous>, transform_indices = @transform_7, window_bounds = array<i64: 512, 128>}, {pipeline_mode = #tpu.pipeline_mode<synchronous>, transform_indices = @transform_8, window_bounds = array<i64: 128, 384>}, {pipeline_mode = #tpu.pipeline_mode<synchronous>, transform_indices = @transform_9, window_bounds = array<i64: 128, 128>}, {pipeline_mode = #tpu.pipeline_mode<synchronous>, transform_indices = @transform_10, window_bounds = array<i64: 128, 512>}, {pipeline_mode = #tpu.pipeline_mode<synchronous>, transform_indices = @transform_11, window_bounds = array<i64: 512, 128>}, {pipeline_mode = #tpu.pipeline_mode<synchronous>, transform_indices = @transform_12, window_bounds = array<i64: 128, 128>}, {pipeline_mode = #tpu.pipeline_mode<synchronous>, transform_indices = @transform_13, window_bounds = array<i64: 128, 4>}, {transform_indices = @transform_14, window_bounds = array<i64: 1, 1, 4>}]} {
    %c0 = arith.constant 0 : index
    %c0_0 = arith.constant 0 : index
    %c0_1 = arith.constant 0 : index
    %0 = vector.load %arg3[%c0, %c0_0, %c0_1] : memref<1x1x8xf32, #tpu.memory_space<vmem>>, vector<1x1x8xf32>
    %c0_2 = arith.constant 0 : index
    %c0_3 = arith.constant 0 : index
    %c0_4 = arith.constant 0 : index
    %1 = vector.load %arg1[%c0_2, %c0_3, %c0_4] : memref<1x8x128xf32, #tpu.memory_space<vmem>>, vector<1x8x128xf32>
    %2 = vector.shape_cast %1 : vector<1x8x128xf32> to vector<8x128xf32>
    %c0_5 = arith.constant 0 : index
    %c0_6 = arith.constant 0 : index
    %3 = vector.load %arg2[%c0_5, %c0_6] : memref<8x128xf32, #tpu.memory_space<vmem>>, vector<8x128xf32>
    %4 = arith.addf %2, %3 : vector<8x128xf32>
    %c0_7 = arith.constant 0 : index
    %c0_8 = arith.constant 0 : index
    %5 = vector.load %arg4[%c0_7, %c0_8] : memref<20x512xf32, #tpu.memory_space<vmem>>, vector<1x128xf32>
    %c1 = arith.constant 1 : index
    %c0_9 = arith.constant 0 : index
    %6 = vector.load %arg4[%c1, %c0_9] : memref<20x512xf32, #tpu.memory_space<vmem>>, vector<1x128xf32>
    %cst = arith.constant dense<0.000000e+00> : vector<8xf32>
    %7 = vector.multi_reduction <add>, %4, %cst [1] : vector<8x128xf32> to vector<8xf32>
    %8 = vector.shape_cast %7 : vector<8xf32> to vector<8x1xf32>
    %cst_10 = arith.constant 1.280000e+02 : f32
    %9 = vector.broadcast %cst_10 : f32 to vector<8x1xf32>
    %10 = arith.divf %8, %9 : vector<8x1xf32>
    %11 = vector.broadcast %10 : vector<8x1xf32> to vector<8x128xf32>
    %12 = arith.subf %4, %11 : vector<8x128xf32>
    %13 = arith.mulf %12, %12 : vector<8x128xf32>
    %cst_11 = arith.constant dense<0.000000e+00> : vector<8xf32>
    %14 = vector.multi_reduction <add>, %13, %cst_11 [1] : vector<8x128xf32> to vector<8xf32>
    %15 = vector.shape_cast %14 : vector<8xf32> to vector<8x1xf32>
    %cst_12 = arith.constant 1.280000e+02 : f32
    %16 = vector.broadcast %cst_12 : f32 to vector<8x1xf32>
    %17 = arith.divf %15, %16 : vector<8x1xf32>
    %18 = vector.broadcast %10 : vector<8x1xf32> to vector<8x128xf32>
    %19 = arith.subf %4, %18 : vector<8x128xf32>
    %cst_13 = arith.constant 9.99999996E-13 : f32
    %20 = vector.broadcast %cst_13 : f32 to vector<8x1xf32>
    %21 = arith.addf %17, %20 : vector<8x1xf32>
    %22 = math.rsqrt %21 : vector<8x1xf32>
    %23 = vector.broadcast %22 : vector<8x1xf32> to vector<8x128xf32>
    %24 = arith.mulf %19, %23 : vector<8x128xf32>
    %25 = vector.broadcast %5 : vector<1x128xf32> to vector<8x128xf32>
    %26 = arith.mulf %24, %25 : vector<8x128xf32>
    %27 = vector.broadcast %6 : vector<1x128xf32> to vector<8x128xf32>
    %28 = arith.addf %26, %27 : vector<8x128xf32>
    %29 = arith.truncf %28 : vector<8x128xf32> to vector<8x128xbf16>
    %c0_14 = arith.constant 0 : index
    %c0_15 = arith.constant 0 : index
    %30 = vector.load %arg5[%c0_14, %c0_15] : memref<128x384xbf16, #tpu.memory_space<vmem>>, vector<128x384xbf16>
    %cst_16 = arith.constant dense<0.000000e+00> : vector<8x384xf32>
    %31 = tpu.matmul %29, %30, %cst_16 {dimension_numbers = #tpu.dot_dimension_numbers<[1], [0], [0], [1], [0, 0, 1, 1], [], []>} : vector<8x128xbf16>, vector<128x384xbf16>, vector<8x384xf32> -> vector<8x384xf32>
    %c2 = arith.constant 2 : index
    %c0_17 = arith.constant 0 : index
    %32 = vector.load %arg4[%c2, %c0_17] : memref<20x512xf32, #tpu.memory_space<vmem>>, vector<1x384xf32>
    %33 = vector.broadcast %32 : vector<1x384xf32> to vector<8x384xf32>
    %34 = arith.addf %31, %33 : vector<8x384xf32>
    %35 = arith.truncf %34 : vector<8x384xf32> to vector<8x384xbf16>
    %36 = vector.extract_strided_slice %35 {offsets = [0, 0], sizes = [8, 64], strides = [1, 1]} : vector<8x384xbf16> to vector<8x64xbf16>
    %37 = vector.extract_strided_slice %35 {offsets = [0, 64], sizes = [8, 64], strides = [1, 1]} : vector<8x384xbf16> to vector<8x64xbf16>
    %38 = vector.shape_cast %36 : vector<8x64xbf16> to vector<1x8x64xbf16>
    %39 = vector.shape_cast %37 : vector<8x64xbf16> to vector<1x8x64xbf16>
    %40 = tpu.concatenate %38, %39 in 0 : vector<1x8x64xbf16>, vector<1x8x64xbf16> -> vector<2x8x64xbf16>
    %41 = vector.extract_strided_slice %35 {offsets = [0, 128], sizes = [8, 64], strides = [1, 1]} : vector<8x384xbf16> to vector<8x64xbf16>
    %42 = vector.extract_strided_slice %35 {offsets = [0, 192], sizes = [8, 64], strides = [1, 1]} : vector<8x384xbf16> to vector<8x64xbf16>
    %43 = vector.shape_cast %41 : vector<8x64xbf16> to vector<1x8x64xbf16>
    %44 = vector.shape_cast %42 : vector<8x64xbf16> to vector<1x8x64xbf16>
    %45 = tpu.concatenate %43, %44 in 0 : vector<1x8x64xbf16>, vector<1x8x64xbf16> -> vector<2x8x64xbf16>
    %46 = vector.extract_strided_slice %35 {offsets = [0, 256], sizes = [8, 64], strides = [1, 1]} : vector<8x384xbf16> to vector<8x64xbf16>
    %47 = vector.extract_strided_slice %35 {offsets = [0, 320], sizes = [8, 64], strides = [1, 1]} : vector<8x384xbf16> to vector<8x64xbf16>
    %48 = vector.shape_cast %46 : vector<8x64xbf16> to vector<1x8x64xbf16>
    %49 = vector.shape_cast %47 : vector<8x64xbf16> to vector<1x8x64xbf16>
    %50 = tpu.concatenate %48, %49 in 0 : vector<1x8x64xbf16>, vector<1x8x64xbf16> -> vector<2x8x64xbf16>
    "tpu.trace_start"() <{level = 10 : i32, message = "hqd,hkd->hqk"}> : () -> ()
    %cst_18 = arith.constant dense<0.000000e+00> : vector<2x8x8xf32>
    %51 = tpu.matmul %40, %45, %cst_18 {dimension_numbers = #tpu.dot_dimension_numbers<[2], [2], [1], [1], [0, 0, 0, 1, 1, 1], [0], [0]>} : vector<2x8x64xbf16>, vector<2x8x64xbf16>, vector<2x8x8xf32> -> vector<2x8x8xf32>
    "tpu.trace_stop"() : () -> ()
    %cst_19 = arith.constant 1.250000e-01 : f32
    %52 = vector.broadcast %cst_19 : f32 to vector<2x8x8xf32>
    %53 = arith.mulf %51, %52 : vector<2x8x8xf32>
    %54 = vector.broadcast %0 : vector<1x1x8xf32> to vector<2x8x8xf32>
    %55 = arith.addf %53, %54 : vector<2x8x8xf32>
    %cst_20 = arith.constant dense<0xFF800000> : vector<2x8xf32>
    %56 = vector.multi_reduction <maximumf>, %55, %cst_20 [2] : vector<2x8x8xf32> to vector<2x8xf32>
    %57 = vector.shape_cast %56 : vector<2x8xf32> to vector<2x8x1xf32>
    %58 = vector.broadcast %57 : vector<2x8x1xf32> to vector<2x8x8xf32>
    %59 = arith.subf %55, %58 : vector<2x8x8xf32>
    %60 = math.exp %59 : vector<2x8x8xf32>
    %cst_21 = arith.constant dense<0.000000e+00> : vector<2x8xf32>
    %61 = vector.multi_reduction <add>, %60, %cst_21 [2] : vector<2x8x8xf32> to vector<2x8xf32>
    %62 = vector.shape_cast %61 : vector<2x8xf32> to vector<2x8x1xf32>
    %63 = vector.broadcast %62 : vector<2x8x1xf32> to vector<2x8x8xf32>
    %64 = arith.divf %60, %63 : vector<2x8x8xf32>
    %65 = arith.truncf %64 : vector<2x8x8xf32> to vector<2x8x8xbf16>
    "tpu.trace_start"() <{level = 10 : i32, message = "hqk,hkd->hqd"}> : () -> ()
    %cst_22 = arith.constant dense<0.000000e+00> : vector<2x8x64xf32>
    %66 = tpu.matmul %65, %50, %cst_22 {dimension_numbers = #tpu.dot_dimension_numbers<[2], [1], [1], [2], [0, 0, 0, 1, 1, 2], [0], [0]>} : vector<2x8x8xbf16>, vector<2x8x64xbf16>, vector<2x8x64xf32> -> vector<2x8x64xf32>
    "tpu.trace_stop"() : () -> ()
    %67 = vector.extract_strided_slice %66 {offsets = [0, 0, 0], sizes = [1, 8, 64], strides = [1, 1, 1]} : vector<2x8x64xf32> to vector<1x8x64xf32>
    %68 = vector.shape_cast %67 : vector<1x8x64xf32> to vector<8x64xf32>
    %69 = vector.extract_strided_slice %66 {offsets = [1, 0, 0], sizes = [1, 8, 64], strides = [1, 1, 1]} : vector<2x8x64xf32> to vector<1x8x64xf32>
    %70 = vector.shape_cast %69 : vector<1x8x64xf32> to vector<8x64xf32>
    %71 = tpu.concatenate %68, %70 in 1 : vector<8x64xf32>, vector<8x64xf32> -> vector<8x128xf32>
    %72 = arith.truncf %71 : vector<8x128xf32> to vector<8x128xbf16>
    %c0_23 = arith.constant 0 : index
    %c0_24 = arith.constant 0 : index
    %73 = vector.load %arg6[%c0_23, %c0_24] : memref<128x128xbf16, #tpu.memory_space<vmem>>, vector<128x128xbf16>
    %cst_25 = arith.constant dense<0.000000e+00> : vector<8x128xf32>
    %74 = tpu.matmul %72, %73, %cst_25 {dimension_numbers = #tpu.dot_dimension_numbers<[1], [0], [0], [1], [0, 0, 1, 1], [], []>} : vector<8x128xbf16>, vector<128x128xbf16>, vector<8x128xf32> -> vector<8x128xf32>
    %c3 = arith.constant 3 : index
    %c0_26 = arith.constant 0 : index
    %75 = vector.load %arg4[%c3, %c0_26] : memref<20x512xf32, #tpu.memory_space<vmem>>, vector<1x128xf32>
    %76 = vector.broadcast %75 : vector<1x128xf32> to vector<8x128xf32>
    %77 = arith.addf %74, %76 : vector<8x128xf32>
    %78 = arith.addf %77, %28 : vector<8x128xf32>
    %c4 = arith.constant 4 : index
    %c0_27 = arith.constant 0 : index
    %79 = vector.load %arg4[%c4, %c0_27] : memref<20x512xf32, #tpu.memory_space<vmem>>, vector<1x128xf32>
    %c5 = arith.constant 5 : index
    %c0_28 = arith.constant 0 : index
    %80 = vector.load %arg4[%c5, %c0_28] : memref<20x512xf32, #tpu.memory_space<vmem>>, vector<1x128xf32>
    %cst_29 = arith.constant dense<0.000000e+00> : vector<8xf32>
    %81 = vector.multi_reduction <add>, %78, %cst_29 [1] : vector<8x128xf32> to vector<8xf32>
    %82 = vector.shape_cast %81 : vector<8xf32> to vector<8x1xf32>
    %cst_30 = arith.constant 1.280000e+02 : f32
    %83 = vector.broadcast %cst_30 : f32 to vector<8x1xf32>
    %84 = arith.divf %82, %83 : vector<8x1xf32>
    %85 = vector.broadcast %84 : vector<8x1xf32> to vector<8x128xf32>
    %86 = arith.subf %78, %85 : vector<8x128xf32>
    %87 = arith.mulf %86, %86 : vector<8x128xf32>
    %cst_31 = arith.constant dense<0.000000e+00> : vector<8xf32>
    %88 = vector.multi_reduction <add>, %87, %cst_31 [1] : vector<8x128xf32> to vector<8xf32>
    %89 = vector.shape_cast %88 : vector<8xf32> to vector<8x1xf32>
    %cst_32 = arith.constant 1.280000e+02 : f32
    %90 = vector.broadcast %cst_32 : f32 to vector<8x1xf32>
    %91 = arith.divf %89, %90 : vector<8x1xf32>
    %92 = vector.broadcast %84 : vector<8x1xf32> to vector<8x128xf32>
    %93 = arith.subf %78, %92 : vector<8x128xf32>
    %cst_33 = arith.constant 9.99999996E-13 : f32
    %94 = vector.broadcast %cst_33 : f32 to vector<8x1xf32>
    %95 = arith.addf %91, %94 : vector<8x1xf32>
    %96 = math.rsqrt %95 : vector<8x1xf32>
    %97 = vector.broadcast %96 : vector<8x1xf32> to vector<8x128xf32>
    %98 = arith.mulf %93, %97 : vector<8x128xf32>
    %99 = vector.broadcast %79 : vector<1x128xf32> to vector<8x128xf32>
    %100 = arith.mulf %98, %99 : vector<8x128xf32>
    %101 = vector.broadcast %80 : vector<1x128xf32> to vector<8x128xf32>
    %102 = arith.addf %100, %101 : vector<8x128xf32>
    %103 = arith.truncf %102 : vector<8x128xf32> to vector<8x128xbf16>
    %c0_34 = arith.constant 0 : index
    %c0_35 = arith.constant 0 : index
    %104 = vector.load %arg7[%c0_34, %c0_35] : memref<128x512xbf16, #tpu.memory_space<vmem>>, vector<128x512xbf16>
    %cst_36 = arith.constant dense<0.000000e+00> : vector<8x512xf32>
    %105 = tpu.matmul %103, %104, %cst_36 {dimension_numbers = #tpu.dot_dimension_numbers<[1], [0], [0], [1], [0, 0, 1, 1], [], []>} : vector<8x128xbf16>, vector<128x512xbf16>, vector<8x512xf32> -> vector<8x512xf32>
    %c6 = arith.constant 6 : index
    %c0_37 = arith.constant 0 : index
    %106 = vector.load %arg4[%c6, %c0_37] : memref<20x512xf32, #tpu.memory_space<vmem>>, vector<1x512xf32>
    %107 = vector.broadcast %106 : vector<1x512xf32> to vector<8x512xf32>
    %108 = arith.addf %105, %107 : vector<8x512xf32>
    %cst_38 = arith.constant 5.000000e-01 : f32
    %109 = vector.broadcast %cst_38 : f32 to vector<8x512xf32>
    %110 = arith.mulf %109, %108 : vector<8x512xf32>
    %cst_39 = arith.constant 0.707106769 : f32
    %111 = vector.broadcast %cst_39 : f32 to vector<8x512xf32>
    %112 = arith.mulf %108, %111 : vector<8x512xf32>
    %113 = math.erf %112 : vector<8x512xf32>
    %cst_40 = arith.constant 1.000000e+00 : f32
    %114 = vector.broadcast %cst_40 : f32 to vector<8x512xf32>
    %115 = arith.addf %114, %113 : vector<8x512xf32>
    %116 = arith.mulf %110, %115 : vector<8x512xf32>
    %117 = arith.truncf %116 : vector<8x512xf32> to vector<8x512xbf16>
    %c0_41 = arith.constant 0 : index
    %c0_42 = arith.constant 0 : index
    %118 = vector.load %arg8[%c0_41, %c0_42] : memref<512x128xbf16, #tpu.memory_space<vmem>>, vector<512x128xbf16>
    %cst_43 = arith.constant dense<0.000000e+00> : vector<8x128xf32>
    %119 = tpu.matmul %117, %118, %cst_43 {dimension_numbers = #tpu.dot_dimension_numbers<[1], [0], [0], [1], [0, 0, 1, 1], [], []>} : vector<8x512xbf16>, vector<512x128xbf16>, vector<8x128xf32> -> vector<8x128xf32>
    %c7 = arith.constant 7 : index
    %c0_44 = arith.constant 0 : index
    %120 = vector.load %arg4[%c7, %c0_44] : memref<20x512xf32, #tpu.memory_space<vmem>>, vector<1x128xf32>
    %121 = vector.broadcast %120 : vector<1x128xf32> to vector<8x128xf32>
    %122 = arith.addf %119, %121 : vector<8x128xf32>
    %123 = arith.addf %122, %102 : vector<8x128xf32>
    %c8 = arith.constant 8 : index
    %c0_45 = arith.constant 0 : index
    %124 = vector.load %arg4[%c8, %c0_45] : memref<20x512xf32, #tpu.memory_space<vmem>>, vector<1x128xf32>
    %c9 = arith.constant 9 : index
    %c0_46 = arith.constant 0 : index
    %125 = vector.load %arg4[%c9, %c0_46] : memref<20x512xf32, #tpu.memory_space<vmem>>, vector<1x128xf32>
    %cst_47 = arith.constant dense<0.000000e+00> : vector<8xf32>
    %126 = vector.multi_reduction <add>, %123, %cst_47 [1] : vector<8x128xf32> to vector<8xf32>
    %127 = vector.shape_cast %126 : vector<8xf32> to vector<8x1xf32>
    %cst_48 = arith.constant 1.280000e+02 : f32
    %128 = vector.broadcast %cst_48 : f32 to vector<8x1xf32>
    %129 = arith.divf %127, %128 : vector<8x1xf32>
    %130 = vector.broadcast %129 : vector<8x1xf32> to vector<8x128xf32>
    %131 = arith.subf %123, %130 : vector<8x128xf32>
    %132 = arith.mulf %131, %131 : vector<8x128xf32>
    %cst_49 = arith.constant dense<0.000000e+00> : vector<8xf32>
    %133 = vector.multi_reduction <add>, %132, %cst_49 [1] : vector<8x128xf32> to vector<8xf32>
    %134 = vector.shape_cast %133 : vector<8xf32> to vector<8x1xf32>
    %cst_50 = arith.constant 1.280000e+02 : f32
    %135 = vector.broadcast %cst_50 : f32 to vector<8x1xf32>
    %136 = arith.divf %134, %135 : vector<8x1xf32>
    %137 = vector.broadcast %129 : vector<8x1xf32> to vector<8x128xf32>
    %138 = arith.subf %123, %137 : vector<8x128xf32>
    %cst_51 = arith.constant 9.99999996E-13 : f32
    %139 = vector.broadcast %cst_51 : f32 to vector<8x1xf32>
    %140 = arith.addf %136, %139 : vector<8x1xf32>
    %141 = math.rsqrt %140 : vector<8x1xf32>
    %142 = vector.broadcast %141 : vector<8x1xf32> to vector<8x128xf32>
    %143 = arith.mulf %138, %142 : vector<8x128xf32>
    %144 = vector.broadcast %124 : vector<1x128xf32> to vector<8x128xf32>
    %145 = arith.mulf %143, %144 : vector<8x128xf32>
    %146 = vector.broadcast %125 : vector<1x128xf32> to vector<8x128xf32>
    %147 = arith.addf %145, %146 : vector<8x128xf32>
    %148 = arith.truncf %147 : vector<8x128xf32> to vector<8x128xbf16>
    %c0_52 = arith.constant 0 : index
    %c0_53 = arith.constant 0 : index
    %149 = vector.load %arg9[%c0_52, %c0_53] : memref<128x384xbf16, #tpu.memory_space<vmem>>, vector<128x384xbf16>
    %cst_54 = arith.constant dense<0.000000e+00> : vector<8x384xf32>
    %150 = tpu.matmul %148, %149, %cst_54 {dimension_numbers = #tpu.dot_dimension_numbers<[1], [0], [0], [1], [0, 0, 1, 1], [], []>} : vector<8x128xbf16>, vector<128x384xbf16>, vector<8x384xf32> -> vector<8x384xf32>
    %c10 = arith.constant 10 : index
    %c0_55 = arith.constant 0 : index
    %151 = vector.load %arg4[%c10, %c0_55] : memref<20x512xf32, #tpu.memory_space<vmem>>, vector<1x384xf32>
    %152 = vector.broadcast %151 : vector<1x384xf32> to vector<8x384xf32>
    %153 = arith.addf %150, %152 : vector<8x384xf32>
    %154 = arith.truncf %153 : vector<8x384xf32> to vector<8x384xbf16>
    %155 = vector.extract_strided_slice %154 {offsets = [0, 0], sizes = [8, 64], strides = [1, 1]} : vector<8x384xbf16> to vector<8x64xbf16>
    %156 = vector.extract_strided_slice %154 {offsets = [0, 64], sizes = [8, 64], strides = [1, 1]} : vector<8x384xbf16> to vector<8x64xbf16>
    %157 = vector.shape_cast %155 : vector<8x64xbf16> to vector<1x8x64xbf16>
    %158 = vector.shape_cast %156 : vector<8x64xbf16> to vector<1x8x64xbf16>
    %159 = tpu.concatenate %157, %158 in 0 : vector<1x8x64xbf16>, vector<1x8x64xbf16> -> vector<2x8x64xbf16>
    %160 = vector.extract_strided_slice %154 {offsets = [0, 128], sizes = [8, 64], strides = [1, 1]} : vector<8x384xbf16> to vector<8x64xbf16>
    %161 = vector.extract_strided_slice %154 {offsets = [0, 192], sizes = [8, 64], strides = [1, 1]} : vector<8x384xbf16> to vector<8x64xbf16>
    %162 = vector.shape_cast %160 : vector<8x64xbf16> to vector<1x8x64xbf16>
    %163 = vector.shape_cast %161 : vector<8x64xbf16> to vector<1x8x64xbf16>
    %164 = tpu.concatenate %162, %163 in 0 : vector<1x8x64xbf16>, vector<1x8x64xbf16> -> vector<2x8x64xbf16>
    %165 = vector.extract_strided_slice %154 {offsets = [0, 256], sizes = [8, 64], strides = [1, 1]} : vector<8x384xbf16> to vector<8x64xbf16>
    %166 = vector.extract_strided_slice %154 {offsets = [0, 320], sizes = [8, 64], strides = [1, 1]} : vector<8x384xbf16> to vector<8x64xbf16>
    %167 = vector.shape_cast %165 : vector<8x64xbf16> to vector<1x8x64xbf16>
    %168 = vector.shape_cast %166 : vector<8x64xbf16> to vector<1x8x64xbf16>
    %169 = tpu.concatenate %167, %168 in 0 : vector<1x8x64xbf16>, vector<1x8x64xbf16> -> vector<2x8x64xbf16>
    "tpu.trace_start"() <{level = 10 : i32, message = "hqd,hkd->hqk"}> : () -> ()
    %cst_56 = arith.constant dense<0.000000e+00> : vector<2x8x8xf32>
    %170 = tpu.matmul %159, %164, %cst_56 {dimension_numbers = #tpu.dot_dimension_numbers<[2], [2], [1], [1], [0, 0, 0, 1, 1, 1], [0], [0]>} : vector<2x8x64xbf16>, vector<2x8x64xbf16>, vector<2x8x8xf32> -> vector<2x8x8xf32>
    "tpu.trace_stop"() : () -> ()
    %cst_57 = arith.constant 1.250000e-01 : f32
    %171 = vector.broadcast %cst_57 : f32 to vector<2x8x8xf32>
    %172 = arith.mulf %170, %171 : vector<2x8x8xf32>
    %173 = vector.broadcast %0 : vector<1x1x8xf32> to vector<2x8x8xf32>
    %174 = arith.addf %172, %173 : vector<2x8x8xf32>
    %cst_58 = arith.constant dense<0xFF800000> : vector<2x8xf32>
    %175 = vector.multi_reduction <maximumf>, %174, %cst_58 [2] : vector<2x8x8xf32> to vector<2x8xf32>
    %176 = vector.shape_cast %175 : vector<2x8xf32> to vector<2x8x1xf32>
    %177 = vector.broadcast %176 : vector<2x8x1xf32> to vector<2x8x8xf32>
    %178 = arith.subf %174, %177 : vector<2x8x8xf32>
    %179 = math.exp %178 : vector<2x8x8xf32>
    %cst_59 = arith.constant dense<0.000000e+00> : vector<2x8xf32>
    %180 = vector.multi_reduction <add>, %179, %cst_59 [2] : vector<2x8x8xf32> to vector<2x8xf32>
    %181 = vector.shape_cast %180 : vector<2x8xf32> to vector<2x8x1xf32>
    %182 = vector.broadcast %181 : vector<2x8x1xf32> to vector<2x8x8xf32>
    %183 = arith.divf %179, %182 : vector<2x8x8xf32>
    %184 = arith.truncf %183 : vector<2x8x8xf32> to vector<2x8x8xbf16>
    "tpu.trace_start"() <{level = 10 : i32, message = "hqk,hkd->hqd"}> : () -> ()
    %cst_60 = arith.constant dense<0.000000e+00> : vector<2x8x64xf32>
    %185 = tpu.matmul %184, %169, %cst_60 {dimension_numbers = #tpu.dot_dimension_numbers<[2], [1], [1], [2], [0, 0, 0, 1, 1, 2], [0], [0]>} : vector<2x8x8xbf16>, vector<2x8x64xbf16>, vector<2x8x64xf32> -> vector<2x8x64xf32>
    "tpu.trace_stop"() : () -> ()
    %186 = vector.extract_strided_slice %185 {offsets = [0, 0, 0], sizes = [1, 8, 64], strides = [1, 1, 1]} : vector<2x8x64xf32> to vector<1x8x64xf32>
    %187 = vector.shape_cast %186 : vector<1x8x64xf32> to vector<8x64xf32>
    %188 = vector.extract_strided_slice %185 {offsets = [1, 0, 0], sizes = [1, 8, 64], strides = [1, 1, 1]} : vector<2x8x64xf32> to vector<1x8x64xf32>
    %189 = vector.shape_cast %188 : vector<1x8x64xf32> to vector<8x64xf32>
    %190 = tpu.concatenate %187, %189 in 1 : vector<8x64xf32>, vector<8x64xf32> -> vector<8x128xf32>
    %191 = arith.truncf %190 : vector<8x128xf32> to vector<8x128xbf16>
    %c0_61 = arith.constant 0 : index
    %c0_62 = arith.constant 0 : index
    %192 = vector.load %arg10[%c0_61, %c0_62] : memref<128x128xbf16, #tpu.memory_space<vmem>>, vector<128x128xbf16>
    %cst_63 = arith.constant dense<0.000000e+00> : vector<8x128xf32>
    %193 = tpu.matmul %191, %192, %cst_63 {dimension_numbers = #tpu.dot_dimension_numbers<[1], [0], [0], [1], [0, 0, 1, 1], [], []>} : vector<8x128xbf16>, vector<128x128xbf16>, vector<8x128xf32> -> vector<8x128xf32>
    %c11 = arith.constant 11 : index
    %c0_64 = arith.constant 0 : index
    %194 = vector.load %arg4[%c11, %c0_64] : memref<20x512xf32, #tpu.memory_space<vmem>>, vector<1x128xf32>
    %195 = vector.broadcast %194 : vector<1x128xf32> to vector<8x128xf32>
    %196 = arith.addf %193, %195 : vector<8x128xf32>
    %197 = arith.addf %196, %147 : vector<8x128xf32>
    %c12 = arith.constant 12 : index
    %c0_65 = arith.constant 0 : index
    %198 = vector.load %arg4[%c12, %c0_65] : memref<20x512xf32, #tpu.memory_space<vmem>>, vector<1x128xf32>
    %c13 = arith.constant 13 : index
    %c0_66 = arith.constant 0 : index
    %199 = vector.load %arg4[%c13, %c0_66] : memref<20x512xf32, #tpu.memory_space<vmem>>, vector<1x128xf32>
    %cst_67 = arith.constant dense<0.000000e+00> : vector<8xf32>
    %200 = vector.multi_reduction <add>, %197, %cst_67 [1] : vector<8x128xf32> to vector<8xf32>
    %201 = vector.shape_cast %200 : vector<8xf32> to vector<8x1xf32>
    %cst_68 = arith.constant 1.280000e+02 : f32
    %202 = vector.broadcast %cst_68 : f32 to vector<8x1xf32>
    %203 = arith.divf %201, %202 : vector<8x1xf32>
    %204 = vector.broadcast %203 : vector<8x1xf32> to vector<8x128xf32>
    %205 = arith.subf %197, %204 : vector<8x128xf32>
    %206 = arith.mulf %205, %205 : vector<8x128xf32>
    %cst_69 = arith.constant dense<0.000000e+00> : vector<8xf32>
    %207 = vector.multi_reduction <add>, %206, %cst_69 [1] : vector<8x128xf32> to vector<8xf32>
    %208 = vector.shape_cast %207 : vector<8xf32> to vector<8x1xf32>
    %cst_70 = arith.constant 1.280000e+02 : f32
    %209 = vector.broadcast %cst_70 : f32 to vector<8x1xf32>
    %210 = arith.divf %208, %209 : vector<8x1xf32>
    %211 = vector.broadcast %203 : vector<8x1xf32> to vector<8x128xf32>
    %212 = arith.subf %197, %211 : vector<8x128xf32>
    %cst_71 = arith.constant 9.99999996E-13 : f32
    %213 = vector.broadcast %cst_71 : f32 to vector<8x1xf32>
    %214 = arith.addf %210, %213 : vector<8x1xf32>
    %215 = math.rsqrt %214 : vector<8x1xf32>
    %216 = vector.broadcast %215 : vector<8x1xf32> to vector<8x128xf32>
    %217 = arith.mulf %212, %216 : vector<8x128xf32>
    %218 = vector.broadcast %198 : vector<1x128xf32> to vector<8x128xf32>
    %219 = arith.mulf %217, %218 : vector<8x128xf32>
    %220 = vector.broadcast %199 : vector<1x128xf32> to vector<8x128xf32>
    %221 = arith.addf %219, %220 : vector<8x128xf32>
    %222 = arith.truncf %221 : vector<8x128xf32> to vector<8x128xbf16>
    %c0_72 = arith.constant 0 : index
    %c0_73 = arith.constant 0 : index
    %223 = vector.load %arg11[%c0_72, %c0_73] : memref<128x512xbf16, #tpu.memory_space<vmem>>, vector<128x512xbf16>
    %cst_74 = arith.constant dense<0.000000e+00> : vector<8x512xf32>
    %224 = tpu.matmul %222, %223, %cst_74 {dimension_numbers = #tpu.dot_dimension_numbers<[1], [0], [0], [1], [0, 0, 1, 1], [], []>} : vector<8x128xbf16>, vector<128x512xbf16>, vector<8x512xf32> -> vector<8x512xf32>
    %c14 = arith.constant 14 : index
    %c0_75 = arith.constant 0 : index
    %225 = vector.load %arg4[%c14, %c0_75] : memref<20x512xf32, #tpu.memory_space<vmem>>, vector<1x512xf32>
    %226 = vector.broadcast %225 : vector<1x512xf32> to vector<8x512xf32>
    %227 = arith.addf %224, %226 : vector<8x512xf32>
    %cst_76 = arith.constant 5.000000e-01 : f32
    %228 = vector.broadcast %cst_76 : f32 to vector<8x512xf32>
    %229 = arith.mulf %228, %227 : vector<8x512xf32>
    %cst_77 = arith.constant 0.707106769 : f32
    %230 = vector.broadcast %cst_77 : f32 to vector<8x512xf32>
    %231 = arith.mulf %227, %230 : vector<8x512xf32>
    %232 = math.erf %231 : vector<8x512xf32>
    %cst_78 = arith.constant 1.000000e+00 : f32
    %233 = vector.broadcast %cst_78 : f32 to vector<8x512xf32>
    %234 = arith.addf %233, %232 : vector<8x512xf32>
    %235 = arith.mulf %229, %234 : vector<8x512xf32>
    %236 = arith.truncf %235 : vector<8x512xf32> to vector<8x512xbf16>
    %c0_79 = arith.constant 0 : index
    %c0_80 = arith.constant 0 : index
    %237 = vector.load %arg12[%c0_79, %c0_80] : memref<512x128xbf16, #tpu.memory_space<vmem>>, vector<512x128xbf16>
    %cst_81 = arith.constant dense<0.000000e+00> : vector<8x128xf32>
    %238 = tpu.matmul %236, %237, %cst_81 {dimension_numbers = #tpu.dot_dimension_numbers<[1], [0], [0], [1], [0, 0, 1, 1], [], []>} : vector<8x512xbf16>, vector<512x128xbf16>, vector<8x128xf32> -> vector<8x128xf32>
    %c15 = arith.constant 15 : index
    %c0_82 = arith.constant 0 : index
    %239 = vector.load %arg4[%c15, %c0_82] : memref<20x512xf32, #tpu.memory_space<vmem>>, vector<1x128xf32>
    %240 = vector.broadcast %239 : vector<1x128xf32> to vector<8x128xf32>
    %241 = arith.addf %238, %240 : vector<8x128xf32>
    %242 = arith.addf %241, %221 : vector<8x128xf32>
    %c16 = arith.constant 16 : index
    %c0_83 = arith.constant 0 : index
    %243 = vector.load %arg4[%c16, %c0_83] : memref<20x512xf32, #tpu.memory_space<vmem>>, vector<1x128xf32>
    %c17 = arith.constant 17 : index
    %c0_84 = arith.constant 0 : index
    %244 = vector.load %arg4[%c17, %c0_84] : memref<20x512xf32, #tpu.memory_space<vmem>>, vector<1x128xf32>
    %cst_85 = arith.constant dense<0.000000e+00> : vector<8xf32>
    %245 = vector.multi_reduction <add>, %242, %cst_85 [1] : vector<8x128xf32> to vector<8xf32>
    %246 = vector.shape_cast %245 : vector<8xf32> to vector<8x1xf32>
    %cst_86 = arith.constant 1.280000e+02 : f32
    %247 = vector.broadcast %cst_86 : f32 to vector<8x1xf32>
    %248 = arith.divf %246, %247 : vector<8x1xf32>
    %249 = vector.broadcast %248 : vector<8x1xf32> to vector<8x128xf32>
    %250 = arith.subf %242, %249 : vector<8x128xf32>
    %251 = arith.mulf %250, %250 : vector<8x128xf32>
    %cst_87 = arith.constant dense<0.000000e+00> : vector<8xf32>
    %252 = vector.multi_reduction <add>, %251, %cst_87 [1] : vector<8x128xf32> to vector<8xf32>
    %253 = vector.shape_cast %252 : vector<8xf32> to vector<8x1xf32>
    %cst_88 = arith.constant 1.280000e+02 : f32
    %254 = vector.broadcast %cst_88 : f32 to vector<8x1xf32>
    %255 = arith.divf %253, %254 : vector<8x1xf32>
    %256 = vector.broadcast %248 : vector<8x1xf32> to vector<8x128xf32>
    %257 = arith.subf %242, %256 : vector<8x128xf32>
    %cst_89 = arith.constant 9.99999996E-13 : f32
    %258 = vector.broadcast %cst_89 : f32 to vector<8x1xf32>
    %259 = arith.addf %255, %258 : vector<8x1xf32>
    %260 = math.rsqrt %259 : vector<8x1xf32>
    %261 = vector.broadcast %260 : vector<8x1xf32> to vector<8x128xf32>
    %262 = arith.mulf %257, %261 : vector<8x128xf32>
    %263 = vector.broadcast %243 : vector<1x128xf32> to vector<8x128xf32>
    %264 = arith.mulf %262, %263 : vector<8x128xf32>
    %265 = vector.broadcast %244 : vector<1x128xf32> to vector<8x128xf32>
    %266 = arith.addf %264, %265 : vector<8x128xf32>
    %267 = vector.extract_strided_slice %266 {offsets = [0, 0], sizes = [1, 128], strides = [1, 1]} : vector<8x128xf32> to vector<1x128xf32>
    %268 = arith.truncf %267 : vector<1x128xf32> to vector<1x128xbf16>
    %c0_90 = arith.constant 0 : index
    %c0_91 = arith.constant 0 : index
    %269 = vector.load %arg13[%c0_90, %c0_91] : memref<128x128xbf16, #tpu.memory_space<vmem>>, vector<128x128xbf16>
    %cst_92 = arith.constant dense<0.000000e+00> : vector<1x128xf32>
    %270 = tpu.matmul %268, %269, %cst_92 {dimension_numbers = #tpu.dot_dimension_numbers<[1], [0], [0], [1], [0, 0, 1, 1], [], []>} : vector<1x128xbf16>, vector<128x128xbf16>, vector<1x128xf32> -> vector<1x128xf32>
    %c18 = arith.constant 18 : index
    %c0_93 = arith.constant 0 : index
    %271 = vector.load %arg4[%c18, %c0_93] : memref<20x512xf32, #tpu.memory_space<vmem>>, vector<1x128xf32>
    %272 = arith.addf %270, %271 : vector<1x128xf32>
    %273 = math.tanh %272 : vector<1x128xf32>
    %274 = arith.truncf %273 : vector<1x128xf32> to vector<1x128xbf16>
    %c0_94 = arith.constant 0 : index
    %c0_95 = arith.constant 0 : index
    %275 = vector.load %arg14[%c0_94, %c0_95] : memref<128x4xbf16, #tpu.memory_space<vmem>>, vector<128x4xbf16>
    %cst_96 = arith.constant dense<0.000000e+00> : vector<1x4xf32>
    %276 = tpu.matmul %274, %275, %cst_96 {dimension_numbers = #tpu.dot_dimension_numbers<[1], [0], [0], [1], [0, 0, 1, 1], [], []>} : vector<1x128xbf16>, vector<128x4xbf16>, vector<1x4xf32> -> vector<1x4xf32>
    %c19 = arith.constant 19 : index
    %c0_97 = arith.constant 0 : index
    %277 = vector.load %arg4[%c19, %c0_97] : memref<20x512xf32, #tpu.memory_space<vmem>>, vector<1x4xf32>
    %278 = arith.addf %276, %277 : vector<1x4xf32>
    %279 = vector.shape_cast %278 : vector<1x4xf32> to vector<1x1x4xf32>
    %c0_98 = arith.constant 0 : index
    %c0_99 = arith.constant 0 : index
    %c0_100 = arith.constant 0 : index
    %280 = vector.load %arg15[%c0_98, %c0_99, %c0_100] : memref<1x1x4xf32, #tpu.memory_space<vmem>>, vector<1x1x4xf32>
    tpu.vector_store %arg15[%c0_98, %c0_99, %c0_100], %279 {strides = array<i32>} : memref<1x1x4xf32, #tpu.memory_space<vmem>>, vector<1x1x4xf32>,
    return
  }
  func.func @transform_0(%arg0: i32) -> (i32, i32, i32) {
    %c0_i32 = arith.constant 0 : i32
    %c0_i32_0 = arith.constant 0 : i32
    %c0_i32_1 = arith.constant 0 : i32
    return %arg0, %c0_i32, %c0_i32_0 : i32, i32, i32
  }
  func.func @transform_1(%arg0: i32) -> (i32, i32) {
    %c0_i32 = arith.constant 0 : i32
    %c0_i32_0 = arith.constant 0 : i32
    %c0_i32_1 = arith.constant 0 : i32
    return %c0_i32, %c0_i32_0 : i32, i32
  }
  func.func @transform_2(%arg0: i32) -> (i32, i32, i32) {
    %c0_i32 = arith.constant 0 : i32
    %c0_i32_0 = arith.constant 0 : i32
    %c0_i32_1 = arith.constant 0 : i32
    return %arg0, %c0_i32, %c0_i32_0 : i32, i32, i32
  }
  func.func @transform_3(%arg0: i32) -> (i32, i32) {
    %c0_i32 = arith.constant 0 : i32
    %c0_i32_0 = arith.constant 0 : i32
    %c0_i32_1 = arith.constant 0 : i32
    return %c0_i32, %c0_i32_0 : i32, i32
  }
  func.func @transform_4(%arg0: i32) -> (i32, i32) {
    %c0_i32 = arith.constant 0 : i32
    %c0_i32_0 = arith.constant 0 : i32
    %c0_i32_1 = arith.constant 0 : i32
    return %c0_i32, %c0_i32_0 : i32, i32
  }
  func.func @transform_5(%arg0: i32) -> (i32, i32) {
    %c0_i32 = arith.constant 0 : i32
    %c0_i32_0 = arith.constant 0 : i32
    %c0_i32_1 = arith.constant 0 : i32
    return %c0_i32, %c0_i32_0 : i32, i32
  }
  func.func @transform_6(%arg0: i32) -> (i32, i32) {
    %c0_i32 = arith.constant 0 : i32
    %c0_i32_0 = arith.constant 0 : i32
    %c0_i32_1 = arith.constant 0 : i32
    return %c0_i32, %c0_i32_0 : i32, i32
  }
  func.func @transform_7(%arg0: i32) -> (i32, i32) {
    %c0_i32 = arith.constant 0 : i32
    %c0_i32_0 = arith.constant 0 : i32
    %c0_i32_1 = arith.constant 0 : i32
    return %c0_i32, %c0_i32_0 : i32, i32
  }
  func.func @transform_8(%arg0: i32) -> (i32, i32) {
    %c0_i32 = arith.constant 0 : i32
    %c0_i32_0 = arith.constant 0 : i32
    %c0_i32_1 = arith.constant 0 : i32
    return %c0_i32, %c0_i32_0 : i32, i32
  }
  func.func @transform_9(%arg0: i32) -> (i32, i32) {
    %c0_i32 = arith.constant 0 : i32
    %c0_i32_0 = arith.constant 0 : i32
    %c0_i32_1 = arith.constant 0 : i32
    return %c0_i32, %c0_i32_0 : i32, i32
  }
  func.func @transform_10(%arg0: i32) -> (i32, i32) {
    %c0_i32 = arith.constant 0 : i32
    %c0_i32_0 = arith.constant 0 : i32
    %c0_i32_1 = arith.constant 0 : i32
    return %c0_i32, %c0_i32_0 : i32, i32
  }
  func.func @transform_11(%arg0: i32) -> (i32, i32) {
    %c0_i32 = arith.constant 0 : i32
    %c0_i32_0 = arith.constant 0 : i32
    %c0_i32_1 = arith.constant 0 : i32
    return %c0_i32, %c0_i32_0 : i32, i32
  }
  func.func @transform_12(%arg0: i32) -> (i32, i32) {
    %c0_i32 = arith.constant 0 : i32
    %c0_i32_0 = arith.constant 0 : i32
    %c0_i32_1 = arith.constant 0 : i32
    return %c0_i32, %c0_i32_0 : i32, i32
  }
  func.func @transform_13(%arg0: i32) -> (i32, i32) {
    %c0_i32 = arith.constant 0 : i32
    %c0_i32_0 = arith.constant 0 : i32
    %c0_i32_1 = arith.constant 0 : i32
    return %c0_i32, %c0_i32_0 : i32, i32
  }
  func.func @transform_14(%arg0: i32) -> (i32, i32, i32) {
    %c0_i32 = arith.constant 0 : i32
    %c0_i32_0 = arith.constant 0 : i32
    %c0_i32_1 = arith.constant 0 : i32
    return %arg0, %c0_i32, %c0_i32_0 : i32, i32, i32
  }
}

</mosaic_0001>

<llo_original>
// kernel: tpu_custom_call.1
$region0: #{tpu_custom_call.1}
  #allocation0 [shape = 'u32[]', space=smem, size = 0x4, offset = 0x4, fixed_abs, tag = 'smem constant byte address 0x4 - core index']
  #allocation1 [shape = 'u32[144,128]{1,0:T(1,128)}', space=vmem, size = 0x12000, scoped, tag = 'internal scratch']
  %s0 = inlined_call_operand.vmem [shape: f32[2,8,128], index: 0, kind: input, shape index: {}]
  %s1 = inlined_call_operand.hbm [shape: f32[8,128], index: 1, kind: input, shape index: {}]
  %s2 = inlined_call_operand.vmem [shape: f32[2,1,8], index: 2, kind: input, shape index: {}]
  %s3 = inlined_call_operand.hbm [shape: f32[20,512], index: 3, kind: input, shape index: {}]
  %s4 = inlined_call_operand.hbm [shape: bf16[128,384], index: 4, kind: input, shape index: {}]
  %s5 = inlined_call_operand.vmem [shape: bf16[128,128], index: 5, kind: input, shape index: {}]
  %s6 = inlined_call_operand.hbm [shape: bf16[128,512], index: 6, kind: input, shape index: {}]
  %s7 = inlined_call_operand.hbm [shape: bf16[512,128], index: 7, kind: input, shape index: {}]
  %s8 = inlined_call_operand.hbm [shape: bf16[128,384], index: 8, kind: input, shape index: {}]
  %s9 = inlined_call_operand.hbm [shape: bf16[128,128], index: 9, kind: input, shape index: {}]
  %s10 = inlined_call_operand.hbm [shape: bf16[128,512], index: 10, kind: input, shape index: {}]
  %s11 = inlined_call_operand.hbm [shape: bf16[512,128], index: 11, kind: input, shape index: {}]
  %s12 = inlined_call_operand.hbm [shape: bf16[128,128], index: 12, kind: input, shape index: {}]
  %s13 = inlined_call_operand.vmem [shape: bf16[128,4], index: 13, kind: input, shape index: {}]
  %s14 = inlined_call_operand.hbm [shape: f32[2,1,4], index: 14, kind: output, shape index: {}]
  %s15 = sld [smem:[#allocation0]]
  $region129: #{tpu_custom_call.1} parent=0
    _
  %s17 = ssub.s32 1, %s15
  %s18 = scalar_select 0, %s17, %s15
  $region1: #{tpu_custom_call.1} parent=0
    #allocation2 [shape = 'u8[4096]{0}', space=vmem, size = 0x1000, scoped, tag = 'input window, operand 1, single buffered']
    #allocation3 [shape = 's32[2]{0}', space=sflag, size = 0x8, scoped, tag = 'scoped memory for tpu_custom_call.1']
    #allocation4 [shape = 's32[2]{0}', space=sflag, size = 0x8, scoped, tag = 'scoped memory for tpu_custom_call.1']
    #allocation5 [shape = 'u8[49152]{0}', space=vmem, size = 0xc000, scoped, tag = 'input window, operand 3, single buffered']
    #allocation6 [shape = 's32[1]{0}', space=sflag, size = 0x4, scoped, tag = 'scoped memory for tpu_custom_call.1']
    #allocation7 [shape = 'u8[98304]{0}', space=vmem, size = 0x18000, scoped, tag = 'input window, operand 4, single buffered']
    #allocation8 [shape = 'u8[131072]{0}', space=vmem, size = 0x20000, scoped, tag = 'input window, operand 6, single buffered']
    #allocation9 [shape = 's32[1]{0}', space=sflag, size = 0x4, scoped, tag = 'scoped memory for tpu_custom_call.1']
    #allocation10 [shape = 'u8[131072]{0}', space=vmem, size = 0x20000, scoped, tag = 'input window, operand 7, single buffered']
    #allocation11 [shape = 'u8[98304]{0}', space=vmem, size = 0x18000, scoped, tag = 'input window, operand 8, single buffered']
    #allocation12 [shape = 's32[1]{0}', space=sflag, size = 0x4, scoped, tag = 'scoped memory for tpu_custom_call.1']
    #allocation13 [shape = 'u8[32768]{0}', space=vmem, size = 0x8000, scoped, tag = 'input window, operand 9, single buffered']
    #allocation14 [shape = 'u8[131072]{0}', space=vmem, size = 0x20000, scoped, tag = 'input window, operand 10, single buffered']
    #allocation15 [shape = 's32[1]{0}', space=sflag, size = 0x4, scoped, tag = 'scoped memory for tpu_custom_call.1']
    #allocation16 [shape = 'u8[131072]{0}', space=vmem, size = 0x20000, scoped, tag = 'input window, operand 11, single buffered']
    #allocation17 [shape = 'u8[32768]{0}', space=vmem, size = 0x8000, scoped, tag = 'input window, operand 12, single buffered']
    #allocation18 [shape = 's32[1]{0}', space=sflag, size = 0x4, scoped, tag = 'scoped memory for tpu_custom_call.1']
    #allocation19 [shape = 'u8[1024]{0}', space=vmem, size = 0x400, scoped, tag = 'output window, operand 0']
    %19 = vsyncpa [#allocation3], 0
    %20 = vsyncpa [#allocation6], 0
    %21 = vsyncpa [#allocation9], 0
    %22 = vsyncpa [#allocation12], 0
    %23 = vsyncpa [#allocation15], 0
    %24 = vsyncpa [#allocation18], 0
    %25 = vsyncpa [#allocation4], 0
    %s26 = scalar_lea.sflag [#allocation4], 1
    %27 = vsyncpa %s26, 0
    loop: start=0, step=1, limit=4
    $region2: #{tpu_custom_call.1} parent=1 // loop_pre_header
      _
    $region3: #{tpu_custom_call.1} parent=1 // loop_header
      %s29 = sphi 0, %s33
      %p30 = scmp.ge.s32.totalorder %s29, 4
      %s39 = sphi 0, %s41
      %s42 = sphi 0, %s39
      %s43 = sphi 0, %s42
      %s59 = sphi 0, %s43
      %s63 = sphi 0, %s63
      %s65 = sphi 0, %s63
      %s66 = sphi 0, %s65
      %s80 = sphi 0, %s66
      %s86 = sphi 0, %s88
      %s89 = sphi 0, %s86
      %s90 = sphi 0, %s89
      %s106 = sphi 0, %s90
      %s110 = sphi 0, %s110
      %s112 = sphi 0, %s110
      %s113 = sphi 0, %s112
      %s127 = sphi 0, %s113
      %s131 = sphi 0, %s131
      %s133 = sphi 0, %s131
      %s134 = sphi 0, %s133
      %s148 = sphi 0, %s134
      %s152 = sphi 0, %s152
      %s154 = sphi 0, %s152
      %s155 = sphi 0, %s154
      %s169 = sphi 0, %s155
      %s173 = sphi 0, %s173
      %s175 = sphi 0, %s173
      %s176 = sphi 0, %s175
      %s190 = sphi 0, %s176
      %s194 = sphi 0, %s194
      %s196 = sphi 0, %s194
      %s197 = sphi 0, %s196
      %s211 = sphi 0, %s197
      %s215 = sphi 0, %s215
      %s217 = sphi 0, %s215
      %s218 = sphi 0, %s217
      %s232 = sphi 0, %s218
      %s236 = sphi 0, %s236
      %s238 = sphi 0, %s236
      %s239 = sphi 0, %s238
      %s253 = sphi 0, %s239
      %s257 = sphi 0, %s257
      %s259 = sphi 0, %s257
      %s260 = sphi 0, %s259
      %s274 = sphi 0, %s260
      %s278 = sphi 0, %s278
      %s280 = sphi 0, %s278
      %s281 = sphi 0, %s280
      %s295 = sphi 0, %s281
      %s299 = sphi 0, %s299
      %s301 = sphi 0, %s299
      %s302 = sphi 0, %s301
      %s316 = sphi 0, %s302
      %s320 = sphi 0, %s320
      %s322 = sphi 0, %s320
      %s323 = sphi 0, %s322
      %s337 = sphi 0, %s323
      %s343 = sphi 0, %s345
      %s346 = sphi 0, %s343
      %s347 = sphi 0, %s346
      %s363 = sphi 0, %s347
    $region4: #{tpu_custom_call.1} parent=1 // loop_header_branch
      %32 = sbr.rel (%p30) target = $region8
    $region5: #{tpu_custom_call.1} parent=1 // loop_body
      %s34 = ssub.s32 %s29, 1
      %s35 = ssub.s32 %s29, 2
      %s36 = sadd.s32 %s29, 1
      %s37 = ssub.s32 %s29, %s36
      %p38 = scmp.eq.s32.totalorder %s37, 0
      %s40 = sadd.s32 %s39, 1
      %s41 = scalar_select %p38, %s39, %s40
      %p44 = pneg %p38
      %p45 = scmp.eq.s32.totalorder %s29, 1
      %p46 = por %p44, %p45
      %p47 = scmp.ne.s32.totalorder %s39, %s42
      %p48 = scmp.eq.s32.totalorder %s29, 0
      %p49 = por %p47, %p48
      %p50 = scmp.ne.s32.totalorder %s39, %s42
      %p51 = scmp.eq.s32.totalorder %s34, 1
      %p52 = por %p50, %p51
      %p53 = scmp.ne.s32.totalorder %s42, %s43
      %p54 = scmp.eq.s32.totalorder %s34, 0
      %p55 = por %p53, %p54
      %p56 = scmp.ne.s32.totalorder %s42, %s43
      %p57 = scmp.eq.s32.totalorder %s35, 1
      %p58 = por %p56, %p57
      %p60 = scmp.ne.s32.totalorder %s43, %s59
      %p61 = scmp.eq.s32.totalorder %s35, 0
      %p62 = por %p60, %p61
      %s64 = sadd.s32 %s63, 1
      %p67 = scmp.eq.s32.totalorder %s29, 1
      %p68 = scmp.ne.s32.totalorder %s63, %s65
      %p69 = scmp.eq.s32.totalorder %s29, 0
      %p70 = por %p68, %p69
      %p71 = scmp.ne.s32.totalorder %s63, %s65
      %p72 = scmp.eq.s32.totalorder %s34, 1
      %p73 = por %p71, %p72
      %p74 = scmp.ne.s32.totalorder %s65, %s66
      %p75 = scmp.eq.s32.totalorder %s34, 0
      %p76 = por %p74, %p75
      %p77 = scmp.ne.s32.totalorder %s65, %s66
      %p78 = scmp.eq.s32.totalorder %s35, 1
      %p79 = por %p77, %p78
      %p81 = scmp.ne.s32.totalorder %s66, %s80
      %p82 = scmp.eq.s32.totalorder %s35, 0
      %p83 = por %p81, %p82
      %s84 = ssub.s32 %s29, %s36
      %p85 = scmp.eq.s32.totalorder %s84, 0
      %s87 = sadd.s32 %s86, 1
      %s88 = scalar_select %p85, %s86, %s87
      %p91 = pneg %p85
      %p92 = scmp.eq.s32.totalorder %s29, 1
      %p93 = por %p91, %p92
      %p94 = scmp.ne.s32.totalorder %s86, %s89
      %p95 = scmp.eq.s32.totalorder %s29, 0
      %p96 = por %p94, %p95
      %p97 = scmp.ne.s32.totalorder %s86, %s89
      %p98 = scmp.eq.s32.totalorder %s34, 1
      %p99 = por %p97, %p98
      %p100 = scmp.ne.s32.totalorder %s89, %s90
      %p101 = scmp.eq.s32.totalorder %s34, 0
      %p102 = por %p100, %p101
      %p103 = scmp.ne.s32.totalorder %s89, %s90
      %p104 = scmp.eq.s32.totalorder %s35, 1
      %p105 = por %p103, %p104
      %p107 = scmp.ne.s32.totalorder %s90, %s106
      %p108 = scmp.eq.s32.totalorder %s35, 0
      %p109 = por %p107, %p108
      %s111 = sadd.s32 %s110, 1
      %p114 = scmp.eq.s32.totalorder %s29, 1
      %p115 = scmp.ne.s32.totalorder %s110, %s112
      %p116 = scmp.eq.s32.totalorder %s29, 0
      %p117 = por %p115, %p116
      %p118 = scmp.ne.s32.totalorder %s110, %s112
      %p119 = scmp.eq.s32.totalorder %s34, 1
      %p120 = por %p118, %p119
      %p121 = scmp.ne.s32.totalorder %s112, %s113
      %p122 = scmp.eq.s32.totalorder %s34, 0
      %p123 = por %p121, %p122
      %p124 = scmp.ne.s32.totalorder %s112, %s113
      %p125 = scmp.eq.s32.totalorder %s35, 1
      %p126 = por %p124, %p125
      %p128 = scmp.ne.s32.totalorder %s113, %s127
      %p129 = scmp.eq.s32.totalorder %s35, 0
      %p130 = por %p128, %p129
      %s132 = sadd.s32 %s131, 1
      %p135 = scmp.eq.s32.totalorder %s29, 1
      %p136 = scmp.ne.s32.totalorder %s131, %s133
      %p137 = scmp.eq.s32.totalorder %s29, 0
      %p138 = por %p136, %p137
      %p139 = scmp.ne.s32.totalorder %s131, %s133
      %p140 = scmp.eq.s32.totalorder %s34, 1
      %p141 = por %p139, %p140
      %p142 = scmp.ne.s32.totalorder %s133, %s134
      %p143 = scmp.eq.s32.totalorder %s34, 0
      %p144 = por %p142, %p143
      %p145 = scmp.ne.s32.totalorder %s133, %s134
      %p146 = scmp.eq.s32.totalorder %s35, 1
      %p147 = por %p145, %p146
      %p149 = scmp.ne.s32.totalorder %s134, %s148
      %p150 = scmp.eq.s32.totalorder %s35, 0
      %p151 = por %p149, %p150
      %s153 = sadd.s32 %s152, 1
      %p156 = scmp.eq.s32.totalorder %s29, 1
      %p157 = scmp.ne.s32.totalorder %s152, %s154
      %p158 = scmp.eq.s32.totalorder %s29, 0
      %p159 = por %p157, %p158
      %p160 = scmp.ne.s32.totalorder %s152, %s154
      %p161 = scmp.eq.s32.totalorder %s34, 1
      %p162 = por %p160, %p161
      %p163 = scmp.ne.s32.totalorder %s154, %s155
      %p164 = scmp.eq.s32.totalorder %s34, 0
      %p165 = por %p163, %p164
      %p166 = scmp.ne.s32.totalorder %s154, %s155
      %p167 = scmp.eq.s32.totalorder %s35, 1
      %p168 = por %p166, %p167
      %p170 = scmp.ne.s32.totalorder %s155, %s169
      %p171 = scmp.eq.s32.totalorder %s35, 0
      %p172 = por %p170, %p171
      %s174 = sadd.s32 %s173, 1
      %p177 = scmp.eq.s32.totalorder %s29, 1
      %p178 = scmp.ne.s32.totalorder %s173, %s175
      %p179 = scmp.eq.s32.totalorder %s29, 0
      %p180 = por %p178, %p179
      %p181 = scmp.ne.s32.totalorder %s173, %s175
      %p182 = scmp.eq.s32.totalorder %s34, 1
      %p183 = por %p181, %p182
      %p184 = scmp.ne.s32.totalorder %s175, %s176
      %p185 = scmp.eq.s32.totalorder %s34, 0
      %p186 = por %p184, %p185
      %p187 = scmp.ne.s32.totalorder %s175, %s176
      %p188 = scmp.eq.s32.totalorder %s35, 1
      %p189 = por %p187, %p188
      %p191 = scmp.ne.s32.totalorder %s176, %s190
      %p192 = scmp.eq.s32.totalorder %s35, 0
      %p193 = por %p191, %p192
      %s195 = sadd.s32 %s194, 1
      %p198 = scmp.eq.s32.totalorder %s29, 1
      %p199 = scmp.ne.s32.totalorder %s194, %s196
      %p200 = scmp.eq.s32.totalorder %s29, 0
      %p201 = por %p199, %p200
      %p202 = scmp.ne.s32.totalorder %s194, %s196
      %p203 = scmp.eq.s32.totalorder %s34, 1
      %p204 = por %p202, %p203
      %p205 = scmp.ne.s32.totalorder %s196, %s197
      %p206 = scmp.eq.s32.totalorder %s34, 0
      %p207 = por %p205, %p206
      %p208 = scmp.ne.s32.totalorder %s196, %s197
      %p209 = scmp.eq.s32.totalorder %s35, 1
      %p210 = por %p208, %p209
      %p212 = scmp.ne.s32.totalorder %s197, %s211
      %p213 = scmp.eq.s32.totalorder %s35, 0
      %p214 = por %p212, %p213
      %s216 = sadd.s32 %s215, 1
      %p219 = scmp.eq.s32.totalorder %s29, 1
      %p220 = scmp.ne.s32.totalorder %s215, %s217
      %p221 = scmp.eq.s32.totalorder %s29, 0
      %p222 = por %p220, %p221
      %p223 = scmp.ne.s32.totalorder %s215, %s217
      %p224 = scmp.eq.s32.totalorder %s34, 1
      %p225 = por %p223, %p224
      %p226 = scmp.ne.s32.totalorder %s217, %s218
      %p227 = scmp.eq.s32.totalorder %s34, 0
      %p228 = por %p226, %p227
      %p229 = scmp.ne.s32.totalorder %s217, %s218
      %p230 = scmp.eq.s32.totalorder %s35, 1
      %p231 = por %p229, %p230
      %p233 = scmp.ne.s32.totalorder %s218, %s232
      %p234 = scmp.eq.s32.totalorder %s35, 0
      %p235 = por %p233, %p234
      %s237 = sadd.s32 %s236, 1
      %p240 = scmp.eq.s32.totalorder %s29, 1
      %p241 = scmp.ne.s32.totalorder %s236, %s238
      %p242 = scmp.eq.s32.totalorder %s29, 0
      %p243 = por %p241, %p242
      %p244 = scmp.ne.s32.totalorder %s236, %s238
      %p245 = scmp.eq.s32.totalorder %s34, 1
      %p246 = por %p244, %p245
      %p247 = scmp.ne.s32.totalorder %s238, %s239
      %p248 = scmp.eq.s32.totalorder %s34, 0
      %p249 = por %p247, %p248
      %p250 = scmp.ne.s32.totalorder %s238, %s239
      %p251 = scmp.eq.s32.totalorder %s35, 1
      %p252 = por %p250, %p251
      %p254 = scmp.ne.s32.totalorder %s239, %s253
      %p255 = scmp.eq.s32.totalorder %s35, 0
      %p256 = por %p254, %p255
      %s258 = sadd.s32 %s257, 1
      %p261 = scmp.eq.s32.totalorder %s29, 1
      %p262 = scmp.ne.s32.totalorder %s257, %s259
      %p263 = scmp.eq.s32.totalorder %s29, 0
      %p264 = por %p262, %p263
      %p265 = scmp.ne.s32.totalorder %s257, %s259
      %p266 = scmp.eq.s32.totalorder %s34, 1
      %p267 = por %p265, %p266
      %p268 = scmp.ne.s32.totalorder %s259, %s260
      %p269 = scmp.eq.s32.totalorder %s34, 0
      %p270 = por %p268, %p269
      %p271 = scmp.ne.s32.totalorder %s259, %s260
      %p272 = scmp.eq.s32.totalorder %s35, 1
      %p273 = por %p271, %p272
      %p275 = scmp.ne.s32.totalorder %s260, %s274
      %p276 = scmp.eq.s32.totalorder %s35, 0
      %p277 = por %p275, %p276
      %s279 = sadd.s32 %s278, 1
      %p282 = scmp.eq.s32.totalorder %s29, 1
      %p283 = scmp.ne.s32.totalorder %s278, %s280
      %p284 = scmp.eq.s32.totalorder %s29, 0
      %p285 = por %p283, %p284
      %p286 = scmp.ne.s32.totalorder %s278, %s280
      %p287 = scmp.eq.s32.totalorder %s34, 1
      %p288 = por %p286, %p287
      %p289 = scmp.ne.s32.totalorder %s280, %s281
      %p290 = scmp.eq.s32.totalorder %s34, 0
      %p291 = por %p289, %p290
      %p292 = scmp.ne.s32.totalorder %s280, %s281
      %p293 = scmp.eq.s32.totalorder %s35, 1
      %p294 = por %p292, %p293
      %p296 = scmp.ne.s32.totalorder %s281, %s295
      %p297 = scmp.eq.s32.totalorder %s35, 0
      %p298 = por %p296, %p297
      %s300 = sadd.s32 %s299, 1
      %p303 = scmp.eq.s32.totalorder %s29, 1
      %p304 = scmp.ne.s32.totalorder %s299, %s301
      %p305 = scmp.eq.s32.totalorder %s29, 0
      %p306 = por %p304, %p305
      %p307 = scmp.ne.s32.totalorder %s299, %s301
      %p308 = scmp.eq.s32.totalorder %s34, 1
      %p309 = por %p307, %p308
      %p310 = scmp.ne.s32.totalorder %s301, %s302
      %p311 = scmp.eq.s32.totalorder %s34, 0
      %p312 = por %p310, %p311
      %p313 = scmp.ne.s32.totalorder %s301, %s302
      %p314 = scmp.eq.s32.totalorder %s35, 1
      %p315 = por %p313, %p314
      %p317 = scmp.ne.s32.totalorder %s302, %s316
      %p318 = scmp.eq.s32.totalorder %s35, 0
      %p319 = por %p317, %p318
      %s321 = sadd.s32 %s320, 1
      %p324 = scmp.eq.s32.totalorder %s29, 1
      %p325 = scmp.ne.s32.totalorder %s320, %s322
      %p326 = scmp.eq.s32.totalorder %s29, 0
      %p327 = por %p325, %p326
      %p328 = scmp.ne.s32.totalorder %s320, %s322
      %p329 = scmp.eq.s32.totalorder %s34, 1
      %p330 = por %p328, %p329
      %p331 = scmp.ne.s32.totalorder %s322, %s323
      %p332 = scmp.eq.s32.totalorder %s34, 0
      %p333 = por %p331, %p332
      %p334 = scmp.ne.s32.totalorder %s322, %s323
      %p335 = scmp.eq.s32.totalorder %s35, 1
      %p336 = por %p334, %p335
      %p338 = scmp.ne.s32.totalorder %s323, %s337
      %p339 = scmp.eq.s32.totalorder %s35, 0
      %p340 = por %p338, %p339
      %s341 = ssub.s32 %s29, %s36
      %p342 = scmp.eq.s32.totalorder %s341, 0
      %s344 = sadd.s32 %s343, 1
      %s345 = scalar_select %p342, %s343, %s344
      %p348 = pneg %p342
      %p349 = scmp.eq.s32.totalorder %s29, 1
      %p350 = por %p348, %p349
      %p351 = scmp.ne.s32.totalorder %s343, %s346
      %p352 = scmp.eq.s32.totalorder %s29, 0
      %p353 = por %p351, %p352
      %p354 = scmp.ne.s32.totalorder %s343, %s346
      %p355 = scmp.eq.s32.totalorder %s34, 1
      %p356 = por %p354, %p355
      %p357 = scmp.ne.s32.totalorder %s346, %s347
      %p358 = scmp.eq.s32.totalorder %s34, 0
      %p359 = por %p357, %p358
      %p360 = scmp.ne.s32.totalorder %s346, %s347
      %p361 = scmp.eq.s32.totalorder %s35, 1
      %p362 = por %p360, %p361
      %p364 = scmp.ne.s32.totalorder %s347, %s363
      %p365 = scmp.eq.s32.totalorder %s35, 0
      %p366 = por %p364, %p365
      %p367 = scmp.le.s32.totalorder 1, %s29
      %p368 = scmp.lt.s32.totalorder %s29, 3
      %p369 = pnand %p367, %p368
      %p370 = pneg %p369
      // Predicated region
      $region9: #{tpu_custom_call.1} parent=5 // pred_check
        _
      $region10: #{tpu_custom_call.1} parent=5 // pred_check_branch
        %372 = sbr.rel (%p369) target = $region12
      $region11: #{tpu_custom_call.1} parent=5 // pred_region
        %s373 = ssub.s32 %s29, 1
        // Predicated region
        $region13: #{tpu_custom_call.1} parent=11 // pred_check
          %p374 = pneg %p76
        $region14: #{tpu_custom_call.1} parent=11 // pred_check_branch
          %376 = sbr.rel (%p374) target = $region16
        $region15: #{tpu_custom_call.1} parent=11 // pred_region
          %s378 = ssub.s32 128, 128
          %379 = vsyncadd [#allocation3], %s378
          %s381 = sshll.u32 [#allocation2], 4
          %s382 = int_to_ptr.vmem [resolvable:$true] %s381
          %384 = dma.hbm_to_vmem [thread:$0]  %s1, 128, %s382, [#allocation3]
        $region16: #{tpu_custom_call.1} parent=11 // pred_fallthru
          _
        // Predicated region
        $region17: #{tpu_custom_call.1} parent=11 // pred_check
          %p385 = pneg %p123
        $region18: #{tpu_custom_call.1} parent=11 // pred_check_branch
          %387 = sbr.rel (%p385) target = $region20
        $region19: #{tpu_custom_call.1} parent=11 // pred_region
          %s389 = ssub.s32 1536, 1536
          %390 = vsyncadd [#allocation6], %s389
          %s391 = sshll.u32 [#allocation5], 4
          %s392 = int_to_ptr.vmem [resolvable:$true] %s391
          %397 = dma.hbm_to_vmem [thread:$0]  %s3, 1536, %s392, [#allocation6], 512, 512, 32
        $region20: #{tpu_custom_call.1} parent=11 // pred_fallthru
          _
        // Predicated region
        $region21: #{tpu_custom_call.1} parent=11 // pred_check
          %p398 = pneg %p144
        $region22: #{tpu_custom_call.1} parent=11 // pred_check_branch
          %400 = sbr.rel (%p398) target = $region24
        $region23: #{tpu_custom_call.1} parent=11 // pred_region
          %s402 = ssub.s32 3072, 3072
          %403 = vsyncadd [#allocation6], %s402
          %s404 = sshll.u32 [#allocation7], 4
          %s405 = int_to_ptr.vmem [resolvable:$true] %s404
          %410 = dma.hbm_to_vmem [thread:$0]  %s4, 3072, %s405, [#allocation6], 192, 192, 12
        $region24: #{tpu_custom_call.1} parent=11 // pred_fallthru
          _
        // Predicated region
        $region25: #{tpu_custom_call.1} parent=11 // pred_check
          %p411 = pneg %p165
        $region26: #{tpu_custom_call.1} parent=11 // pred_check_branch
          %413 = sbr.rel (%p411) target = $region28
        $region27: #{tpu_custom_call.1} parent=11 // pred_region
          _
        $region28: #{tpu_custom_call.1} parent=11 // pred_fallthru
          _
        // Predicated region
        $region29: #{tpu_custom_call.1} parent=11 // pred_check
          %p414 = pneg %p186
        $region30: #{tpu_custom_call.1} parent=11 // pred_check_branch
          %416 = sbr.rel (%p414) target = $region32
        $region31: #{tpu_custom_call.1} parent=11 // pred_region
          %s418 = ssub.s32 4096, 4096
          %419 = vsyncadd [#allocation9], %s418
          %s420 = sshll.u32 [#allocation8], 4
          %s421 = int_to_ptr.vmem [resolvable:$true] %s420
          %426 = dma.hbm_to_vmem [thread:$0]  %s6, 4096, %s421, [#allocation9], 256, 256, 16
        $region32: #{tpu_custom_call.1} parent=11 // pred_fallthru
          _
        // Predicated region
        $region33: #{tpu_custom_call.1} parent=11 // pred_check
          %p427 = pneg %p207
        $region34: #{tpu_custom_call.1} parent=11 // pred_check_branch
          %429 = sbr.rel (%p427) target = $region36
        $region35: #{tpu_custom_call.1} parent=11 // pred_region
          %s431 = ssub.s32 4096, 4096
          %432 = vsyncadd [#allocation9], %s431
          %s433 = sshll.u32 [#allocation10], 4
          %s434 = int_to_ptr.vmem [resolvable:$true] %s433
          %439 = dma.hbm_to_vmem [thread:$0]  %s7, 4096, %s434, [#allocation9], 64, 64, 4
        $region36: #{tpu_custom_call.1} parent=11 // pred_fallthru
          _
        // Predicated region
        $region37: #{tpu_custom_call.1} parent=11 // pred_check
          %p440 = pneg %p228
        $region38: #{tpu_custom_call.1} parent=11 // pred_check_branch
          %442 = sbr.rel (%p440) target = $region40
        $region39: #{tpu_custom_call.1} parent=11 // pred_region
          %s444 = ssub.s32 3072, 3072
          %445 = vsyncadd [#allocation12], %s444
          %s446 = sshll.u32 [#allocation11], 4
          %s447 = int_to_ptr.vmem [resolvable:$true] %s446
          %452 = dma.hbm_to_vmem [thread:$0]  %s8, 3072, %s447, [#allocation12], 192, 192, 12
        $region40: #{tpu_custom_call.1} parent=11 // pred_fallthru
          _
        // Predicated region
        $region41: #{tpu_custom_call.1} parent=11 // pred_check
          %p453 = pneg %p249
        $region42: #{tpu_custom_call.1} parent=11 // pred_check_branch
          %455 = sbr.rel (%p453) target = $region44
        $region43: #{tpu_custom_call.1} parent=11 // pred_region
          %s457 = ssub.s32 1024, 1024
          %458 = vsyncadd [#allocation12], %s457
          %s459 = sshll.u32 [#allocation13], 4
          %s460 = int_to_ptr.vmem [resolvable:$true] %s459
          %465 = dma.hbm_to_vmem [thread:$0]  %s9, 1024, %s460, [#allocation12], 64, 64, 4
        $region44: #{tpu_custom_call.1} parent=11 // pred_fallthru
          _
        // Predicated region
        $region45: #{tpu_custom_call.1} parent=11 // pred_check
          %p466 = pneg %p270
        $region46: #{tpu_custom_call.1} parent=11 // pred_check_branch
          %468 = sbr.rel (%p466) target = $region48
        $region47: #{tpu_custom_call.1} parent=11 // pred_region
          %s470 = ssub.s32 4096, 4096
          %471 = vsyncadd [#allocation15], %s470
          %s472 = sshll.u32 [#allocation14], 4
          %s473 = int_to_ptr.vmem [resolvable:$true] %s472
          %478 = dma.hbm_to_vmem [thread:$0]  %s10, 4096, %s473, [#allocation15], 256, 256, 16
        $region48: #{tpu_custom_call.1} parent=11 // pred_fallthru
          _
        // Predicated region
        $region49: #{tpu_custom_call.1} parent=11 // pred_check
          %p479 = pneg %p291
        $region50: #{tpu_custom_call.1} parent=11 // pred_check_branch
          %481 = sbr.rel (%p479) target = $region52
        $region51: #{tpu_custom_call.1} parent=11 // pred_region
          %s483 = ssub.s32 4096, 4096
          %484 = vsyncadd [#allocation15], %s483
          %s485 = sshll.u32 [#allocation16], 4
          %s486 = int_to_ptr.vmem [resolvable:$true] %s485
          %491 = dma.hbm_to_vmem [thread:$0]  %s11, 4096, %s486, [#allocation15], 64, 64, 4
        $region52: #{tpu_custom_call.1} parent=11 // pred_fallthru
          _
        // Predicated region
        $region53: #{tpu_custom_call.1} parent=11 // pred_check
          %p492 = pneg %p312
        $region54: #{tpu_custom_call.1} parent=11 // pred_check_branch
          %494 = sbr.rel (%p492) target = $region56
        $region55: #{tpu_custom_call.1} parent=11 // pred_region
          %s496 = ssub.s32 1024, 1024
          %497 = vsyncadd [#allocation18], %s496
          %s498 = sshll.u32 [#allocation17], 4
          %s499 = int_to_ptr.vmem [resolvable:$true] %s498
          %504 = dma.hbm_to_vmem [thread:$0]  %s12, 1024, %s499, [#allocation18], 64, 64, 4
        $region56: #{tpu_custom_call.1} parent=11 // pred_fallthru
          _
        // Predicated region
        $region57: #{tpu_custom_call.1} parent=11 // pred_check
          %p505 = pneg %p333
        $region58: #{tpu_custom_call.1} parent=11 // pred_check_branch
          %507 = sbr.rel (%p505) target = $region60
        $region59: #{tpu_custom_call.1} parent=11 // pred_region
          _
        $region60: #{tpu_custom_call.1} parent=11 // pred_fallthru
          _
      $region12: #{tpu_custom_call.1} parent=5 // pred_fallthru
        _
      %p508 = scmp.lt.s32.totalorder %s29, 2
      // Predicated region
      $region61: #{tpu_custom_call.1} parent=5 // pred_check
        %p509 = pneg %p508
      $region62: #{tpu_custom_call.1} parent=5 // pred_check_branch
        %511 = sbr.rel (%p509) target = $region64
      $region63: #{tpu_custom_call.1} parent=5 // pred_region
        // Predicated region
        $region65: #{tpu_custom_call.1} parent=63 // pred_check
          %p512 = pneg %p49
        $region66: #{tpu_custom_call.1} parent=63 // pred_check_branch
          %514 = sbr.rel (%p512) target = $region68
        $region67: #{tpu_custom_call.1} parent=63 // pred_region
          %p515 = scmp.lt.s32.totalorder %s29, 1
          %s516 = scalar_select %p515, %s29, 1
          %s517 = smul.addr %s516, 8
          %s518 = scalar_lea.vmem %s0, %s517
        $region68: #{tpu_custom_call.1} parent=63 // pred_fallthru
          _
        // Predicated region
        $region69: #{tpu_custom_call.1} parent=63 // pred_check
          %p519 = pneg %p96
        $region70: #{tpu_custom_call.1} parent=63 // pred_check_branch
          %521 = sbr.rel (%p519) target = $region72
        $region71: #{tpu_custom_call.1} parent=63 // pred_region
          %p522 = scmp.lt.s32.totalorder %s29, 1
          %s523 = scalar_select %p522, %s29, 1
          %s524 = scalar_lea.vmem %s2, %s523
        $region72: #{tpu_custom_call.1} parent=63 // pred_fallthru
          _
      $region64: #{tpu_custom_call.1} parent=5 // pred_fallthru
        _
      %p525 = scmp.le.s32.totalorder 1, %s29
      %p526 = scmp.lt.s32.totalorder %s29, 3
      %p527 = pnand %p525, %p526
      %p528 = pneg %p527
      // Predicated region
      $region73: #{tpu_custom_call.1} parent=5 // pred_check
        _
      $region74: #{tpu_custom_call.1} parent=5 // pred_check_branch
        %530 = sbr.rel (%p527) target = $region76
      $region75: #{tpu_custom_call.1} parent=5 // pred_region
        %s531 = ssub.s32 %s29, 1
        // Predicated region
        $region77: #{tpu_custom_call.1} parent=75 // pred_check
          %p532 = pneg %p76
        $region78: #{tpu_custom_call.1} parent=75 // pred_check_branch
          %534 = sbr.rel (%p532) target = $region80
        $region79: #{tpu_custom_call.1} parent=75 // pred_region
          %535 = dma.done [#allocation3], 128
        $region80: #{tpu_custom_call.1} parent=75 // pred_fallthru
          _
        // Predicated region
        $region81: #{tpu_custom_call.1} parent=75 // pred_check
          %p536 = pneg %p123
        $region82: #{tpu_custom_call.1} parent=75 // pred_check_branch
          %538 = sbr.rel (%p536) target = $region84
        $region83: #{tpu_custom_call.1} parent=75 // pred_region
          %539 = dma.done [#allocation6], 1536
        $region84: #{tpu_custom_call.1} parent=75 // pred_fallthru
          _
        // Predicated region
        $region85: #{tpu_custom_call.1} parent=75 // pred_check
          %p540 = pneg %p144
        $region86: #{tpu_custom_call.1} parent=75 // pred_check_branch
          %542 = sbr.rel (%p540) target = $region88
        $region87: #{tpu_custom_call.1} parent=75 // pred_region
          %543 = dma.done [#allocation6], 3072
        $region88: #{tpu_custom_call.1} parent=75 // pred_fallthru
          _
        // Predicated region
        $region89: #{tpu_custom_call.1} parent=75 // pred_check
          %p544 = pneg %p186
        $region90: #{tpu_custom_call.1} parent=75 // pred_check_branch
          %546 = sbr.rel (%p544) target = $region92
        $region91: #{tpu_custom_call.1} parent=75 // pred_region
          %547 = dma.done [#allocation9], 4096
        $region92: #{tpu_custom_call.1} parent=75 // pred_fallthru
          _
        // Predicated region
        $region93: #{tpu_custom_call.1} parent=75 // pred_check
          %p548 = pneg %p207
        $region94: #{tpu_custom_call.1} parent=75 // pred_check_branch
          %550 = sbr.rel (%p548) target = $region96
        $region95: #{tpu_custom_call.1} parent=75 // pred_region
          %551 = dma.done [#allocation9], 4096
        $region96: #{tpu_custom_call.1} parent=75 // pred_fallthru
          _
        // Predicated region
        $region97: #{tpu_custom_call.1} parent=75 // pred_check
          %p552 = pneg %p228
        $region98: #{tpu_custom_call.1} parent=75 // pred_check_branch
          %554 = sbr.rel (%p552) target = $region100
        $region99: #{tpu_custom_call.1} parent=75 // pred_region
          %555 = dma.done [#allocation12], 3072
        $region100: #{tpu_custom_call.1} parent=75 // pred_fallthru
          _
        // Predicated region
        $region101: #{tpu_custom_call.1} parent=75 // pred_check
          %p556 = pneg %p249
        $region102: #{tpu_custom_call.1} parent=75 // pred_check_branch
          %558 = sbr.rel (%p556) target = $region104
        $region103: #{tpu_custom_call.1} parent=75 // pred_region
          %559 = dma.done [#allocation12], 1024
        $region104: #{tpu_custom_call.1} parent=75 // pred_fallthru
          _
        // Predicated region
        $region105: #{tpu_custom_call.1} parent=75 // pred_check
          %p560 = pneg %p270
        $region106: #{tpu_custom_call.1} parent=75 // pred_check_branch
          %562 = sbr.rel (%p560) target = $region108
        $region107: #{tpu_custom_call.1} parent=75 // pred_region
          %563 = dma.done [#allocation15], 4096
        $region108: #{tpu_custom_call.1} parent=75 // pred_fallthru
          _
        // Predicated region
        $region109: #{tpu_custom_call.1} parent=75 // pred_check
          %p564 = pneg %p291
        $region110: #{tpu_custom_call.1} parent=75 // pred_check_branch
          %566 = sbr.rel (%p564) target = $region112
        $region111: #{tpu_custom_call.1} parent=75 // pred_region
          %567 = dma.done [#allocation15], 4096
        $region112: #{tpu_custom_call.1} parent=75 // pred_fallthru
          _
        // Predicated region
        $region113: #{tpu_custom_call.1} parent=75 // pred_check
          %p568 = pneg %p312
        $region114: #{tpu_custom_call.1} parent=75 // pred_check_branch
          %570 = sbr.rel (%p568) target = $region116
        $region115: #{tpu_custom_call.1} parent=75 // pred_region
          %571 = dma.done [#allocation18], 1024
        $region116: #{tpu_custom_call.1} parent=75 // pred_fallthru
          _
        %p572 = scmp.lt.s32.totalorder %s34, 1
        %s573 = scalar_select %p572, %s34, 1
        %s574 = smul.addr %s573, 8
        %s575 = scalar_lea.vmem %s0, %s574
        %p576 = pneg %p55
        %p577 = pneg %p52
        %p578 = pneg %p76
        %p579 = pneg %p73
        %p580 = scmp.lt.s32.totalorder %s34, 1
        %s581 = scalar_select %p580, %s34, 1
        %s582 = scalar_lea.vmem %s2, %s581
        %p583 = pneg %p102
        %p584 = pneg %p99
        %p585 = pneg %p123
        %p586 = pneg %p120
        %p587 = pneg %p144
        %p588 = pneg %p141
        %p589 = pneg %p165
        %p590 = pneg %p162
        %p591 = pneg %p186
        %p592 = pneg %p183
        %p593 = pneg %p207
        %p594 = pneg %p204
        %p595 = pneg %p228
        %p596 = pneg %p225
        %p597 = pneg %p249
        %p598 = pneg %p246
        %p599 = pneg %p270
        %p600 = pneg %p267
        %p601 = pneg %p291
        %p602 = pneg %p288
        %p603 = pneg %p312
        %p604 = pneg %p309
        %p605 = pneg %p333
        %p606 = pneg %p330
        %p607 = pneg %p359
        %p608 = pneg %p356
        %s609 = sand.u32 %s346, 1
        %s610 = scalar_lea.sflag [#allocation4], %s609
        %s611 = sand.u32 %s346, 1
        %s612 = scalar_lea.vmem [#allocation19], %s611
        %p613 = scmp.lt.s32.totalorder %s34, 1
        %s614 = scalar_select %p613, %s34, 1
        %s615 = smul.addr %s614, 8
        %s616 = scalar_lea.vmem %s0, %s615
        %p617 = scmp.lt.s32.totalorder %s34, 1
        %s618 = scalar_select %p617, %s34, 1
        %s619 = scalar_lea.vmem %s2, %s618
        %v621 = vld [vmem:[%s619] sm:$0x1]
        %v622 = vld [vmem:[%s616] sm:$0xff]
        %v623 = vld [vmem:[#allocation2] sm:$0xff]
        %v624 = vadd.f32 %v622, %v623
        %v625 = vld [vmem:[#allocation5] ss:$0 sm:$0xff]
        %v626 = vld [vmem:[#allocation5 + $0x1] ss:$0 sm:$0xff]
        %627 = vadd.xlane.f32.xlu0 %v624
        %v628 = vpop.xlane.xlu0 %627
        %v629 = vrcp.pop 128.0
        %v630 = vmul.f32 %v628, %v629
        %v631 = vsub.f32 %v624, %v630
        %v632 = vmul.f32 %v631, %v631
        %633 = vadd.xlane.f32.xlu0 %v632
        %v634 = vpop.xlane.xlu0 %633
        %v635 = vmul.f32 %v634, %v629
        %v636 = vadd.f32 %v635, 1e-12
        %v637 = vrsqrt.pop %v636
        %v638 = vmul.f32 %v631, %v637
        %v639 = vmul.f32 %v638, %v625
        %v640 = vadd.f32 %v639, %v626
        %v641 = vpack.c.bf16 %v640, %v640
        %v642 = vld [vmem:[#allocation7] sm:$0xff]
        %v643 = vld [vmem:[#allocation7 + $0x8] sm:$0xf]
        %v644 = vld [vmem:[#allocation7 + $0xc] sm:$0xff]
        %v645 = vld [vmem:[#allocation7 + $0x14] sm:$0xf]
        %v646 = vld [vmem:[#allocation7 + $0x18] sm:$0xff]
        %v647 = vld [vmem:[#allocation7 + $0x20] sm:$0xf]
        %v648 = vld [vmem:[#allocation7 + $0x24] sm:$0xff]
        %v649 = vld [vmem:[#allocation7 + $0x2c] sm:$0xf]
        %v650 = vld [vmem:[#allocation7 + $0x30] sm:$0xff]
        %v651 = vld [vmem:[#allocation7 + $0x38] sm:$0xf]
        %v652 = vld [vmem:[#allocation7 + $0x3c] sm:$0xff]
        %v653 = vld [vmem:[#allocation7 + $0x44] sm:$0xf]
        %v654 = vld [vmem:[#allocation7 + $0x48] sm:$0xff]
        %v655 = vld [vmem:[#allocation7 + $0x50] sm:$0xf]
        %v656 = vld [vmem:[#allocation7 + $0x54] sm:$0xff]
        %v657 = vld [vmem:[#allocation7 + $0x5c] sm:$0xf]
        %v658 = vld [vmem:[#allocation7 + $0x60] sm:$0xff]
        %v659 = vld [vmem:[#allocation7 + $0x68] sm:$0xf]
        %v660 = vld [vmem:[#allocation7 + $0x6c] sm:$0xff]
        %v661 = vld [vmem:[#allocation7 + $0x74] sm:$0xf]
        %v662 = vld [vmem:[#allocation7 + $0x78] sm:$0xff]
        %v663 = vld [vmem:[#allocation7 + $0x80] sm:$0xf]
        %v664 = vld [vmem:[#allocation7 + $0x84] sm:$0xff]
        %v665 = vld [vmem:[#allocation7 + $0x8c] sm:$0xf]
        %v666 = vld [vmem:[#allocation7 + $0x90] sm:$0xff]
        %v667 = vld [vmem:[#allocation7 + $0x98] sm:$0xf]
        %v668 = vld [vmem:[#allocation7 + $0x9c] sm:$0xff]
        %v669 = vld [vmem:[#allocation7 + $0xa4] sm:$0xf]
        %v670 = vld [vmem:[#allocation7 + $0xa8] sm:$0xff]
        %v671 = vld [vmem:[#allocation7 + $0xb0] sm:$0xf]
        %v672 = vld [vmem:[#allocation7 + $0xb4] sm:$0xff]
        %v673 = vld [vmem:[#allocation7 + $0xbc] sm:$0xf]
        %s674 = scalar_lea.vmem [#allocation5], 2
        %v675 = vld [vmem:[%s674] ss:$8 sm:$0x7]
        %v677 = vlaneseq
        %v678 = vshrl.u32 %v677, 7
        %v679 = vsub.s32 0, %v678
        %v680 = vrot.slane %v675, %v679
        %v681 = vlaneseq
        %v682 = vshrl.u32 %v681, 7
        %v683 = vsub.s32 1, %v682
        %v684 = vrot.slane %v675, %v683
        %v685 = vlaneseq
        %v686 = vshrl.u32 %v685, 7
        %v687 = vsub.s32 2, %v686
        %v688 = vrot.slane %v675, %v687
        %v724 = vunpack.c.l.b16 %v642
        %v725 = vunpack.c.h.b16 %v642
        %v726 = vunpack.c.l.b16 %v643
        %v727 = vunpack.c.l.b16 %v644
        %v728 = vunpack.c.h.b16 %v644
        %v729 = vunpack.c.l.b16 %v645
        %v730 = vunpack.c.l.b16 %v646
        %v731 = vunpack.c.h.b16 %v646
        %v732 = vunpack.c.l.b16 %v647
        %v733 = vunpack.c.l.b16 %v648
        %v734 = vunpack.c.h.b16 %v648
        %v735 = vunpack.c.l.b16 %v649
        %v736 = vunpack.c.l.b16 %v650
        %v737 = vunpack.c.h.b16 %v650
        %v738 = vunpack.c.l.b16 %v651
        %v739 = vunpack.c.l.b16 %v652
        %v740 = vunpack.c.h.b16 %v652
        %v741 = vunpack.c.l.b16 %v653
        %v742 = vunpack.c.l.b16 %v654
        %v743 = vunpack.c.h.b16 %v654
        %v744 = vunpack.c.l.b16 %v655
        %v745 = vunpack.c.l.b16 %v656
        %v746 = vunpack.c.h.b16 %v656
        %v747 = vunpack.c.l.b16 %v657
        %v748 = vunpack.c.l.b16 %v658
        %v749 = vunpack.c.h.b16 %v658
        %v750 = vunpack.c.l.b16 %v659
        %v751 = vunpack.c.l.b16 %v660
        %v752 = vunpack.c.h.b16 %v660
        %v753 = vunpack.c.l.b16 %v661
        %v754 = vunpack.c.l.b16 %v662
        %v755 = vunpack.c.h.b16 %v662
        %v756 = vunpack.c.l.b16 %v663
        %v757 = vunpack.c.l.b16 %v664
        %v758 = vunpack.c.h.b16 %v664
        %v759 = vunpack.c.l.b16 %v665
        %v760 = vunpack.c.l.b16 %v666
        %v761 = vunpack.c.h.b16 %v666
        %v762 = vunpack.c.l.b16 %v667
        %v763 = vunpack.c.l.b16 %v668
        %v764 = vunpack.c.h.b16 %v668
        %v765 = vunpack.c.l.b16 %v669
        %v766 = vunpack.c.l.b16 %v670
        %v767 = vunpack.c.h.b16 %v670
        %v768 = vunpack.c.l.b16 %v671
        %v769 = vunpack.c.l.b16 %v672
        %v770 = vunpack.c.h.b16 %v672
        %v771 = vunpack.c.l.b16 %v673
        %v772 = vpack.c.b16 %v727, %v724
        %v773 = vpack.c.b16 %v728, %v725
        %v774 = vpack.c.b16 %v729, %v726
        %v775 = vpack.c.b16 %v733, %v730
        %v776 = vpack.c.b16 %v734, %v731
        %v777 = vpack.c.b16 %v735, %v732
        %v778 = vpack.c.b16 %v739, %v736
        %v779 = vpack.c.b16 %v740, %v737
        %v780 = vpack.c.b16 %v741, %v738
        %v781 = vpack.c.b16 %v745, %v742
        %v782 = vpack.c.b16 %v746, %v743
        %v783 = vpack.c.b16 %v747, %v744
        %v784 = vpack.c.b16 %v751, %v748
        %v785 = vpack.c.b16 %v752, %v749
        %v786 = vpack.c.b16 %v753, %v750
        %v787 = vpack.c.b16 %v757, %v754
        %v788 = vpack.c.b16 %v758, %v755
        %v789 = vpack.c.b16 %v759, %v756
        %v790 = vpack.c.b16 %v763, %v760
        %v791 = vpack.c.b16 %v764, %v761
        %v792 = vpack.c.b16 %v765, %v762
        %v793 = vpack.c.b16 %v769, %v766
        %v794 = vpack.c.b16 %v770, %v767
        %v795 = vpack.c.b16 %v771, %v768
        %820 = vmatprep.subr.bf16.mxu0 %v773
        %821 = vmatpush1.bf16.msra.mxu0 %v772
        %822 = vmatprep.subr.bf16.mxu0 %v776
        %823 = vmatpush1.bf16.msra.mxu0 %v775
        %824 = vmatprep.subr.bf16.mxu0 %v779
        %825 = vmatpush1.bf16.msra.mxu0 %v778
        %826 = vmatprep.subr.bf16.mxu0 %v782
        %827 = vmatpush1.bf16.msra.mxu0 %v781
        %828 = vmatprep.subr.bf16.mxu0 %v785
        %829 = vmatpush1.bf16.msra.mxu0 %v784
        %830 = vmatprep.subr.bf16.mxu0 %v788
        %831 = vmatpush1.bf16.msra.mxu0 %v787
        %832 = vmatprep.subr.bf16.mxu0 %v791
        %833 = vmatpush1.bf16.msra.mxu0 %v790
        %834 = vmatprep.subr.bf16.mxu0 %v794
        %835 = vmatpush1.bf16.msra.mxu0 %v793
        %836 = vmatprep.subr.bf16.mxu0 0
        %837 = vmatpush1.bf16.msra.mxu0 0
        %838 = vmatprep.subr.bf16.mxu0 0
        %839 = vmatpush1.bf16.msra.mxu0 0
        %840 = vmatprep.subr.bf16.mxu0 0
        %841 = vmatpush1.bf16.msra.mxu0 0
        %842 = vmatprep.subr.bf16.mxu0 0
        %843 = vmatpush1.bf16.msra.mxu0 0
        %844 = vmatprep.subr.bf16.mxu0 0
        %845 = vmatpush1.bf16.msra.mxu0 0
        %846 = vmatprep.subr.bf16.mxu0 0
        %847 = vmatpush1.bf16.msra.mxu0 0
        %848 = vmatprep.subr.bf16.mxu0 0
        %849 = vmatpush1.bf16.msra.mxu0 0
        %850 = vmatprep.subr.bf16.mxu0 0
        %851 = vmatpush1.bf16.msra.mxu0 0
        %852 = vmatprep.mubr.bf16.mxu0 0
        %853 = vmatmul.mubr.bf16.gmra.mrb[0].mxu0 %v641
        %v854 = vpop.f32.mrb[0].mxu0
        %v855 = vadd.f32 %v680, %v854
        %v856 = vpop.f32.mrb[0].mxu0
        %v857 = vadd.f32 %v684, %v856
        %v858 = vpop.f32.mrb[0].mxu0
        %v859 = vpop.f32.mrb[0].mxu0
        %860 = vdwg.mxu0
        %861 = vmatprep.subr.bf16.mxu0 0
        %862 = vmatpush1.bf16.msra.mxu0 %v774
        %863 = vmatprep.subr.bf16.mxu0 0
        %864 = vmatpush1.bf16.msra.mxu0 %v777
        %865 = vmatprep.subr.bf16.mxu0 0
        %866 = vmatpush1.bf16.msra.mxu0 %v780
        %867 = vmatprep.subr.bf16.mxu0 0
        %868 = vmatpush1.bf16.msra.mxu0 %v783
        %869 = vmatprep.subr.bf16.mxu0 0
        %870 = vmatpush1.bf16.msra.mxu0 %v786
        %871 = vmatprep.subr.bf16.mxu0 0
        %872 = vmatpush1.bf16.msra.mxu0 %v789
        %873 = vmatprep.subr.bf16.mxu0 0
        %874 = vmatpush1.bf16.msra.mxu0 %v792
        %875 = vmatprep.subr.bf16.mxu0 0
        %876 = vmatpush1.bf16.msra.mxu0 %v795
        %877 = vmatprep.subr.bf16.mxu0 0
        %878 = vmatpush1.bf16.msra.mxu0 0
        %879 = vmatprep.subr.bf16.mxu0 0
        %880 = vmatpush1.bf16.msra.mxu0 0
        %881 = vmatprep.subr.bf16.mxu0 0
        %882 = vmatpush1.bf16.msra.mxu0 0
        %883 = vmatprep.subr.bf16.mxu0 0
        %884 = vmatpush1.bf16.msra.mxu0 0
        %885 = vmatprep.subr.bf16.mxu0 0
        %886 = vmatpush1.bf16.msra.mxu0 0
        %887 = vmatprep.subr.bf16.mxu0 0
        %888 = vmatpush1.bf16.msra.mxu0 0
        %889 = vmatprep.subr.bf16.mxu0 0
        %890 = vmatpush1.bf16.msra.mxu0 0
        %891 = vmatprep.subr.bf16.mxu0 0
        %892 = vmatpush1.bf16.msra.mxu0 0
        %893 = vmatprep.mubr.bf16.mxu0 0
        %894 = vmatmul.mubr.bf16.gmra.mrb[0].mxu0 %v641
        %v895 = vpop.f32.mrb[0].mxu0
        %v896 = vadd.f32 %v688, %v895
        %v897 = vpop.f32.mrb[0].mxu0
        %v898 = vpop.f32.mrb[0].mxu0
        %v899 = vpop.f32.mrb[0].mxu0
        %900 = vdwg.mxu0
        %v901 = vpack.c.bf16 %v855, %v855
        %v902 = vpack.c.bf16 %v857, %v857
        %v903 = vpack.c.bf16 %v896, %v896
        %905 = vrot.lane.b32.xlu0 %v901, 64
        %v906 = vpop.permute.xlu0 %905
        %908 = vrot.lane.b32.xlu0 %v902, 64
        %v909 = vpop.permute.xlu0 %908
        %911 = vrot.lane.b32.xlu0 %v903, 64
        %v912 = vpop.permute.xlu0 %911
        %vm913 = vcmask 523264
        %v915 = vsel %vm913, %v901, 0
        %v918 = vsel %vm913, %v902, 0
        %920 = vmatprep.subr.bf16.mxu0 0
        %921 = vmatpush1.bf16.xpose.msra.mxu0 %v918
        %922 = vmatprep.subr.bf16.mxu0 0
        %923 = vmatpush1.bf16.xpose.msra.mxu0 0
        %924 = vmatprep.subr.bf16.mxu0 0
        %925 = vmatpush1.bf16.xpose.msra.mxu0 0
        %926 = vmatprep.subr.bf16.mxu0 0
        %927 = vmatpush1.bf16.xpose.msra.mxu0 0
        %928 = vmatprep.subr.bf16.mxu0 0
        %929 = vmatpush1.bf16.xpose.msra.mxu0 0
        %930 = vmatprep.subr.bf16.mxu0 0
        %931 = vmatpush1.bf16.xpose.msra.mxu0 0
        %932 = vmatprep.subr.bf16.mxu0 0
        %933 = vmatpush1.bf16.xpose.msra.mxu0 0
        %934 = vmatprep.subr.bf16.mxu0 0
        %935 = vmatpush1.bf16.xpose.msra.mxu0 0
        %936 = vmatprep.subr.bf16.mxu0 0
        %937 = vmatpush1.bf16.xpose.msra.mxu0 0
        %938 = vmatprep.subr.bf16.mxu0 0
        %939 = vmatpush1.bf16.xpose.msra.mxu0 0
        %940 = vmatprep.subr.bf16.mxu0 0
        %941 = vmatpush1.bf16.xpose.msra.mxu0 0
        %942 = vmatprep.subr.bf16.mxu0 0
        %943 = vmatpush1.bf16.xpose.msra.mxu0 0
        %944 = vmatprep.subr.bf16.mxu0 0
        %945 = vmatpush1.bf16.xpose.msra.mxu0 0
        %946 = vmatprep.subr.bf16.mxu0 0
        %947 = vmatpush1.bf16.xpose.msra.mxu0 0
        %948 = vmatprep.subr.bf16.mxu0 0
        %949 = vmatpush1.bf16.xpose.msra.mxu0 0
        %950 = vmatprep.subr.bf16.mxu0 0
        %951 = vmatpush1.bf16.xpose.msra.mxu0 0
        %952 = vmatprep.mubr.bf16.mxu0 0
        %953 = vmatmul.mubr.bf16.gmra.mrb[0].mxu0 %v915
        %v954 = vpop.f32.mrb[0].mxu0
        %v955 = vadd.f32 0.0, %v954
        %v956 = vpop.f32.mrb[0].mxu0
        %v957 = vpop.f32.mrb[0].mxu0
        %v958 = vpop.f32.mrb[0].mxu0
        %959 = vdwg.mxu0
        %v961 = vsel %vm913, %v906, 0
        %v964 = vsel %vm913, %v909, 0
        %966 = vmatprep.subr.bf16.mxu0 0
        %967 = vmatpush1.bf16.xpose.msra.mxu0 %v964
        %968 = vmatprep.subr.bf16.mxu0 0
        %969 = vmatpush1.bf16.xpose.msra.mxu0 0
        %970 = vmatprep.subr.bf16.mxu0 0
        %971 = vmatpush1.bf16.xpose.msra.mxu0 0
        %972 = vmatprep.subr.bf16.mxu0 0
        %973 = vmatpush1.bf16.xpose.msra.mxu0 0
        %974 = vmatprep.subr.bf16.mxu0 0
        %975 = vmatpush1.bf16.xpose.msra.mxu0 0
        %976 = vmatprep.subr.bf16.mxu0 0
        %977 = vmatpush1.bf16.xpose.msra.mxu0 0
        %978 = vmatprep.subr.bf16.mxu0 0
        %979 = vmatpush1.bf16.xpose.msra.mxu0 0
        %980 = vmatprep.subr.bf16.mxu0 0
        %981 = vmatpush1.bf16.xpose.msra.mxu0 0
        %982 = vmatprep.subr.bf16.mxu0 0
        %983 = vmatpush1.bf16.xpose.msra.mxu0 0
        %984 = vmatprep.subr.bf16.mxu0 0
        %985 = vmatpush1.bf16.xpose.msra.mxu0 0
        %986 = vmatprep.subr.bf16.mxu0 0
        %987 = vmatpush1.bf16.xpose.msra.mxu0 0
        %988 = vmatprep.subr.bf16.mxu0 0
        %989 = vmatpush1.bf16.xpose.msra.mxu0 0
        %990 = vmatprep.subr.bf16.mxu0 0
        %991 = vmatpush1.bf16.xpose.msra.mxu0 0
        %992 = vmatprep.subr.bf16.mxu0 0
        %993 = vmatpush1.bf16.xpose.msra.mxu0 0
        %994 = vmatprep.subr.bf16.mxu0 0
        %995 = vmatpush1.bf16.xpose.msra.mxu0 0
        %996 = vmatprep.subr.bf16.mxu0 0
        %997 = vmatpush1.bf16.xpose.msra.mxu0 0
        %998 = vmatprep.mubr.bf16.mxu0 0
        %999 = vmatmul.mubr.bf16.gmra.mrb[0].mxu0 %v961
        %v1000 = vpop.f32.mrb[0].mxu0
        %v1001 = vadd.f32 0.0, %v1000
        %v1002 = vpop.f32.mrb[0].mxu0
        %v1003 = vpop.f32.mrb[0].mxu0
        %v1004 = vpop.f32.mrb[0].mxu0
        %1005 = vdwg.mxu0
        %v1006 = vmul.f32 %v955, 0.125
        %v1007 = vmul.f32 %v1001, 0.125
        %v1009 = vlaneseq
        %v1010 = vshrl.u32 %v1009, 7
        %v1011 = vsub.s32 0, %v1010
        %v1012 = vrot.slane %v621, %v1011
        %v1014 = vadd.f32 %v1006, %v1012
        %v1015 = vadd.f32 %v1007, %v1012
        %vm1016 = vcmask 64512
        %v1017 = vsel %vm1016, %v1014, -inf
        %1018 = vmax.xlane.f32.xlu0 %v1017
        %v1019 = vpop.xlane.xlu0 %1018
        %v1020 = vsel %vm1016, %v1015, -inf
        %1021 = vmax.xlane.f32.xlu0 %v1020
        %v1022 = vpop.xlane.xlu0 %1021
        %v1023 = vsub.f32 %v1014, %v1019
        %v1024 = vsub.f32 %v1015, %v1022
        %v1025 = vmul.f32 %v1023, 1.442695
        %v1026 = vpow.pop %v1025
        %v1027 = vmul.f32 %v1024, 1.442695
        %v1028 = vpow.pop %v1027
        %v1029 = vsel %vm1016, %v1026, 0.0
        %1030 = vadd.xlane.f32.xlu0 %v1029
        %v1031 = vpop.xlane.xlu0 %1030
        %v1032 = vsel %vm1016, %v1028, 0.0
        %1033 = vadd.xlane.f32.xlu0 %v1032
        %v1034 = vpop.xlane.xlu0 %1033
        %v1035 = vrcp.pop %v1031
        %v1036 = vmul.f32 %v1026, %v1035
        %v1037 = vrcp.pop %v1034
        %v1038 = vmul.f32 %v1028, %v1037
        %v1039 = vpack.c.bf16 %v1036, %v1036
        %v1040 = vpack.c.bf16 %v1038, %v1038
        %v1042 = vsel %vm1016, %v1039, 0
        %vm1044 = vcmask 1043456
        %v1046 = vsel %vm1044, %v903, 0
        %1048 = vmatprep.subr.bf16.mxu0 0
        %1049 = vmatpush1.bf16.msra.mxu0 %v1046
        %1050 = vmatprep.subr.bf16.mxu0 0
        %1051 = vmatpush1.bf16.msra.mxu0 0
        %1052 = vmatprep.subr.bf16.mxu0 0
        %1053 = vmatpush1.bf16.msra.mxu0 0
        %1054 = vmatprep.subr.bf16.mxu0 0
        %1055 = vmatpush1.bf16.msra.mxu0 0
        %1056 = vmatprep.subr.bf16.mxu0 0
        %1057 = vmatpush1.bf16.msra.mxu0 0
        %1058 = vmatprep.subr.bf16.mxu0 0
        %1059 = vmatpush1.bf16.msra.mxu0 0
        %1060 = vmatprep.subr.bf16.mxu0 0
        %1061 = vmatpush1.bf16.msra.mxu0 0
        %1062 = vmatprep.subr.bf16.mxu0 0
        %1063 = vmatpush1.bf16.msra.mxu0 0
        %1064 = vmatprep.subr.bf16.mxu0 0
        %1065 = vmatpush1.bf16.msra.mxu0 0
        %1066 = vmatprep.subr.bf16.mxu0 0
        %1067 = vmatpush1.bf16.msra.mxu0 0
        %1068 = vmatprep.subr.bf16.mxu0 0
        %1069 = vmatpush1.bf16.msra.mxu0 0
        %1070 = vmatprep.subr.bf16.mxu0 0
        %1071 = vmatpush1.bf16.msra.mxu0 0
        %1072 = vmatprep.subr.bf16.mxu0 0
        %1073 = vmatpush1.bf16.msra.mxu0 0
        %1074 = vmatprep.subr.bf16.mxu0 0
        %1075 = vmatpush1.bf16.msra.mxu0 0
        %1076 = vmatprep.subr.bf16.mxu0 0
        %1077 = vmatpush1.bf16.msra.mxu0 0
        %1078 = vmatprep.subr.bf16.mxu0 0
        %1079 = vmatpush1.bf16.msra.mxu0 0
        %1080 = vmatprep.mubr.bf16.mxu0 0
        %1081 = vmatmul.mubr.bf16.gmra.mrb[0].mxu0 %v1042
        %v1082 = vpop.f32.mrb[0].mxu0
        %v1083 = vadd.f32 0.0, %v1082
        %v1084 = vpop.f32.mrb[0].mxu0
        %v1085 = vpop.f32.mrb[0].mxu0
        %v1086 = vpop.f32.mrb[0].mxu0
        %1087 = vdwg.mxu0
        %v1089 = vsel %vm1016, %v1040, 0
        %v1092 = vsel %vm1044, %v912, 0
        %1094 = vmatprep.subr.bf16.mxu0 0
        %1095 = vmatpush1.bf16.msra.mxu0 %v1092
        %1096 = vmatprep.subr.bf16.mxu0 0
        %1097 = vmatpush1.bf16.msra.mxu0 0
        %1098 = vmatprep.subr.bf16.mxu0 0
        %1099 = vmatpush1.bf16.msra.mxu0 0
        %1100 = vmatprep.subr.bf16.mxu0 0
        %1101 = vmatpush1.bf16.msra.mxu0 0
        %1102 = vmatprep.subr.bf16.mxu0 0
        %1103 = vmatpush1.bf16.msra.mxu0 0
        %1104 = vmatprep.subr.bf16.mxu0 0
        %1105 = vmatpush1.bf16.msra.mxu0 0
        %1106 = vmatprep.subr.bf16.mxu0 0
        %1107 = vmatpush1.bf16.msra.mxu0 0
        %1108 = vmatprep.subr.bf16.mxu0 0
        %1109 = vmatpush1.bf16.msra.mxu0 0
        %1110 = vmatprep.subr.bf16.mxu0 0
        %1111 = vmatpush1.bf16.msra.mxu0 0
        %1112 = vmatprep.subr.bf16.mxu0 0
        %1113 = vmatpush1.bf16.msra.mxu0 0
        %1114 = vmatprep.subr.bf16.mxu0 0
        %1115 = vmatpush1.bf16.msra.mxu0 0
        %1116 = vmatprep.subr.bf16.mxu0 0
        %1117 = vmatpush1.bf16.msra.mxu0 0
        %1118 = vmatprep.subr.bf16.mxu0 0
        %1119 = vmatpush1.bf16.msra.mxu0 0
        %1120 = vmatprep.subr.bf16.mxu0 0
        %1121 = vmatpush1.bf16.msra.mxu0 0
        %1122 = vmatprep.subr.bf16.mxu0 0
        %1123 = vmatpush1.bf16.msra.mxu0 0
        %1124 = vmatprep.subr.bf16.mxu0 0
        %1125 = vmatpush1.bf16.msra.mxu0 0
        %1126 = vmatprep.mubr.bf16.mxu0 0
        %1127 = vmatmul.mubr.bf16.gmra.mrb[0].mxu0 %v1089
        %v1128 = vpop.f32.mrb[0].mxu0
        %v1129 = vadd.f32 0.0, %v1128
        %v1130 = vpop.f32.mrb[0].mxu0
        %v1131 = vpop.f32.mrb[0].mxu0
        %v1132 = vpop.f32.mrb[0].mxu0
        %1133 = vdwg.mxu0
        %1135 = vrot.lane.b32.xlu0 %v1129, 64
        %v1136 = vpop.permute.xlu0 %1135
        %v1138 = vsel %vm913, %v1083, %v1136
        %v1139 = vpack.c.bf16 %v1138, %v1138
        %v1140 = vld [vmem:[%s5] sm:$0xf]
        %v1141 = vld [vmem:[%s5 + $0x4] sm:$0xf]
        %v1142 = vld [vmem:[%s5 + $0x8] sm:$0xf]
        %v1143 = vld [vmem:[%s5 + $0xc] sm:$0xf]
        %v1144 = vld [vmem:[%s5 + $0x10] sm:$0xf]
        %v1145 = vld [vmem:[%s5 + $0x14] sm:$0xf]
        %v1146 = vld [vmem:[%s5 + $0x18] sm:$0xf]
        %v1147 = vld [vmem:[%s5 + $0x1c] sm:$0xf]
        %v1148 = vld [vmem:[%s5 + $0x20] sm:$0xf]
        %v1149 = vld [vmem:[%s5 + $0x24] sm:$0xf]
        %v1150 = vld [vmem:[%s5 + $0x28] sm:$0xf]
        %v1151 = vld [vmem:[%s5 + $0x2c] sm:$0xf]
        %v1152 = vld [vmem:[%s5 + $0x30] sm:$0xf]
        %v1153 = vld [vmem:[%s5 + $0x34] sm:$0xf]
        %v1154 = vld [vmem:[%s5 + $0x38] sm:$0xf]
        %v1155 = vld [vmem:[%s5 + $0x3c] sm:$0xf]
        %v1156 = vld [vmem:[#allocation5 + $0x3] ss:$0 sm:$0xff]
        %v1173 = vunpack.c.l.b16 %v1140
        %v1174 = vunpack.c.l.b16 %v1141
        %v1175 = vunpack.c.l.b16 %v1142
        %v1176 = vunpack.c.l.b16 %v1143
        %v1177 = vunpack.c.l.b16 %v1144
        %v1178 = vunpack.c.l.b16 %v1145
        %v1179 = vunpack.c.l.b16 %v1146
        %v1180 = vunpack.c.l.b16 %v1147
        %v1181 = vunpack.c.l.b16 %v1148
        %v1182 = vunpack.c.l.b16 %v1149
        %v1183 = vunpack.c.l.b16 %v1150
        %v1184 = vunpack.c.l.b16 %v1151
        %v1185 = vunpack.c.l.b16 %v1152
        %v1186 = vunpack.c.l.b16 %v1153
        %v1187 = vunpack.c.l.b16 %v1154
        %v1188 = vunpack.c.l.b16 %v1155
        %v1189 = vpack.c.b16 %v1174, %v1173
        %v1190 = vpack.c.b16 %v1176, %v1175
        %v1191 = vpack.c.b16 %v1178, %v1177
        %v1192 = vpack.c.b16 %v1180, %v1179
        %v1193 = vpack.c.b16 %v1182, %v1181
        %v1194 = vpack.c.b16 %v1184, %v1183
        %v1195 = vpack.c.b16 %v1186, %v1185
        %v1196 = vpack.c.b16 %v1188, %v1187
        %1205 = vmatprep.subr.bf16.mxu0 0
        %1206 = vmatpush1.bf16.msra.mxu0 %v1189
        %1207 = vmatprep.subr.bf16.mxu0 0
        %1208 = vmatpush1.bf16.msra.mxu0 %v1190
        %1209 = vmatprep.subr.bf16.mxu0 0
        %1210 = vmatpush1.bf16.msra.mxu0 %v1191
        %1211 = vmatprep.subr.bf16.mxu0 0
        %1212 = vmatpush1.bf16.msra.mxu0 %v1192
        %1213 = vmatprep.subr.bf16.mxu0 0
        %1214 = vmatpush1.bf16.msra.mxu0 %v1193
        %1215 = vmatprep.subr.bf16.mxu0 0
        %1216 = vmatpush1.bf16.msra.mxu0 %v1194
        %1217 = vmatprep.subr.bf16.mxu0 0
        %1218 = vmatpush1.bf16.msra.mxu0 %v1195
        %1219 = vmatprep.subr.bf16.mxu0 0
        %1220 = vmatpush1.bf16.msra.mxu0 %v1196
        %1221 = vmatprep.subr.bf16.mxu0 0
        %1222 = vmatpush1.bf16.msra.mxu0 0
        %1223 = vmatprep.subr.bf16.mxu0 0
        %1224 = vmatpush1.bf16.msra.mxu0 0
        %1225 = vmatprep.subr.bf16.mxu0 0
        %1226 = vmatpush1.bf16.msra.mxu0 0
        %1227 = vmatprep.subr.bf16.mxu0 0
        %1228 = vmatpush1.bf16.msra.mxu0 0
        %1229 = vmatprep.subr.bf16.mxu0 0
        %1230 = vmatpush1.bf16.msra.mxu0 0
        %1231 = vmatprep.subr.bf16.mxu0 0
        %1232 = vmatpush1.bf16.msra.mxu0 0
        %1233 = vmatprep.subr.bf16.mxu0 0
        %1234 = vmatpush1.bf16.msra.mxu0 0
        %1235 = vmatprep.subr.bf16.mxu0 0
        %1236 = vmatpush1.bf16.msra.mxu0 0
        %1237 = vmatprep.mubr.bf16.mxu0 0
        %1238 = vmatmul.mubr.bf16.gmra.mrb[0].mxu0 %v1139
        %v1239 = vpop.f32.mrb[0].mxu0
        %v1240 = vadd.f32 %v1156, %v1239
        %v1241 = vpop.f32.mrb[0].mxu0
        %v1242 = vpop.f32.mrb[0].mxu0
        %v1243 = vpop.f32.mrb[0].mxu0
        %1244 = vdwg.mxu0
        %v1245 = vadd.f32 %v1240, %v640
        %v1246 = vld [vmem:[#allocation5 + $0x4] ss:$0 sm:$0xff]
        %v1247 = vld [vmem:[#allocation5 + $0x5] ss:$0 sm:$0xff]
        %1248 = vadd.xlane.f32.xlu0 %v1245
        %v1249 = vpop.xlane.xlu0 %1248
        %v1250 = vmul.f32 %v1249, %v629
        %v1251 = vsub.f32 %v1245, %v1250
        %v1252 = vmul.f32 %v1251, %v1251
        %1253 = vadd.xlane.f32.xlu0 %v1252
        %v1254 = vpop.xlane.xlu0 %1253
        %v1255 = vmul.f32 %v1254, %v629
        %v1256 = vadd.f32 %v1255, 1e-12
        %v1257 = vrsqrt.pop %v1256
        %v1258 = vmul.f32 %v1251, %v1257
        %v1259 = vmul.f32 %v1258, %v1246
        %v1260 = vadd.f32 %v1259, %v1247
        %v1261 = vpack.c.bf16 %v1260, %v1260
        %v1262 = vld [vmem:[#allocation8] sm:$0xff]
        %v1263 = vld [vmem:[#allocation8 + $0x8] sm:$0xff]
        %v1264 = vld [vmem:[#allocation8 + $0x10] sm:$0xff]
        %v1265 = vld [vmem:[#allocation8 + $0x18] sm:$0xff]
        %v1266 = vld [vmem:[#allocation8 + $0x20] sm:$0xff]
        %v1267 = vld [vmem:[#allocation8 + $0x28] sm:$0xff]
        %v1268 = vld [vmem:[#allocation8 + $0x30] sm:$0xff]
        %v1269 = vld [vmem:[#allocation8 + $0x38] sm:$0xff]
        %v1270 = vld [vmem:[#allocation8 + $0x40] sm:$0xff]
        %v1271 = vld [vmem:[#allocation8 + $0x48] sm:$0xff]
        %v1272 = vld [vmem:[#allocation8 + $0x50] sm:$0xff]
        %v1273 = vld [vmem:[#allocation8 + $0x58] sm:$0xff]
        %v1274 = vld [vmem:[#allocation8 + $0x60] sm:$0xff]
        %v1275 = vld [vmem:[#allocation8 + $0x68] sm:$0xff]
        %v1276 = vld [vmem:[#allocation8 + $0x70] sm:$0xff]
        %v1277 = vld [vmem:[#allocation8 + $0x78] sm:$0xff]
        %v1278 = vld [vmem:[#allocation8 + $0x80] sm:$0xff]
        %v1279 = vld [vmem:[#allocation8 + $0x88] sm:$0xff]
        %v1280 = vld [vmem:[#allocation8 + $0x90] sm:$0xff]
        %v1281 = vld [vmem:[#allocation8 + $0x98] sm:$0xff]
        %v1282 = vld [vmem:[#allocation8 + $0xa0] sm:$0xff]
        %v1283 = vld [vmem:[#allocation8 + $0xa8] sm:$0xff]
        %v1284 = vld [vmem:[#allocation8 + $0xb0] sm:$0xff]
        %v1285 = vld [vmem:[#allocation8 + $0xb8] sm:$0xff]
        %v1286 = vld [vmem:[#allocation8 + $0xc0] sm:$0xff]
        %v1287 = vld [vmem:[#allocation8 + $0xc8] sm:$0xff]
        %v1288 = vld [vmem:[#allocation8 + $0xd0] sm:$0xff]
        %v1289 = vld [vmem:[#allocation8 + $0xd8] sm:$0xff]
        %v1290 = vld [vmem:[#allocation8 + $0xe0] sm:$0xff]
        %v1291 = vld [vmem:[#allocation8 + $0xe8] sm:$0xff]
        %v1292 = vld [vmem:[#allocation8 + $0xf0] sm:$0xff]
        %v1293 = vld [vmem:[#allocation8 + $0xf8] sm:$0xff]
        %s1294 = scalar_lea.vmem [#allocation5], 6
        %v1295 = vld [vmem:[%s1294] ss:$8 sm:$0xf]
        %v1297 = vlaneseq
        %v1298 = vshrl.u32 %v1297, 7
        %v1299 = vsub.s32 0, %v1298
        %v1300 = vrot.slane %v1295, %v1299
        %v1301 = vlaneseq
        %v1302 = vshrl.u32 %v1301, 7
        %v1303 = vsub.s32 1, %v1302
        %v1304 = vrot.slane %v1295, %v1303
        %v1305 = vlaneseq
        %v1306 = vshrl.u32 %v1305, 7
        %v1307 = vsub.s32 2, %v1306
        %v1308 = vrot.slane %v1295, %v1307
        %v1309 = vlaneseq
        %v1310 = vshrl.u32 %v1309, 7
        %v1311 = vsub.s32 3, %v1310
        %v1312 = vrot.slane %v1295, %v1311
        %v1349 = vunpack.c.l.b16 %v1262
        %v1350 = vunpack.c.h.b16 %v1262
        %v1351 = vunpack.c.l.b16 %v1263
        %v1352 = vunpack.c.h.b16 %v1263
        %v1353 = vunpack.c.l.b16 %v1264
        %v1354 = vunpack.c.h.b16 %v1264
        %v1355 = vunpack.c.l.b16 %v1265
        %v1356 = vunpack.c.h.b16 %v1265
        %v1357 = vunpack.c.l.b16 %v1266
        %v1358 = vunpack.c.h.b16 %v1266
        %v1359 = vunpack.c.l.b16 %v1267
        %v1360 = vunpack.c.h.b16 %v1267
        %v1361 = vunpack.c.l.b16 %v1268
        %v1362 = vunpack.c.h.b16 %v1268
        %v1363 = vunpack.c.l.b16 %v1269
        %v1364 = vunpack.c.h.b16 %v1269
        %v1365 = vunpack.c.l.b16 %v1270
        %v1366 = vunpack.c.h.b16 %v1270
        %v1367 = vunpack.c.l.b16 %v1271
        %v1368 = vunpack.c.h.b16 %v1271
        %v1369 = vunpack.c.l.b16 %v1272
        %v1370 = vunpack.c.h.b16 %v1272
        %v1371 = vunpack.c.l.b16 %v1273
        %v1372 = vunpack.c.h.b16 %v1273
        %v1373 = vunpack.c.l.b16 %v1274
        %v1374 = vunpack.c.h.b16 %v1274
        %v1375 = vunpack.c.l.b16 %v1275
        %v1376 = vunpack.c.h.b16 %v1275
        %v1377 = vunpack.c.l.b16 %v1276
        %v1378 = vunpack.c.h.b16 %v1276
        %v1379 = vunpack.c.l.b16 %v1277
        %v1380 = vunpack.c.h.b16 %v1277
        %v1381 = vunpack.c.l.b16 %v1278
        %v1382 = vunpack.c.h.b16 %v1278
        %v1383 = vunpack.c.l.b16 %v1279
        %v1384 = vunpack.c.h.b16 %v1279
        %v1385 = vunpack.c.l.b16 %v1280
        %v1386 = vunpack.c.h.b16 %v1280
        %v1387 = vunpack.c.l.b16 %v1281
        %v1388 = vunpack.c.h.b16 %v1281
        %v1389 = vunpack.c.l.b16 %v1282
        %v1390 = vunpack.c.h.b16 %v1282
        %v1391 = vunpack.c.l.b16 %v1283
        %v1392 = vunpack.c.h.b16 %v1283
        %v1393 = vunpack.c.l.b16 %v1284
        %v1394 = vunpack.c.h.b16 %v1284
        %v1395 = vunpack.c.l.b16 %v1285
        %v1396 = vunpack.c.h.b16 %v1285
        %v1397 = vunpack.c.l.b16 %v1286
        %v1398 = vunpack.c.h.b16 %v1286
        %v1399 = vunpack.c.l.b16 %v1287
        %v1400 = vunpack.c.h.b16 %v1287
        %v1401 = vunpack.c.l.b16 %v1288
        %v1402 = vunpack.c.h.b16 %v1288
        %v1403 = vunpack.c.l.b16 %v1289
        %v1404 = vunpack.c.h.b16 %v1289
        %v1405 = vunpack.c.l.b16 %v1290
        %v1406 = vunpack.c.h.b16 %v1290
        %v1407 = vunpack.c.l.b16 %v1291
        %v1408 = vunpack.c.h.b16 %v1291
        %v1409 = vunpack.c.l.b16 %v1292
        %v1410 = vunpack.c.h.b16 %v1292
        %v1411 = vunpack.c.l.b16 %v1293
        %v1412 = vunpack.c.h.b16 %v1293
        %v1413 = vpack.c.b16 %v1353, %v1349
        %v1414 = vpack.c.b16 %v1354, %v1350
        %v1415 = vpack.c.b16 %v1355, %v1351
        %v1416 = vpack.c.b16 %v1356, %v1352
        %v1417 = vpack.c.b16 %v1361, %v1357
        %v1418 = vpack.c.b16 %v1362, %v1358
        %v1419 = vpack.c.b16 %v1363, %v1359
        %v1420 = vpack.c.b16 %v1364, %v1360
        %v1421 = vpack.c.b16 %v1369, %v1365
        %v1422 = vpack.c.b16 %v1370, %v1366
        %v1423 = vpack.c.b16 %v1371, %v1367
        %v1424 = vpack.c.b16 %v1372, %v1368
        %v1425 = vpack.c.b16 %v1377, %v1373
        %v1426 = vpack.c.b16 %v1378, %v1374
        %v1427 = vpack.c.b16 %v1379, %v1375
        %v1428 = vpack.c.b16 %v1380, %v1376
        %v1429 = vpack.c.b16 %v1385, %v1381
        %v1430 = vpack.c.b16 %v1386, %v1382
        %v1431 = vpack.c.b16 %v1387, %v1383
        %v1432 = vpack.c.b16 %v1388, %v1384
        %v1433 = vpack.c.b16 %v1393, %v1389
        %v1434 = vpack.c.b16 %v1394, %v1390
        %v1435 = vpack.c.b16 %v1395, %v1391
        %v1436 = vpack.c.b16 %v1396, %v1392
        %v1437 = vpack.c.b16 %v1401, %v1397
        %v1438 = vpack.c.b16 %v1402, %v1398
        %v1439 = vpack.c.b16 %v1403, %v1399
        %v1440 = vpack.c.b16 %v1404, %v1400
        %v1441 = vpack.c.b16 %v1409, %v1405
        %v1442 = vpack.c.b16 %v1410, %v1406
        %v1443 = vpack.c.b16 %v1411, %v1407
        %v1444 = vpack.c.b16 %v1412, %v1408
        %1477 = vmatprep.subr.bf16.mxu0 %v1414
        %1478 = vmatpush1.bf16.msra.mxu0 %v1413
        %1479 = vmatprep.subr.bf16.mxu0 %v1418
        %1480 = vmatpush1.bf16.msra.mxu0 %v1417
        %1481 = vmatprep.subr.bf16.mxu0 %v1422
        %1482 = vmatpush1.bf16.msra.mxu0 %v1421
        %1483 = vmatprep.subr.bf16.mxu0 %v1426
        %1484 = vmatpush1.bf16.msra.mxu0 %v1425
        %1485 = vmatprep.subr.bf16.mxu0 %v1430
        %1486 = vmatpush1.bf16.msra.mxu0 %v1429
        %1487 = vmatprep.subr.bf16.mxu0 %v1434
        %1488 = vmatpush1.bf16.msra.mxu0 %v1433
        %1489 = vmatprep.subr.bf16.mxu0 %v1438
        %1490 = vmatpush1.bf16.msra.mxu0 %v1437
        %1491 = vmatprep.subr.bf16.mxu0 %v1442
        %1492 = vmatpush1.bf16.msra.mxu0 %v1441
        %1493 = vmatprep.subr.bf16.mxu0 0
        %1494 = vmatpush1.bf16.msra.mxu0 0
        %1495 = vmatprep.subr.bf16.mxu0 0
        %1496 = vmatpush1.bf16.msra.mxu0 0
        %1497 = vmatprep.subr.bf16.mxu0 0
        %1498 = vmatpush1.bf16.msra.mxu0 0
        %1499 = vmatprep.subr.bf16.mxu0 0
        %1500 = vmatpush1.bf16.msra.mxu0 0
        %1501 = vmatprep.subr.bf16.mxu0 0
        %1502 = vmatpush1.bf16.msra.mxu0 0
        %1503 = vmatprep.subr.bf16.mxu0 0
        %1504 = vmatpush1.bf16.msra.mxu0 0
        %1505 = vmatprep.subr.bf16.mxu0 0
        %1506 = vmatpush1.bf16.msra.mxu0 0
        %1507 = vmatprep.subr.bf16.mxu0 0
        %1508 = vmatpush1.bf16.msra.mxu0 0
        %1509 = vmatprep.mubr.bf16.mxu0 0
        %1510 = vmatmul.mubr.bf16.gmra.mrb[0].mxu0 %v1261
        %v1511 = vpop.f32.mrb[0].mxu0
        %v1512 = vadd.f32 %v1300, %v1511
        %v1513 = vpop.f32.mrb[0].mxu0
        %v1514 = vadd.f32 %v1304, %v1513
        %v1515 = vpop.f32.mrb[0].mxu0
        %v1516 = vpop.f32.mrb[0].mxu0
        %1517 = vdwg.mxu0
        %1518 = vmatprep.subr.bf16.mxu0 %v1416
        %1519 = vmatpush1.bf16.msra.mxu0 %v1415
        %1520 = vmatprep.subr.bf16.mxu0 %v1420
        %1521 = vmatpush1.bf16.msra.mxu0 %v1419
        %1522 = vmatprep.subr.bf16.mxu0 %v1424
        %1523 = vmatpush1.bf16.msra.mxu0 %v1423
        %1524 = vmatprep.subr.bf16.mxu0 %v1428
        %1525 = vmatpush1.bf16.msra.mxu0 %v1427
        %1526 = vmatprep.subr.bf16.mxu0 %v1432
        %1527 = vmatpush1.bf16.msra.mxu0 %v1431
        %1528 = vmatprep.subr.bf16.mxu0 %v1436
        %1529 = vmatpush1.bf16.msra.mxu0 %v1435
        %1530 = vmatprep.subr.bf16.mxu0 %v1440
        %1531 = vmatpush1.bf16.msra.mxu0 %v1439
        %1532 = vmatprep.subr.bf16.mxu0 %v1444
        %1533 = vmatpush1.bf16.msra.mxu0 %v1443
        %1534 = vmatprep.subr.bf16.mxu0 0
        %1535 = vmatpush1.bf16.msra.mxu0 0
        %1536 = vmatprep.subr.bf16.mxu0 0
        %1537 = vmatpush1.bf16.msra.mxu0 0
        %1538 = vmatprep.subr.bf16.mxu0 0
        %1539 = vmatpush1.bf16.msra.mxu0 0
        %1540 = vmatprep.subr.bf16.mxu0 0
        %1541 = vmatpush1.bf16.msra.mxu0 0
        %1542 = vmatprep.subr.bf16.mxu0 0
        %1543 = vmatpush1.bf16.msra.mxu0 0
        %1544 = vmatprep.subr.bf16.mxu0 0
        %1545 = vmatpush1.bf16.msra.mxu0 0
        %1546 = vmatprep.subr.bf16.mxu0 0
        %1547 = vmatpush1.bf16.msra.mxu0 0
        %1548 = vmatprep.subr.bf16.mxu0 0
        %1549 = vmatpush1.bf16.msra.mxu0 0
        %1550 = vmatprep.mubr.bf16.mxu0 0
        %1551 = vmatmul.mubr.bf16.gmra.mrb[0].mxu0 %v1261
        %v1552 = vpop.f32.mrb[0].mxu0
        %v1553 = vadd.f32 %v1308, %v1552
        %v1554 = vpop.f32.mrb[0].mxu0
        %v1555 = vadd.f32 %v1312, %v1554
        %v1556 = vpop.f32.mrb[0].mxu0
        %v1557 = vpop.f32.mrb[0].mxu0
        %1558 = vdwg.mxu0
        %v1559 = vmul.f32 %v1512, 0.5
        %v1560 = vmul.f32 %v1514, 0.5
        %v1561 = vmul.f32 %v1553, 0.5
        %v1562 = vmul.f32 %v1555, 0.5
        %v1563 = vmul.f32 %v1512, 0.70710677
        %v1564 = vmul.f32 %v1514, 0.70710677
        %v1565 = vmul.f32 %v1553, 0.70710677
        %v1566 = vmul.f32 %v1555, 0.70710677
        %v1567 = verf.f32.pop %v1563
        %v1568 = verf.f32.pop %v1564
        %v1569 = verf.f32.pop %v1565
        %v1570 = verf.f32.pop %v1566
        %v1571 = vadd.f32 %v1567, 1.0
        %v1572 = vadd.f32 %v1568, 1.0
        %v1573 = vadd.f32 %v1569, 1.0
        %v1574 = vadd.f32 %v1570, 1.0
        %v1575 = vmul.f32 %v1559, %v1571
        %v1576 = vmul.f32 %v1560, %v1572
        %v1577 = vmul.f32 %v1561, %v1573
        %v1578 = vmul.f32 %v1562, %v1574
        %v1579 = vpack.c.bf16 %v1575, %v1575
        %v1580 = vpack.c.bf16 %v1576, %v1576
        %v1581 = vpack.c.bf16 %v1577, %v1577
        %v1582 = vpack.c.bf16 %v1578, %v1578
        %v1583 = vld [vmem:[#allocation10] sm:$0xf]
        %v1584 = vld [vmem:[#allocation10 + $0x4] sm:$0xf]
        %v1585 = vld [vmem:[#allocation10 + $0x8] sm:$0xf]
        %v1586 = vld [vmem:[#allocation10 + $0xc] sm:$0xf]
        %v1587 = vld [vmem:[#allocation10 + $0x10] sm:$0xf]
        %v1588 = vld [vmem:[#allocation10 + $0x14] sm:$0xf]
        %v1589 = vld [vmem:[#allocation10 + $0x18] sm:$0xf]
        %v1590 = vld [vmem:[#allocation10 + $0x1c] sm:$0xf]
        %v1591 = vld [vmem:[#allocation10 + $0x20] sm:$0xf]
        %v1592 = vld [vmem:[#allocation10 + $0x24] sm:$0xf]
        %v1593 = vld [vmem:[#allocation10 + $0x28] sm:$0xf]
        %v1594 = vld [vmem:[#allocation10 + $0x2c] sm:$0xf]
        %v1595 = vld [vmem:[#allocation10 + $0x30] sm:$0xf]
        %v1596 = vld [vmem:[#allocation10 + $0x34] sm:$0xf]
        %v1597 = vld [vmem:[#allocation10 + $0x38] sm:$0xf]
        %v1598 = vld [vmem:[#allocation10 + $0x3c] sm:$0xf]
        %v1599 = vld [vmem:[#allocation10 + $0x40] sm:$0xf]
        %v1600 = vld [vmem:[#allocation10 + $0x44] sm:$0xf]
        %v1601 = vld [vmem:[#allocation10 + $0x48] sm:$0xf]
        %v1602 = vld [vmem:[#allocation10 + $0x4c] sm:$0xf]
        %v1603 = vld [vmem:[#allocation10 + $0x50] sm:$0xf]
        %v1604 = vld [vmem:[#allocation10 + $0x54] sm:$0xf]
        %v1605 = vld [vmem:[#allocation10 + $0x58] sm:$0xf]
        %v1606 = vld [vmem:[#allocation10 + $0x5c] sm:$0xf]
        %v1607 = vld [vmem:[#allocation10 + $0x60] sm:$0xf]
        %v1608 = vld [vmem:[#allocation10 + $0x64] sm:$0xf]
        %v1609 = vld [vmem:[#allocation10 + $0x68] sm:$0xf]
        %v1610 = vld [vmem:[#allocation10 + $0x6c] sm:$0xf]
        %v1611 = vld [vmem:[#allocation10 + $0x70] sm:$0xf]
        %v1612 = vld [vmem:[#allocation10 + $0x74] sm:$0xf]
        %v1613 = vld [vmem:[#allocation10 + $0x78] sm:$0xf]
        %v1614 = vld [vmem:[#allocation10 + $0x7c] sm:$0xf]
        %v1615 = vld [vmem:[#allocation10 + $0x80] sm:$0xf]
        %v1616 = vld [vmem:[#allocation10 + $0x84] sm:$0xf]
        %v1617 = vld [vmem:[#allocation10 + $0x88] sm:$0xf]
        %v1618 = vld [vmem:[#allocation10 + $0x8c] sm:$0xf]
        %v1619 = vld [vmem:[#allocation10 + $0x90] sm:$0xf]
        %v1620 = vld [vmem:[#allocation10 + $0x94] sm:$0xf]
        %v1621 = vld [vmem:[#allocation10 + $0x98] sm:$0xf]
        %v1622 = vld [vmem:[#allocation10 + $0x9c] sm:$0xf]
        %v1623 = vld [vmem:[#allocation10 + $0xa0] sm:$0xf]
        %v1624 = vld [vmem:[#allocation10 + $0xa4] sm:$0xf]
        %v1625 = vld [vmem:[#allocation10 + $0xa8] sm:$0xf]
        %v1626 = vld [vmem:[#allocation10 + $0xac] sm:$0xf]
        %v1627 = vld [vmem:[#allocation10 + $0xb0] sm:$0xf]
        %v1628 = vld [vmem:[#allocation10 + $0xb4] sm:$0xf]
        %v1629 = vld [vmem:[#allocation10 + $0xb8] sm:$0xf]
        %v1630 = vld [vmem:[#allocation10 + $0xbc] sm:$0xf]
        %v1631 = vld [vmem:[#allocation10 + $0xc0] sm:$0xf]
        %v1632 = vld [vmem:[#allocation10 + $0xc4] sm:$0xf]
        %v1633 = vld [vmem:[#allocation10 + $0xc8] sm:$0xf]
        %v1634 = vld [vmem:[#allocation10 + $0xcc] sm:$0xf]
        %v1635 = vld [vmem:[#allocation10 + $0xd0] sm:$0xf]
        %v1636 = vld [vmem:[#allocation10 + $0xd4] sm:$0xf]
        %v1637 = vld [vmem:[#allocation10 + $0xd8] sm:$0xf]
        %v1638 = vld [vmem:[#allocation10 + $0xdc] sm:$0xf]
        %v1639 = vld [vmem:[#allocation10 + $0xe0] sm:$0xf]
        %v1640 = vld [vmem:[#allocation10 + $0xe4] sm:$0xf]
        %v1641 = vld [vmem:[#allocation10 + $0xe8] sm:$0xf]
        %v1642 = vld [vmem:[#allocation10 + $0xec] sm:$0xf]
        %v1643 = vld [vmem:[#allocation10 + $0xf0] sm:$0xf]
        %v1644 = vld [vmem:[#allocation10 + $0xf4] sm:$0xf]
        %v1645 = vld [vmem:[#allocation10 + $0xf8] sm:$0xf]
        %v1646 = vld [vmem:[#allocation10 + $0xfc] sm:$0xf]
        %v1647 = vld [vmem:[#allocation5 + $0x7] ss:$0 sm:$0xff]
        %v1712 = vunpack.c.l.b16 %v1583
        %v1713 = vunpack.c.l.b16 %v1584
        %v1714 = vunpack.c.l.b16 %v1585
        %v1715 = vunpack.c.l.b16 %v1586
        %v1716 = vunpack.c.l.b16 %v1587
        %v1717 = vunpack.c.l.b16 %v1588
        %v1718 = vunpack.c.l.b16 %v1589
        %v1719 = vunpack.c.l.b16 %v1590
        %v1720 = vunpack.c.l.b16 %v1591
        %v1721 = vunpack.c.l.b16 %v1592
        %v1722 = vunpack.c.l.b16 %v1593
        %v1723 = vunpack.c.l.b16 %v1594
        %v1724 = vunpack.c.l.b16 %v1595
        %v1725 = vunpack.c.l.b16 %v1596
        %v1726 = vunpack.c.l.b16 %v1597
        %v1727 = vunpack.c.l.b16 %v1598
        %v1728 = vunpack.c.l.b16 %v1599
        %v1729 = vunpack.c.l.b16 %v1600
        %v1730 = vunpack.c.l.b16 %v1601
        %v1731 = vunpack.c.l.b16 %v1602
        %v1732 = vunpack.c.l.b16 %v1603
        %v1733 = vunpack.c.l.b16 %v1604
        %v1734 = vunpack.c.l.b16 %v1605
        %v1735 = vunpack.c.l.b16 %v1606
        %v1736 = vunpack.c.l.b16 %v1607
        %v1737 = vunpack.c.l.b16 %v1608
        %v1738 = vunpack.c.l.b16 %v1609
        %v1739 = vunpack.c.l.b16 %v1610
        %v1740 = vunpack.c.l.b16 %v1611
        %v1741 = vunpack.c.l.b16 %v1612
        %v1742 = vunpack.c.l.b16 %v1613
        %v1743 = vunpack.c.l.b16 %v1614
        %v1744 = vunpack.c.l.b16 %v1615
        %v1745 = vunpack.c.l.b16 %v1616
        %v1746 = vunpack.c.l.b16 %v1617
        %v1747 = vunpack.c.l.b16 %v1618
        %v1748 = vunpack.c.l.b16 %v1619
        %v1749 = vunpack.c.l.b16 %v1620
        %v1750 = vunpack.c.l.b16 %v1621
        %v1751 = vunpack.c.l.b16 %v1622
        %v1752 = vunpack.c.l.b16 %v1623
        %v1753 = vunpack.c.l.b16 %v1624
        %v1754 = vunpack.c.l.b16 %v1625
        %v1755 = vunpack.c.l.b16 %v1626
        %v1756 = vunpack.c.l.b16 %v1627
        %v1757 = vunpack.c.l.b16 %v1628
        %v1758 = vunpack.c.l.b16 %v1629
        %v1759 = vunpack.c.l.b16 %v1630
        %v1760 = vunpack.c.l.b16 %v1631
        %v1761 = vunpack.c.l.b16 %v1632
        %v1762 = vunpack.c.l.b16 %v1633
        %v1763 = vunpack.c.l.b16 %v1634
        %v1764 = vunpack.c.l.b16 %v1635
        %v1765 = vunpack.c.l.b16 %v1636
        %v1766 = vunpack.c.l.b16 %v1637
        %v1767 = vunpack.c.l.b16 %v1638
        %v1768 = vunpack.c.l.b16 %v1639
        %v1769 = vunpack.c.l.b16 %v1640
        %v1770 = vunpack.c.l.b16 %v1641
        %v1771 = vunpack.c.l.b16 %v1642
        %v1772 = vunpack.c.l.b16 %v1643
        %v1773 = vunpack.c.l.b16 %v1644
        %v1774 = vunpack.c.l.b16 %v1645
        %v1775 = vunpack.c.l.b16 %v1646
        %v1776 = vpack.c.b16 %v1713, %v1712
        %v1777 = vpack.c.b16 %v1715, %v1714
        %v1778 = vpack.c.b16 %v1717, %v1716
        %v1779 = vpack.c.b16 %v1719, %v1718
        %v1780 = vpack.c.b16 %v1721, %v1720
        %v1781 = vpack.c.b16 %v1723, %v1722
        %v1782 = vpack.c.b16 %v1725, %v1724
        %v1783 = vpack.c.b16 %v1727, %v1726
        %v1784 = vpack.c.b16 %v1729, %v1728
        %v1785 = vpack.c.b16 %v1731, %v1730
        %v1786 = vpack.c.b16 %v1733, %v1732
        %v1787 = vpack.c.b16 %v1735, %v1734
        %v1788 = vpack.c.b16 %v1737, %v1736
        %v1789 = vpack.c.b16 %v1739, %v1738
        %v1790 = vpack.c.b16 %v1741, %v1740
        %v1791 = vpack.c.b16 %v1743, %v1742
        %v1792 = vpack.c.b16 %v1745, %v1744
        %v1793 = vpack.c.b16 %v1747, %v1746
        %v1794 = vpack.c.b16 %v1749, %v1748
        %v1795 = vpack.c.b16 %v1751, %v1750
        %v1796 = vpack.c.b16 %v1753, %v1752
        %v1797 = vpack.c.b16 %v1755, %v1754
        %v1798 = vpack.c.b16 %v1757, %v1756
        %v1799 = vpack.c.b16 %v1759, %v1758
        %v1800 = vpack.c.b16 %v1761, %v1760
        %v1801 = vpack.c.b16 %v1763, %v1762
        %v1802 = vpack.c.b16 %v1765, %v1764
        %v1803 = vpack.c.b16 %v1767, %v1766
        %v1804 = vpack.c.b16 %v1769, %v1768
        %v1805 = vpack.c.b16 %v1771, %v1770
        %v1806 = vpack.c.b16 %v1773, %v1772
        %v1807 = vpack.c.b16 %v1775, %v1774
        %1840 = vmatprep.subr.bf16.mxu0 0
        %1841 = vmatpush1.bf16.msra.mxu0 %v1776
        %1842 = vmatprep.subr.bf16.mxu0 0
        %1843 = vmatpush1.bf16.msra.mxu0 %v1777
        %1844 = vmatprep.subr.bf16.mxu0 0
        %1845 = vmatpush1.bf16.msra.mxu0 %v1778
        %1846 = vmatprep.subr.bf16.mxu0 0
        %1847 = vmatpush1.bf16.msra.mxu0 %v1779
        %1848 = vmatprep.subr.bf16.mxu0 0
        %1849 = vmatpush1.bf16.msra.mxu0 %v1780
        %1850 = vmatprep.subr.bf16.mxu0 0
        %1851 = vmatpush1.bf16.msra.mxu0 %v1781
        %1852 = vmatprep.subr.bf16.mxu0 0
        %1853 = vmatpush1.bf16.msra.mxu0 %v1782
        %1854 = vmatprep.subr.bf16.mxu0 0
        %1855 = vmatpush1.bf16.msra.mxu0 %v1783
        %1856 = vmatprep.subr.bf16.mxu0 0
        %1857 = vmatpush1.bf16.msra.mxu0 %v1784
        %1858 = vmatprep.subr.bf16.mxu0 0
        %1859 = vmatpush1.bf16.msra.mxu0 %v1785
        %1860 = vmatprep.subr.bf16.mxu0 0
        %1861 = vmatpush1.bf16.msra.mxu0 %v1786
        %1862 = vmatprep.subr.bf16.mxu0 0
        %1863 = vmatpush1.bf16.msra.mxu0 %v1787
        %1864 = vmatprep.subr.bf16.mxu0 0
        %1865 = vmatpush1.bf16.msra.mxu0 %v1788
        %1866 = vmatprep.subr.bf16.mxu0 0
        %1867 = vmatpush1.bf16.msra.mxu0 %v1789
        %1868 = vmatprep.subr.bf16.mxu0 0
        %1869 = vmatpush1.bf16.msra.mxu0 %v1790
        %1870 = vmatprep.subr.bf16.mxu0 0
        %1871 = vmatpush1.bf16.msra.mxu0 %v1791
        %1872 = vmatprep.mubr.bf16.mxu0 %v1580
        %1873 = vmatmul.mubr.bf16.gmra.mrb[0].mxu0 %v1579
        %v1874 = vpop.f32.mrb[0].mxu0
        %v1875 = vadd.f32 %v1647, %v1874
        %v1876 = vpop.f32.mrb[0].mxu0
        %v1877 = vpop.f32.mrb[0].mxu0
        %v1878 = vpop.f32.mrb[0].mxu0
        %1879 = vdwg.mxu0
        %1880 = vmatprep.subr.bf16.mxu0 0
        %1881 = vmatpush1.bf16.msra.mxu0 %v1792
        %1882 = vmatprep.subr.bf16.mxu0 0
        %1883 = vmatpush1.bf16.msra.mxu0 %v1793
        %1884 = vmatprep.subr.bf16.mxu0 0
        %1885 = vmatpush1.bf16.msra.mxu0 %v1794
        %1886 = vmatprep.subr.bf16.mxu0 0
        %1887 = vmatpush1.bf16.msra.mxu0 %v1795
        %1888 = vmatprep.subr.bf16.mxu0 0
        %1889 = vmatpush1.bf16.msra.mxu0 %v1796
        %1890 = vmatprep.subr.bf16.mxu0 0
        %1891 = vmatpush1.bf16.msra.mxu0 %v1797
        %1892 = vmatprep.subr.bf16.mxu0 0
        %1893 = vmatpush1.bf16.msra.mxu0 %v1798
        %1894 = vmatprep.subr.bf16.mxu0 0
        %1895 = vmatpush1.bf16.msra.mxu0 %v1799
        %1896 = vmatprep.subr.bf16.mxu0 0
        %1897 = vmatpush1.bf16.msra.mxu0 %v1800
        %1898 = vmatprep.subr.bf16.mxu0 0
        %1899 = vmatpush1.bf16.msra.mxu0 %v1801
        %1900 = vmatprep.subr.bf16.mxu0 0
        %1901 = vmatpush1.bf16.msra.mxu0 %v1802
        %1902 = vmatprep.subr.bf16.mxu0 0
        %1903 = vmatpush1.bf16.msra.mxu0 %v1803
        %1904 = vmatprep.subr.bf16.mxu0 0
        %1905 = vmatpush1.bf16.msra.mxu0 %v1804
        %1906 = vmatprep.subr.bf16.mxu0 0
        %1907 = vmatpush1.bf16.msra.mxu0 %v1805
        %1908 = vmatprep.subr.bf16.mxu0 0
        %1909 = vmatpush1.bf16.msra.mxu0 %v1806
        %1910 = vmatprep.subr.bf16.mxu0 0
        %1911 = vmatpush1.bf16.msra.mxu0 %v1807
        %1912 = vmatprep.mubr.bf16.mxu0 %v1582
        %1913 = vmatmul.mubr.bf16.gmra.mrb[0].mxu0 %v1581
        %v1914 = vpop.f32.mrb[0].mxu0
        %v1915 = vadd.f32 %v1875, %v1914
        %v1916 = vpop.f32.mrb[0].mxu0
        %v1917 = vpop.f32.mrb[0].mxu0
        %v1918 = vpop.f32.mrb[0].mxu0
        %1919 = vdwg.mxu0
        %v1920 = vadd.f32 %v1915, %v1260
        %v1921 = vld [vmem:[#allocation5 + $0x20] ss:$0 sm:$0xff]
        %v1922 = vld [vmem:[#allocation5 + $0x21] ss:$0 sm:$0xff]
        %1923 = vadd.xlane.f32.xlu0 %v1920
        %v1924 = vpop.xlane.xlu0 %1923
        %v1925 = vmul.f32 %v1924, %v629
        %v1926 = vsub.f32 %v1920, %v1925
        %v1927 = vmul.f32 %v1926, %v1926
        %1928 = vadd.xlane.f32.xlu0 %v1927
        %v1929 = vpop.xlane.xlu0 %1928
        %v1930 = vmul.f32 %v1929, %v629
        %v1931 = vadd.f32 %v1930, 1e-12
        %v1932 = vrsqrt.pop %v1931
        %v1933 = vmul.f32 %v1926, %v1932
        %v1934 = vmul.f32 %v1933, %v1921
        %v1935 = vadd.f32 %v1934, %v1922
        %v1936 = vpack.c.bf16 %v1935, %v1935
        %v1937 = vld [vmem:[#allocation11] sm:$0xff]
        %v1938 = vld [vmem:[#allocation11 + $0x8] sm:$0xf]
        %v1939 = vld [vmem:[#allocation11 + $0xc] sm:$0xff]
        %v1940 = vld [vmem:[#allocation11 + $0x14] sm:$0xf]
        %v1941 = vld [vmem:[#allocation11 + $0x18] sm:$0xff]
        %v1942 = vld [vmem:[#allocation11 + $0x20] sm:$0xf]
        %v1943 = vld [vmem:[#allocation11 + $0x24] sm:$0xff]
        %v1944 = vld [vmem:[#allocation11 + $0x2c] sm:$0xf]
        %v1945 = vld [vmem:[#allocation11 + $0x30] sm:$0xff]
        %v1946 = vld [vmem:[#allocation11 + $0x38] sm:$0xf]
        %v1947 = vld [vmem:[#allocation11 + $0x3c] sm:$0xff]
        %v1948 = vld [vmem:[#allocation11 + $0x44] sm:$0xf]
        %v1949 = vld [vmem:[#allocation11 + $0x48] sm:$0xff]
        %v1950 = vld [vmem:[#allocation11 + $0x50] sm:$0xf]
        %v1951 = vld [vmem:[#allocation11 + $0x54] sm:$0xff]
        %v1952 = vld [vmem:[#allocation11 + $0x5c] sm:$0xf]
        %v1953 = vld [vmem:[#allocation11 + $0x60] sm:$0xff]
        %v1954 = vld [vmem:[#allocation11 + $0x68] sm:$0xf]
        %v1955 = vld [vmem:[#allocation11 + $0x6c] sm:$0xff]
        %v1956 = vld [vmem:[#allocation11 + $0x74] sm:$0xf]
        %v1957 = vld [vmem:[#allocation11 + $0x78] sm:$0xff]
        %v1958 = vld [vmem:[#allocation11 + $0x80] sm:$0xf]
        %v1959 = vld [vmem:[#allocation11 + $0x84] sm:$0xff]
        %v1960 = vld [vmem:[#allocation11 + $0x8c] sm:$0xf]
        %v1961 = vld [vmem:[#allocation11 + $0x90] sm:$0xff]
        %v1962 = vld [vmem:[#allocation11 + $0x98] sm:$0xf]
        %v1963 = vld [vmem:[#allocation11 + $0x9c] sm:$0xff]
        %v1964 = vld [vmem:[#allocation11 + $0xa4] sm:$0xf]
        %v1965 = vld [vmem:[#allocation11 + $0xa8] sm:$0xff]
        %v1966 = vld [vmem:[#allocation11 + $0xb0] sm:$0xf]
        %v1967 = vld [vmem:[#allocation11 + $0xb4] sm:$0xff]
        %v1968 = vld [vmem:[#allocation11 + $0xbc] sm:$0xf]
        %s1969 = scalar_lea.vmem [#allocation5], 34
        %v1970 = vld [vmem:[%s1969] ss:$8 sm:$0x7]
        %v1972 = vlaneseq
        %v1973 = vshrl.u32 %v1972, 7
        %v1974 = vsub.s32 0, %v1973
        %v1975 = vrot.slane %v1970, %v1974
        %v1976 = vlaneseq
        %v1977 = vshrl.u32 %v1976, 7
        %v1978 = vsub.s32 1, %v1977
        %v1979 = vrot.slane %v1970, %v1978
        %v1980 = vlaneseq
        %v1981 = vshrl.u32 %v1980, 7
        %v1982 = vsub.s32 2, %v1981
        %v1983 = vrot.slane %v1970, %v1982
        %v2019 = vunpack.c.l.b16 %v1937
        %v2020 = vunpack.c.h.b16 %v1937
        %v2021 = vunpack.c.l.b16 %v1938
        %v2022 = vunpack.c.l.b16 %v1939
        %v2023 = vunpack.c.h.b16 %v1939
        %v2024 = vunpack.c.l.b16 %v1940
        %v2025 = vunpack.c.l.b16 %v1941
        %v2026 = vunpack.c.h.b16 %v1941
        %v2027 = vunpack.c.l.b16 %v1942
        %v2028 = vunpack.c.l.b16 %v1943
        %v2029 = vunpack.c.h.b16 %v1943
        %v2030 = vunpack.c.l.b16 %v1944
        %v2031 = vunpack.c.l.b16 %v1945
        %v2032 = vunpack.c.h.b16 %v1945
        %v2033 = vunpack.c.l.b16 %v1946
        %v2034 = vunpack.c.l.b16 %v1947
        %v2035 = vunpack.c.h.b16 %v1947
        %v2036 = vunpack.c.l.b16 %v1948
        %v2037 = vunpack.c.l.b16 %v1949
        %v2038 = vunpack.c.h.b16 %v1949
        %v2039 = vunpack.c.l.b16 %v1950
        %v2040 = vunpack.c.l.b16 %v1951
        %v2041 = vunpack.c.h.b16 %v1951
        %v2042 = vunpack.c.l.b16 %v1952
        %v2043 = vunpack.c.l.b16 %v1953
        %v2044 = vunpack.c.h.b16 %v1953
        %v2045 = vunpack.c.l.b16 %v1954
        %v2046 = vunpack.c.l.b16 %v1955
        %v2047 = vunpack.c.h.b16 %v1955
        %v2048 = vunpack.c.l.b16 %v1956
        %v2049 = vunpack.c.l.b16 %v1957
        %v2050 = vunpack.c.h.b16 %v1957
        %v2051 = vunpack.c.l.b16 %v1958
        %v2052 = vunpack.c.l.b16 %v1959
        %v2053 = vunpack.c.h.b16 %v1959
        %v2054 = vunpack.c.l.b16 %v1960
        %v2055 = vunpack.c.l.b16 %v1961
        %v2056 = vunpack.c.h.b16 %v1961
        %v2057 = vunpack.c.l.b16 %v1962
        %v2058 = vunpack.c.l.b16 %v1963
        %v2059 = vunpack.c.h.b16 %v1963
        %v2060 = vunpack.c.l.b16 %v1964
        %v2061 = vunpack.c.l.b16 %v1965
        %v2062 = vunpack.c.h.b16 %v1965
        %v2063 = vunpack.c.l.b16 %v1966
        %v2064 = vunpack.c.l.b16 %v1967
        %v2065 = vunpack.c.h.b16 %v1967
        %v2066 = vunpack.c.l.b16 %v1968
        %v2067 = vpack.c.b16 %v2022, %v2019
        %v2068 = vpack.c.b16 %v2023, %v2020
        %v2069 = vpack.c.b16 %v2024, %v2021
        %v2070 = vpack.c.b16 %v2028, %v2025
        %v2071 = vpack.c.b16 %v2029, %v2026
        %v2072 = vpack.c.b16 %v2030, %v2027
        %v2073 = vpack.c.b16 %v2034, %v2031
        %v2074 = vpack.c.b16 %v2035, %v2032
        %v2075 = vpack.c.b16 %v2036, %v2033
        %v2076 = vpack.c.b16 %v2040, %v2037
        %v2077 = vpack.c.b16 %v2041, %v2038
        %v2078 = vpack.c.b16 %v2042, %v2039
        %v2079 = vpack.c.b16 %v2046, %v2043
        %v2080 = vpack.c.b16 %v2047, %v2044
        %v2081 = vpack.c.b16 %v2048, %v2045
        %v2082 = vpack.c.b16 %v2052, %v2049
        %v2083 = vpack.c.b16 %v2053, %v2050
        %v2084 = vpack.c.b16 %v2054, %v2051
        %v2085 = vpack.c.b16 %v2058, %v2055
        %v2086 = vpack.c.b16 %v2059, %v2056
        %v2087 = vpack.c.b16 %v2060, %v2057
        %v2088 = vpack.c.b16 %v2064, %v2061
        %v2089 = vpack.c.b16 %v2065, %v2062
        %v2090 = vpack.c.b16 %v2066, %v2063
        %2115 = vmatprep.subr.bf16.mxu0 %v2068
        %2116 = vmatpush1.bf16.msra.mxu0 %v2067
        %2117 = vmatprep.subr.bf16.mxu0 %v2071
        %2118 = vmatpush1.bf16.msra.mxu0 %v2070
        %2119 = vmatprep.subr.bf16.mxu0 %v2074
        %2120 = vmatpush1.bf16.msra.mxu0 %v2073
        %2121 = vmatprep.subr.bf16.mxu0 %v2077
        %2122 = vmatpush1.bf16.msra.mxu0 %v2076
        %2123 = vmatprep.subr.bf16.mxu0 %v2080
        %2124 = vmatpush1.bf16.msra.mxu0 %v2079
        %2125 = vmatprep.subr.bf16.mxu0 %v2083
        %2126 = vmatpush1.bf16.msra.mxu0 %v2082
        %2127 = vmatprep.subr.bf16.mxu0 %v2086
        %2128 = vmatpush1.bf16.msra.mxu0 %v2085
        %2129 = vmatprep.subr.bf16.mxu0 %v2089
        %2130 = vmatpush1.bf16.msra.mxu0 %v2088
        %2131 = vmatprep.subr.bf16.mxu0 0
        %2132 = vmatpush1.bf16.msra.mxu0 0
        %2133 = vmatprep.subr.bf16.mxu0 0
        %2134 = vmatpush1.bf16.msra.mxu0 0
        %2135 = vmatprep.subr.bf16.mxu0 0
        %2136 = vmatpush1.bf16.msra.mxu0 0
        %2137 = vmatprep.subr.bf16.mxu0 0
        %2138 = vmatpush1.bf16.msra.mxu0 0
        %2139 = vmatprep.subr.bf16.mxu0 0
        %2140 = vmatpush1.bf16.msra.mxu0 0
        %2141 = vmatprep.subr.bf16.mxu0 0
        %2142 = vmatpush1.bf16.msra.mxu0 0
        %2143 = vmatprep.subr.bf16.mxu0 0
        %2144 = vmatpush1.bf16.msra.mxu0 0
        %2145 = vmatprep.subr.bf16.mxu0 0
        %2146 = vmatpush1.bf16.msra.mxu0 0
        %2147 = vmatprep.mubr.bf16.mxu0 0
        %2148 = vmatmul.mubr.bf16.gmra.mrb[0].mxu0 %v1936
        %v2149 = vpop.f32.mrb[0].mxu0
        %v2150 = vadd.f32 %v1975, %v2149
        %v2151 = vpop.f32.mrb[0].mxu0
        %v2152 = vadd.f32 %v1979, %v2151
        %v2153 = vpop.f32.mrb[0].mxu0
        %v2154 = vpop.f32.mrb[0].mxu0
        %2155 = vdwg.mxu0
        %2156 = vmatprep.subr.bf16.mxu0 0
        %2157 = vmatpush1.bf16.msra.mxu0 %v2069
        %2158 = vmatprep.subr.bf16.mxu0 0
        %2159 = vmatpush1.bf16.msra.mxu0 %v2072
        %2160 = vmatprep.subr.bf16.mxu0 0
        %2161 = vmatpush1.bf16.msra.mxu0 %v2075
        %2162 = vmatprep.subr.bf16.mxu0 0
        %2163 = vmatpush1.bf16.msra.mxu0 %v2078
        %2164 = vmatprep.subr.bf16.mxu0 0
        %2165 = vmatpush1.bf16.msra.mxu0 %v2081
        %2166 = vmatprep.subr.bf16.mxu0 0
        %2167 = vmatpush1.bf16.msra.mxu0 %v2084
        %2168 = vmatprep.subr.bf16.mxu0 0
        %2169 = vmatpush1.bf16.msra.mxu0 %v2087
        %2170 = vmatprep.subr.bf16.mxu0 0
        %2171 = vmatpush1.bf16.msra.mxu0 %v2090
        %2172 = vmatprep.subr.bf16.mxu0 0
        %2173 = vmatpush1.bf16.msra.mxu0 0
        %2174 = vmatprep.subr.bf16.mxu0 0
        %2175 = vmatpush1.bf16.msra.mxu0 0
        %2176 = vmatprep.subr.bf16.mxu0 0
        %2177 = vmatpush1.bf16.msra.mxu0 0
        %2178 = vmatprep.subr.bf16.mxu0 0
        %2179 = vmatpush1.bf16.msra.mxu0 0
        %2180 = vmatprep.subr.bf16.mxu0 0
        %2181 = vmatpush1.bf16.msra.mxu0 0
        %2182 = vmatprep.subr.bf16.mxu0 0
        %2183 = vmatpush1.bf16.msra.mxu0 0
        %2184 = vmatprep.subr.bf16.mxu0 0
        %2185 = vmatpush1.bf16.msra.mxu0 0
        %2186 = vmatprep.subr.bf16.mxu0 0
        %2187 = vmatpush1.bf16.msra.mxu0 0
        %2188 = vmatprep.mubr.bf16.mxu0 0
        %2189 = vmatmul.mubr.bf16.gmra.mrb[0].mxu0 %v1936
        %v2190 = vpop.f32.mrb[0].mxu0
        %v2191 = vadd.f32 %v1983, %v2190
        %v2192 = vpop.f32.mrb[0].mxu0
        %v2193 = vpop.f32.mrb[0].mxu0
        %v2194 = vpop.f32.mrb[0].mxu0
        %2195 = vdwg.mxu0
        %v2196 = vpack.c.bf16 %v2150, %v2150
        %v2197 = vpack.c.bf16 %v2152, %v2152
        %v2198 = vpack.c.bf16 %v2191, %v2191
        %2200 = vrot.lane.b32.xlu0 %v2196, 64
        %v2201 = vpop.permute.xlu0 %2200
        %2203 = vrot.lane.b32.xlu0 %v2197, 64
        %v2204 = vpop.permute.xlu0 %2203
        %2206 = vrot.lane.b32.xlu0 %v2198, 64
        %v2207 = vpop.permute.xlu0 %2206
        %v2209 = vsel %vm913, %v2196, 0
        %v2212 = vsel %vm913, %v2197, 0
        %2214 = vmatprep.subr.bf16.mxu0 0
        %2215 = vmatpush1.bf16.xpose.msra.mxu0 %v2212
        %2216 = vmatprep.subr.bf16.mxu0 0
        %2217 = vmatpush1.bf16.xpose.msra.mxu0 0
        %2218 = vmatprep.subr.bf16.mxu0 0
        %2219 = vmatpush1.bf16.xpose.msra.mxu0 0
        %2220 = vmatprep.subr.bf16.mxu0 0
        %2221 = vmatpush1.bf16.xpose.msra.mxu0 0
        %2222 = vmatprep.subr.bf16.mxu0 0
        %2223 = vmatpush1.bf16.xpose.msra.mxu0 0
        %2224 = vmatprep.subr.bf16.mxu0 0
        %2225 = vmatpush1.bf16.xpose.msra.mxu0 0
        %2226 = vmatprep.subr.bf16.mxu0 0
        %2227 = vmatpush1.bf16.xpose.msra.mxu0 0
        %2228 = vmatprep.subr.bf16.mxu0 0
        %2229 = vmatpush1.bf16.xpose.msra.mxu0 0
        %2230 = vmatprep.subr.bf16.mxu0 0
        %2231 = vmatpush1.bf16.xpose.msra.mxu0 0
        %2232 = vmatprep.subr.bf16.mxu0 0
        %2233 = vmatpush1.bf16.xpose.msra.mxu0 0
        %2234 = vmatprep.subr.bf16.mxu0 0
        %2235 = vmatpush1.bf16.xpose.msra.mxu0 0
        %2236 = vmatprep.subr.bf16.mxu0 0
        %2237 = vmatpush1.bf16.xpose.msra.mxu0 0
        %2238 = vmatprep.subr.bf16.mxu0 0
        %2239 = vmatpush1.bf16.xpose.msra.mxu0 0
        %2240 = vmatprep.subr.bf16.mxu0 0
        %2241 = vmatpush1.bf16.xpose.msra.mxu0 0
        %2242 = vmatprep.subr.bf16.mxu0 0
        %2243 = vmatpush1.bf16.xpose.msra.mxu0 0
        %2244 = vmatprep.subr.bf16.mxu0 0
        %2245 = vmatpush1.bf16.xpose.msra.mxu0 0
        %2246 = vmatprep.mubr.bf16.mxu0 0
        %2247 = vmatmul.mubr.bf16.gmra.mrb[0].mxu0 %v2209
        %v2248 = vpop.f32.mrb[0].mxu0
        %v2249 = vadd.f32 0.0, %v2248
        %v2250 = vpop.f32.mrb[0].mxu0
        %v2251 = vpop.f32.mrb[0].mxu0
        %v2252 = vpop.f32.mrb[0].mxu0
        %2253 = vdwg.mxu0
        %v2255 = vsel %vm913, %v2201, 0
        %v2258 = vsel %vm913, %v2204, 0
        %2260 = vmatprep.subr.bf16.mxu0 0
        %2261 = vmatpush1.bf16.xpose.msra.mxu0 %v2258
        %2262 = vmatprep.subr.bf16.mxu0 0
        %2263 = vmatpush1.bf16.xpose.msra.mxu0 0
        %2264 = vmatprep.subr.bf16.mxu0 0
        %2265 = vmatpush1.bf16.xpose.msra.mxu0 0
        %2266 = vmatprep.subr.bf16.mxu0 0
        %2267 = vmatpush1.bf16.xpose.msra.mxu0 0
        %2268 = vmatprep.subr.bf16.mxu0 0
        %2269 = vmatpush1.bf16.xpose.msra.mxu0 0
        %2270 = vmatprep.subr.bf16.mxu0 0
        %2271 = vmatpush1.bf16.xpose.msra.mxu0 0
        %2272 = vmatprep.subr.bf16.mxu0 0
        %2273 = vmatpush1.bf16.xpose.msra.mxu0 0
        %2274 = vmatprep.subr.bf16.mxu0 0
        %2275 = vmatpush1.bf16.xpose.msra.mxu0 0
        %2276 = vmatprep.subr.bf16.mxu0 0
        %2277 = vmatpush1.bf16.xpose.msra.mxu0 0
        %2278 = vmatprep.subr.bf16.mxu0 0
        %2279 = vmatpush1.bf16.xpose.msra.mxu0 0
        %2280 = vmatprep.subr.bf16.mxu0 0
        %2281 = vmatpush1.bf16.xpose.msra.mxu0 0
        %2282 = vmatprep.subr.bf16.mxu0 0
        %2283 = vmatpush1.bf16.xpose.msra.mxu0 0
        %2284 = vmatprep.subr.bf16.mxu0 0
        %2285 = vmatpush1.bf16.xpose.msra.mxu0 0
        %2286 = vmatprep.subr.bf16.mxu0 0
        %2287 = vmatpush1.bf16.xpose.msra.mxu0 0
        %2288 = vmatprep.subr.bf16.mxu0 0
        %2289 = vmatpush1.bf16.xpose.msra.mxu0 0
        %2290 = vmatprep.subr.bf16.mxu0 0
        %2291 = vmatpush1.bf16.xpose.msra.mxu0 0
        %2292 = vmatprep.mubr.bf16.mxu0 0
        %2293 = vmatmul.mubr.bf16.gmra.mrb[0].mxu0 %v2255
        %v2294 = vpop.f32.mrb[0].mxu0
        %v2295 = vadd.f32 0.0, %v2294
        %v2296 = vpop.f32.mrb[0].mxu0
        %v2297 = vpop.f32.mrb[0].mxu0
        %v2298 = vpop.f32.mrb[0].mxu0
        %2299 = vdwg.mxu0
        %v2300 = vmul.f32 %v2249, 0.125
        %v2301 = vmul.f32 %v2295, 0.125
        %v2302 = vadd.f32 %v2300, %v1012
        %v2303 = vadd.f32 %v2301, %v1012
        %v2304 = vsel %vm1016, %v2302, -inf
        %2305 = vmax.xlane.f32.xlu0 %v2304
        %v2306 = vpop.xlane.xlu0 %2305
        %v2307 = vsel %vm1016, %v2303, -inf
        %2308 = vmax.xlane.f32.xlu0 %v2307
        %v2309 = vpop.xlane.xlu0 %2308
        %v2310 = vsub.f32 %v2302, %v2306
        %v2311 = vsub.f32 %v2303, %v2309
        %v2312 = vmul.f32 %v2310, 1.442695
        %v2313 = vpow.pop %v2312
        %v2314 = vmul.f32 %v2311, 1.442695
        %v2315 = vpow.pop %v2314
        %v2316 = vsel %vm1016, %v2313, 0.0
        %2317 = vadd.xlane.f32.xlu0 %v2316
        %v2318 = vpop.xlane.xlu0 %2317
        %v2319 = vsel %vm1016, %v2315, 0.0
        %2320 = vadd.xlane.f32.xlu0 %v2319
        %v2321 = vpop.xlane.xlu0 %2320
        %v2322 = vrcp.pop %v2318
        %v2323 = vmul.f32 %v2313, %v2322
        %v2324 = vrcp.pop %v2321
        %v2325 = vmul.f32 %v2315, %v2324
        %v2326 = vpack.c.bf16 %v2323, %v2323
        %v2327 = vpack.c.bf16 %v2325, %v2325
        %v2329 = vsel %vm1016, %v2326, 0
        %v2332 = vsel %vm1044, %v2198, 0
        %2334 = vmatprep.subr.bf16.mxu0 0
        %2335 = vmatpush1.bf16.msra.mxu0 %v2332
        %2336 = vmatprep.subr.bf16.mxu0 0
        %2337 = vmatpush1.bf16.msra.mxu0 0
        %2338 = vmatprep.subr.bf16.mxu0 0
        %2339 = vmatpush1.bf16.msra.mxu0 0
        %2340 = vmatprep.subr.bf16.mxu0 0
        %2341 = vmatpush1.bf16.msra.mxu0 0
        %2342 = vmatprep.subr.bf16.mxu0 0
        %2343 = vmatpush1.bf16.msra.mxu0 0
        %2344 = vmatprep.subr.bf16.mxu0 0
        %2345 = vmatpush1.bf16.msra.mxu0 0
        %2346 = vmatprep.subr.bf16.mxu0 0
        %2347 = vmatpush1.bf16.msra.mxu0 0
        %2348 = vmatprep.subr.bf16.mxu0 0
        %2349 = vmatpush1.bf16.msra.mxu0 0
        %2350 = vmatprep.subr.bf16.mxu0 0
        %2351 = vmatpush1.bf16.msra.mxu0 0
        %2352 = vmatprep.subr.bf16.mxu0 0
        %2353 = vmatpush1.bf16.msra.mxu0 0
        %2354 = vmatprep.subr.bf16.mxu0 0
        %2355 = vmatpush1.bf16.msra.mxu0 0
        %2356 = vmatprep.subr.bf16.mxu0 0
        %2357 = vmatpush1.bf16.msra.mxu0 0
        %2358 = vmatprep.subr.bf16.mxu0 0
        %2359 = vmatpush1.bf16.msra.mxu0 0
        %2360 = vmatprep.subr.bf16.mxu0 0
        %2361 = vmatpush1.bf16.msra.mxu0 0
        %2362 = vmatprep.subr.bf16.mxu0 0
        %2363 = vmatpush1.bf16.msra.mxu0 0
        %2364 = vmatprep.subr.bf16.mxu0 0
        %2365 = vmatpush1.bf16.msra.mxu0 0
        %2366 = vmatprep.mubr.bf16.mxu0 0
        %2367 = vmatmul.mubr.bf16.gmra.mrb[0].mxu0 %v2329
        %v2368 = vpop.f32.mrb[0].mxu0
        %v2369 = vadd.f32 0.0, %v2368
        %v2370 = vpop.f32.mrb[0].mxu0
        %v2371 = vpop.f32.mrb[0].mxu0
        %v2372 = vpop.f32.mrb[0].mxu0
        %2373 = vdwg.mxu0
        %v2375 = vsel %vm1016, %v2327, 0
        %v2378 = vsel %vm1044, %v2207, 0
        %2380 = vmatprep.subr.bf16.mxu0 0
        %2381 = vmatpush1.bf16.msra.mxu0 %v2378
        %2382 = vmatprep.subr.bf16.mxu0 0
        %2383 = vmatpush1.bf16.msra.mxu0 0
        %2384 = vmatprep.subr.bf16.mxu0 0
        %2385 = vmatpush1.bf16.msra.mxu0 0
        %2386 = vmatprep.subr.bf16.mxu0 0
        %2387 = vmatpush1.bf16.msra.mxu0 0
        %2388 = vmatprep.subr.bf16.mxu0 0
        %2389 = vmatpush1.bf16.msra.mxu0 0
        %2390 = vmatprep.subr.bf16.mxu0 0
        %2391 = vmatpush1.bf16.msra.mxu0 0
        %2392 = vmatprep.subr.bf16.mxu0 0
        %2393 = vmatpush1.bf16.msra.mxu0 0
        %2394 = vmatprep.subr.bf16.mxu0 0
        %2395 = vmatpush1.bf16.msra.mxu0 0
        %2396 = vmatprep.subr.bf16.mxu0 0
        %2397 = vmatpush1.bf16.msra.mxu0 0
        %2398 = vmatprep.subr.bf16.mxu0 0
        %2399 = vmatpush1.bf16.msra.mxu0 0
        %2400 = vmatprep.subr.bf16.mxu0 0
        %2401 = vmatpush1.bf16.msra.mxu0 0
        %2402 = vmatprep.subr.bf16.mxu0 0
        %2403 = vmatpush1.bf16.msra.mxu0 0
        %2404 = vmatprep.subr.bf16.mxu0 0
        %2405 = vmatpush1.bf16.msra.mxu0 0
        %2406 = vmatprep.subr.bf16.mxu0 0
        %2407 = vmatpush1.bf16.msra.mxu0 0
        %2408 = vmatprep.subr.bf16.mxu0 0
        %2409 = vmatpush1.bf16.msra.mxu0 0
        %2410 = vmatprep.subr.bf16.mxu0 0
        %2411 = vmatpush1.bf16.msra.mxu0 0
        %2412 = vmatprep.mubr.bf16.mxu0 0
        %2413 = vmatmul.mubr.bf16.gmra.mrb[0].mxu0 %v2375
        %v2414 = vpop.f32.mrb[0].mxu0
        %v2415 = vadd.f32 0.0, %v2414
        %v2416 = vpop.f32.mrb[0].mxu0
        %v2417 = vpop.f32.mrb[0].mxu0
        %v2418 = vpop.f32.mrb[0].mxu0
        %2419 = vdwg.mxu0
        %2421 = vrot.lane.b32.xlu0 %v2415, 64
        %v2422 = vpop.permute.xlu0 %2421
        %v2424 = vsel %vm913, %v2369, %v2422
        %v2425 = vpack.c.bf16 %v2424, %v2424
        %v2426 = vld [vmem:[#allocation13] sm:$0xf]
        %v2427 = vld [vmem:[#allocation13 + $0x4] sm:$0xf]
        %v2428 = vld [vmem:[#allocation13 + $0x8] sm:$0xf]
        %v2429 = vld [vmem:[#allocation13 + $0xc] sm:$0xf]
        %v2430 = vld [vmem:[#allocation13 + $0x10] sm:$0xf]
        %v2431 = vld [vmem:[#allocation13 + $0x14] sm:$0xf]
        %v2432 = vld [vmem:[#allocation13 + $0x18] sm:$0xf]
        %v2433 = vld [vmem:[#allocation13 + $0x1c] sm:$0xf]
        %v2434 = vld [vmem:[#allocation13 + $0x20] sm:$0xf]
        %v2435 = vld [vmem:[#allocation13 + $0x24] sm:$0xf]
        %v2436 = vld [vmem:[#allocation13 + $0x28] sm:$0xf]
        %v2437 = vld [vmem:[#allocation13 + $0x2c] sm:$0xf]
        %v2438 = vld [vmem:[#allocation13 + $0x30] sm:$0xf]
        %v2439 = vld [vmem:[#allocation13 + $0x34] sm:$0xf]
        %v2440 = vld [vmem:[#allocation13 + $0x38] sm:$0xf]
        %v2441 = vld [vmem:[#allocation13 + $0x3c] sm:$0xf]
        %v2442 = vld [vmem:[#allocation5 + $0x23] ss:$0 sm:$0xff]
        %v2459 = vunpack.c.l.b16 %v2426
        %v2460 = vunpack.c.l.b16 %v2427
        %v2461 = vunpack.c.l.b16 %v2428
        %v2462 = vunpack.c.l.b16 %v2429
        %v2463 = vunpack.c.l.b16 %v2430
        %v2464 = vunpack.c.l.b16 %v2431
        %v2465 = vunpack.c.l.b16 %v2432
        %v2466 = vunpack.c.l.b16 %v2433
        %v2467 = vunpack.c.l.b16 %v2434
        %v2468 = vunpack.c.l.b16 %v2435
        %v2469 = vunpack.c.l.b16 %v2436
        %v2470 = vunpack.c.l.b16 %v2437
        %v2471 = vunpack.c.l.b16 %v2438
        %v2472 = vunpack.c.l.b16 %v2439
        %v2473 = vunpack.c.l.b16 %v2440
        %v2474 = vunpack.c.l.b16 %v2441
        %v2475 = vpack.c.b16 %v2460, %v2459
        %v2476 = vpack.c.b16 %v2462, %v2461
        %v2477 = vpack.c.b16 %v2464, %v2463
        %v2478 = vpack.c.b16 %v2466, %v2465
        %v2479 = vpack.c.b16 %v2468, %v2467
        %v2480 = vpack.c.b16 %v2470, %v2469
        %v2481 = vpack.c.b16 %v2472, %v2471
        %v2482 = vpack.c.b16 %v2474, %v2473
        %2491 = vmatprep.subr.bf16.mxu0 0
        %2492 = vmatpush1.bf16.msra.mxu0 %v2475
        %2493 = vmatprep.subr.bf16.mxu0 0
        %2494 = vmatpush1.bf16.msra.mxu0 %v2476
        %2495 = vmatprep.subr.bf16.mxu0 0
        %2496 = vmatpush1.bf16.msra.mxu0 %v2477
        %2497 = vmatprep.subr.bf16.mxu0 0
        %2498 = vmatpush1.bf16.msra.mxu0 %v2478
        %2499 = vmatprep.subr.bf16.mxu0 0
        %2500 = vmatpush1.bf16.msra.mxu0 %v2479
        %2501 = vmatprep.subr.bf16.mxu0 0
        %2502 = vmatpush1.bf16.msra.mxu0 %v2480
        %2503 = vmatprep.subr.bf16.mxu0 0
        %2504 = vmatpush1.bf16.msra.mxu0 %v2481
        %2505 = vmatprep.subr.bf16.mxu0 0
        %2506 = vmatpush1.bf16.msra.mxu0 %v2482
        %2507 = vmatprep.subr.bf16.mxu0 0
        %2508 = vmatpush1.bf16.msra.mxu0 0
        %2509 = vmatprep.subr.bf16.mxu0 0
        %2510 = vmatpush1.bf16.msra.mxu0 0
        %2511 = vmatprep.subr.bf16.mxu0 0
        %2512 = vmatpush1.bf16.msra.mxu0 0
        %2513 = vmatprep.subr.bf16.mxu0 0
        %2514 = vmatpush1.bf16.msra.mxu0 0
        %2515 = vmatprep.subr.bf16.mxu0 0
        %2516 = vmatpush1.bf16.msra.mxu0 0
        %2517 = vmatprep.subr.bf16.mxu0 0
        %2518 = vmatpush1.bf16.msra.mxu0 0
        %2519 = vmatprep.subr.bf16.mxu0 0
        %2520 = vmatpush1.bf16.msra.mxu0 0
        %2521 = vmatprep.subr.bf16.mxu0 0
        %2522 = vmatpush1.bf16.msra.mxu0 0
        %2523 = vmatprep.mubr.bf16.mxu0 0
        %2524 = vmatmul.mubr.bf16.gmra.mrb[0].mxu0 %v2425
        %v2525 = vpop.f32.mrb[0].mxu0
        %v2526 = vadd.f32 %v2442, %v2525
        %v2527 = vpop.f32.mrb[0].mxu0
        %v2528 = vpop.f32.mrb[0].mxu0
        %v2529 = vpop.f32.mrb[0].mxu0
        %2530 = vdwg.mxu0
        %v2531 = vadd.f32 %v2526, %v1935
        %v2532 = vld [vmem:[#allocation5 + $0x24] ss:$0 sm:$0xff]
        %v2533 = vld [vmem:[#allocation5 + $0x25] ss:$0 sm:$0xff]
        %2534 = vadd.xlane.f32.xlu0 %v2531
        %v2535 = vpop.xlane.xlu0 %2534
        %v2536 = vmul.f32 %v2535, %v629
        %v2537 = vsub.f32 %v2531, %v2536
        %v2538 = vmul.f32 %v2537, %v2537
        %2539 = vadd.xlane.f32.xlu0 %v2538
        %v2540 = vpop.xlane.xlu0 %2539
        %v2541 = vmul.f32 %v2540, %v629
        %v2542 = vadd.f32 %v2541, 1e-12
        %v2543 = vrsqrt.pop %v2542
        %v2544 = vmul.f32 %v2537, %v2543
        %v2545 = vmul.f32 %v2544, %v2532
        %v2546 = vadd.f32 %v2545, %v2533
        %v2547 = vpack.c.bf16 %v2546, %v2546
        %v2548 = vld [vmem:[#allocation14] sm:$0xff]
        %v2549 = vld [vmem:[#allocation14 + $0x8] sm:$0xff]
        %v2550 = vld [vmem:[#allocation14 + $0x10] sm:$0xff]
        %v2551 = vld [vmem:[#allocation14 + $0x18] sm:$0xff]
        %v2552 = vld [vmem:[#allocation14 + $0x20] sm:$0xff]
        %v2553 = vld [vmem:[#allocation14 + $0x28] sm:$0xff]
        %v2554 = vld [vmem:[#allocation14 + $0x30] sm:$0xff]
        %v2555 = vld [vmem:[#allocation14 + $0x38] sm:$0xff]
        %v2556 = vld [vmem:[#allocation14 + $0x40] sm:$0xff]
        %v2557 = vld [vmem:[#allocation14 + $0x48] sm:$0xff]
        %v2558 = vld [vmem:[#allocation14 + $0x50] sm:$0xff]
        %v2559 = vld [vmem:[#allocation14 + $0x58] sm:$0xff]
        %v2560 = vld [vmem:[#allocation14 + $0x60] sm:$0xff]
        %v2561 = vld [vmem:[#allocation14 + $0x68] sm:$0xff]
        %v2562 = vld [vmem:[#allocation14 + $0x70] sm:$0xff]
        %v2563 = vld [vmem:[#allocation14 + $0x78] sm:$0xff]
        %v2564 = vld [vmem:[#allocation14 + $0x80] sm:$0xff]
        %v2565 = vld [vmem:[#allocation14 + $0x88] sm:$0xff]
        %v2566 = vld [vmem:[#allocation14 + $0x90] sm:$0xff]
        %v2567 = vld [vmem:[#allocation14 + $0x98] sm:$0xff]
        %v2568 = vld [vmem:[#allocation14 + $0xa0] sm:$0xff]
        %v2569 = vld [vmem:[#allocation14 + $0xa8] sm:$0xff]
        %v2570 = vld [vmem:[#allocation14 + $0xb0] sm:$0xff]
        %v2571 = vld [vmem:[#allocation14 + $0xb8] sm:$0xff]
        %v2572 = vld [vmem:[#allocation14 + $0xc0] sm:$0xff]
        %v2573 = vld [vmem:[#allocation14 + $0xc8] sm:$0xff]
        %v2574 = vld [vmem:[#allocation14 + $0xd0] sm:$0xff]
        %v2575 = vld [vmem:[#allocation14 + $0xd8] sm:$0xff]
        %v2576 = vld [vmem:[#allocation14 + $0xe0] sm:$0xff]
        %v2577 = vld [vmem:[#allocation14 + $0xe8] sm:$0xff]
        %v2578 = vld [vmem:[#allocation14 + $0xf0] sm:$0xff]
        %v2579 = vld [vmem:[#allocation14 + $0xf8] sm:$0xff]
        %s2580 = scalar_lea.vmem [#allocation5], 38
        %v2581 = vld [vmem:[%s2580] ss:$8 sm:$0xf]
        %v2583 = vlaneseq
        %v2584 = vshrl.u32 %v2583, 7
        %v2585 = vsub.s32 0, %v2584
        %v2586 = vrot.slane %v2581, %v2585
        %v2587 = vlaneseq
        %v2588 = vshrl.u32 %v2587, 7
        %v2589 = vsub.s32 1, %v2588
        %v2590 = vrot.slane %v2581, %v2589
        %v2591 = vlaneseq
        %v2592 = vshrl.u32 %v2591, 7
        %v2593 = vsub.s32 2, %v2592
        %v2594 = vrot.slane %v2581, %v2593
        %v2595 = vlaneseq
        %v2596 = vshrl.u32 %v2595, 7
        %v2597 = vsub.s32 3, %v2596
        %v2598 = vrot.slane %v2581, %v2597
        %v2635 = vunpack.c.l.b16 %v2548
        %v2636 = vunpack.c.h.b16 %v2548
        %v2637 = vunpack.c.l.b16 %v2549
        %v2638 = vunpack.c.h.b16 %v2549
        %v2639 = vunpack.c.l.b16 %v2550
        %v2640 = vunpack.c.h.b16 %v2550
        %v2641 = vunpack.c.l.b16 %v2551
        %v2642 = vunpack.c.h.b16 %v2551
        %v2643 = vunpack.c.l.b16 %v2552
        %v2644 = vunpack.c.h.b16 %v2552
        %v2645 = vunpack.c.l.b16 %v2553
        %v2646 = vunpack.c.h.b16 %v2553
        %v2647 = vunpack.c.l.b16 %v2554
        %v2648 = vunpack.c.h.b16 %v2554
        %v2649 = vunpack.c.l.b16 %v2555
        %v2650 = vunpack.c.h.b16 %v2555
        %v2651 = vunpack.c.l.b16 %v2556
        %v2652 = vunpack.c.h.b16 %v2556
        %v2653 = vunpack.c.l.b16 %v2557
        %v2654 = vunpack.c.h.b16 %v2557
        %v2655 = vunpack.c.l.b16 %v2558
        %v2656 = vunpack.c.h.b16 %v2558
        %v2657 = vunpack.c.l.b16 %v2559
        %v2658 = vunpack.c.h.b16 %v2559
        %v2659 = vunpack.c.l.b16 %v2560
        %v2660 = vunpack.c.h.b16 %v2560
        %v2661 = vunpack.c.l.b16 %v2561
        %v2662 = vunpack.c.h.b16 %v2561
        %v2663 = vunpack.c.l.b16 %v2562
        %v2664 = vunpack.c.h.b16 %v2562
        %v2665 = vunpack.c.l.b16 %v2563
        %v2666 = vunpack.c.h.b16 %v2563
        %v2667 = vunpack.c.l.b16 %v2564
        %v2668 = vunpack.c.h.b16 %v2564
        %v2669 = vunpack.c.l.b16 %v2565
        %v2670 = vunpack.c.h.b16 %v2565
        %v2671 = vunpack.c.l.b16 %v2566
        %v2672 = vunpack.c.h.b16 %v2566
        %v2673 = vunpack.c.l.b16 %v2567
        %v2674 = vunpack.c.h.b16 %v2567
        %v2675 = vunpack.c.l.b16 %v2568
        %v2676 = vunpack.c.h.b16 %v2568
        %v2677 = vunpack.c.l.b16 %v2569
        %v2678 = vunpack.c.h.b16 %v2569
        %v2679 = vunpack.c.l.b16 %v2570
        %v2680 = vunpack.c.h.b16 %v2570
        %v2681 = vunpack.c.l.b16 %v2571
        %v2682 = vunpack.c.h.b16 %v2571
        %v2683 = vunpack.c.l.b16 %v2572
        %v2684 = vunpack.c.h.b16 %v2572
        %v2685 = vunpack.c.l.b16 %v2573
        %v2686 = vunpack.c.h.b16 %v2573
        %v2687 = vunpack.c.l.b16 %v2574
        %v2688 = vunpack.c.h.b16 %v2574
        %v2689 = vunpack.c.l.b16 %v2575
        %v2690 = vunpack.c.h.b16 %v2575
        %v2691 = vunpack.c.l.b16 %v2576
        %v2692 = vunpack.c.h.b16 %v2576
        %v2693 = vunpack.c.l.b16 %v2577
        %v2694 = vunpack.c.h.b16 %v2577
        %v2695 = vunpack.c.l.b16 %v2578
        %v2696 = vunpack.c.h.b16 %v2578
        %v2697 = vunpack.c.l.b16 %v2579
        %v2698 = vunpack.c.h.b16 %v2579
        %v2699 = vpack.c.b16 %v2639, %v2635
        %v2700 = vpack.c.b16 %v2640, %v2636
        %v2701 = vpack.c.b16 %v2641, %v2637
        %v2702 = vpack.c.b16 %v2642, %v2638
        %v2703 = vpack.c.b16 %v2647, %v2643
        %v2704 = vpack.c.b16 %v2648, %v2644
        %v2705 = vpack.c.b16 %v2649, %v2645
        %v2706 = vpack.c.b16 %v2650, %v2646
        %v2707 = vpack.c.b16 %v2655, %v2651
        %v2708 = vpack.c.b16 %v2656, %v2652
        %v2709 = vpack.c.b16 %v2657, %v2653
        %v2710 = vpack.c.b16 %v2658, %v2654
        %v2711 = vpack.c.b16 %v2663, %v2659
        %v2712 = vpack.c.b16 %v2664, %v2660
        %v2713 = vpack.c.b16 %v2665, %v2661
        %v2714 = vpack.c.b16 %v2666, %v2662
        %v2715 = vpack.c.b16 %v2671, %v2667
        %v2716 = vpack.c.b16 %v2672, %v2668
        %v2717 = vpack.c.b16 %v2673, %v2669
        %v2718 = vpack.c.b16 %v2674, %v2670
        %v2719 = vpack.c.b16 %v2679, %v2675
        %v2720 = vpack.c.b16 %v2680, %v2676
        %v2721 = vpack.c.b16 %v2681, %v2677
        %v2722 = vpack.c.b16 %v2682, %v2678
        %v2723 = vpack.c.b16 %v2687, %v2683
        %v2724 = vpack.c.b16 %v2688, %v2684
        %v2725 = vpack.c.b16 %v2689, %v2685
        %v2726 = vpack.c.b16 %v2690, %v2686
        %v2727 = vpack.c.b16 %v2695, %v2691
        %v2728 = vpack.c.b16 %v2696, %v2692
        %v2729 = vpack.c.b16 %v2697, %v2693
        %v2730 = vpack.c.b16 %v2698, %v2694
        %2763 = vmatprep.subr.bf16.mxu0 %v2700
        %2764 = vmatpush1.bf16.msra.mxu0 %v2699
        %2765 = vmatprep.subr.bf16.mxu0 %v2704
        %2766 = vmatpush1.bf16.msra.mxu0 %v2703
        %2767 = vmatprep.subr.bf16.mxu0 %v2708
        %2768 = vmatpush1.bf16.msra.mxu0 %v2707
        %2769 = vmatprep.subr.bf16.mxu0 %v2712
        %2770 = vmatpush1.bf16.msra.mxu0 %v2711
        %2771 = vmatprep.subr.bf16.mxu0 %v2716
        %2772 = vmatpush1.bf16.msra.mxu0 %v2715
        %2773 = vmatprep.subr.bf16.mxu0 %v2720
        %2774 = vmatpush1.bf16.msra.mxu0 %v2719
        %2775 = vmatprep.subr.bf16.mxu0 %v2724
        %2776 = vmatpush1.bf16.msra.mxu0 %v2723
        %2777 = vmatprep.subr.bf16.mxu0 %v2728
        %2778 = vmatpush1.bf16.msra.mxu0 %v2727
        %2779 = vmatprep.subr.bf16.mxu0 0
        %2780 = vmatpush1.bf16.msra.mxu0 0
        %2781 = vmatprep.subr.bf16.mxu0 0
        %2782 = vmatpush1.bf16.msra.mxu0 0
        %2783 = vmatprep.subr.bf16.mxu0 0
        %2784 = vmatpush1.bf16.msra.mxu0 0
        %2785 = vmatprep.subr.bf16.mxu0 0
        %2786 = vmatpush1.bf16.msra.mxu0 0
        %2787 = vmatprep.subr.bf16.mxu0 0
        %2788 = vmatpush1.bf16.msra.mxu0 0
        %2789 = vmatprep.subr.bf16.mxu0 0
        %2790 = vmatpush1.bf16.msra.mxu0 0
        %2791 = vmatprep.subr.bf16.mxu0 0
        %2792 = vmatpush1.bf16.msra.mxu0 0
        %2793 = vmatprep.subr.bf16.mxu0 0
        %2794 = vmatpush1.bf16.msra.mxu0 0
        %2795 = vmatprep.mubr.bf16.mxu0 0
        %2796 = vmatmul.mubr.bf16.gmra.mrb[0].mxu0 %v2547
        %v2797 = vpop.f32.mrb[0].mxu0
        %v2798 = vadd.f32 %v2586, %v2797
        %v2799 = vpop.f32.mrb[0].mxu0
        %v2800 = vadd.f32 %v2590, %v2799
        %v2801 = vpop.f32.mrb[0].mxu0
        %v2802 = vpop.f32.mrb[0].mxu0
        %2803 = vdwg.mxu0
        %2804 = vmatprep.subr.bf16.mxu0 %v2702
        %2805 = vmatpush1.bf16.msra.mxu0 %v2701
        %2806 = vmatprep.subr.bf16.mxu0 %v2706
        %2807 = vmatpush1.bf16.msra.mxu0 %v2705
        %2808 = vmatprep.subr.bf16.mxu0 %v2710
        %2809 = vmatpush1.bf16.msra.mxu0 %v2709
        %2810 = vmatprep.subr.bf16.mxu0 %v2714
        %2811 = vmatpush1.bf16.msra.mxu0 %v2713
        %2812 = vmatprep.subr.bf16.mxu0 %v2718
        %2813 = vmatpush1.bf16.msra.mxu0 %v2717
        %2814 = vmatprep.subr.bf16.mxu0 %v2722
        %2815 = vmatpush1.bf16.msra.mxu0 %v2721
        %2816 = vmatprep.subr.bf16.mxu0 %v2726
        %2817 = vmatpush1.bf16.msra.mxu0 %v2725
        %2818 = vmatprep.subr.bf16.mxu0 %v2730
        %2819 = vmatpush1.bf16.msra.mxu0 %v2729
        %2820 = vmatprep.subr.bf16.mxu0 0
        %2821 = vmatpush1.bf16.msra.mxu0 0
        %2822 = vmatprep.subr.bf16.mxu0 0
        %2823 = vmatpush1.bf16.msra.mxu0 0
        %2824 = vmatprep.subr.bf16.mxu0 0
        %2825 = vmatpush1.bf16.msra.mxu0 0
        %2826 = vmatprep.subr.bf16.mxu0 0
        %2827 = vmatpush1.bf16.msra.mxu0 0
        %2828 = vmatprep.subr.bf16.mxu0 0
        %2829 = vmatpush1.bf16.msra.mxu0 0
        %2830 = vmatprep.subr.bf16.mxu0 0
        %2831 = vmatpush1.bf16.msra.mxu0 0
        %2832 = vmatprep.subr.bf16.mxu0 0
        %2833 = vmatpush1.bf16.msra.mxu0 0
        %2834 = vmatprep.subr.bf16.mxu0 0
        %2835 = vmatpush1.bf16.msra.mxu0 0
        %2836 = vmatprep.mubr.bf16.mxu0 0
        %2837 = vmatmul.mubr.bf16.gmra.mrb[0].mxu0 %v2547
        %v2838 = vpop.f32.mrb[0].mxu0
        %v2839 = vadd.f32 %v2594, %v2838
        %v2840 = vpop.f32.mrb[0].mxu0
        %v2841 = vadd.f32 %v2598, %v2840
        %v2842 = vpop.f32.mrb[0].mxu0
        %v2843 = vpop.f32.mrb[0].mxu0
        %2844 = vdwg.mxu0
        %v2845 = vmul.f32 %v2798, 0.5
        %v2846 = vmul.f32 %v2800, 0.5
        %v2847 = vmul.f32 %v2839, 0.5
        %v2848 = vmul.f32 %v2841, 0.5
        %v2849 = vmul.f32 %v2798, 0.70710677
        %v2850 = vmul.f32 %v2800, 0.70710677
        %v2851 = vmul.f32 %v2839, 0.70710677
        %v2852 = vmul.f32 %v2841, 0.70710677
        %v2853 = verf.f32.pop %v2849
        %v2854 = verf.f32.pop %v2850
        %v2855 = verf.f32.pop %v2851
        %v2856 = verf.f32.pop %v2852
        %v2857 = vadd.f32 %v2853, 1.0
        %v2858 = vadd.f32 %v2854, 1.0
        %v2859 = vadd.f32 %v2855, 1.0
        %v2860 = vadd.f32 %v2856, 1.0
        %v2861 = vmul.f32 %v2845, %v2857
        %v2862 = vmul.f32 %v2846, %v2858
        %v2863 = vmul.f32 %v2847, %v2859
        %v2864 = vmul.f32 %v2848, %v2860
        %v2865 = vpack.c.bf16 %v2861, %v2861
        %v2866 = vpack.c.bf16 %v2862, %v2862
        %v2867 = vpack.c.bf16 %v2863, %v2863
        %v2868 = vpack.c.bf16 %v2864, %v2864
        %v2869 = vld [vmem:[#allocation16] sm:$0xf]
        %v2870 = vld [vmem:[#allocation16 + $0x4] sm:$0xf]
        %v2871 = vld [vmem:[#allocation16 + $0x8] sm:$0xf]
        %v2872 = vld [vmem:[#allocation16 + $0xc] sm:$0xf]
        %v2873 = vld [vmem:[#allocation16 + $0x10] sm:$0xf]
        %v2874 = vld [vmem:[#allocation16 + $0x14] sm:$0xf]
        %v2875 = vld [vmem:[#allocation16 + $0x18] sm:$0xf]
        %v2876 = vld [vmem:[#allocation16 + $0x1c] sm:$0xf]
        %v2877 = vld [vmem:[#allocation16 + $0x20] sm:$0xf]
        %v2878 = vld [vmem:[#allocation16 + $0x24] sm:$0xf]
        %v2879 = vld [vmem:[#allocation16 + $0x28] sm:$0xf]
        %v2880 = vld [vmem:[#allocation16 + $0x2c] sm:$0xf]
        %v2881 = vld [vmem:[#allocation16 + $0x30] sm:$0xf]
        %v2882 = vld [vmem:[#allocation16 + $0x34] sm:$0xf]
        %v2883 = vld [vmem:[#allocation16 + $0x38] sm:$0xf]
        %v2884 = vld [vmem:[#allocation16 + $0x3c] sm:$0xf]
        %v2885 = vld [vmem:[#allocation16 + $0x40] sm:$0xf]
        %v2886 = vld [vmem:[#allocation16 + $0x44] sm:$0xf]
        %v2887 = vld [vmem:[#allocation16 + $0x48] sm:$0xf]
        %v2888 = vld [vmem:[#allocation16 + $0x4c] sm:$0xf]
        %v2889 = vld [vmem:[#allocation16 + $0x50] sm:$0xf]
        %v2890 = vld [vmem:[#allocation16 + $0x54] sm:$0xf]
        %v2891 = vld [vmem:[#allocation16 + $0x58] sm:$0xf]
        %v2892 = vld [vmem:[#allocation16 + $0x5c] sm:$0xf]
        %v2893 = vld [vmem:[#allocation16 + $0x60] sm:$0xf]
        %v2894 = vld [vmem:[#allocation16 + $0x64] sm:$0xf]
        %v2895 = vld [vmem:[#allocation16 + $0x68] sm:$0xf]
        %v2896 = vld [vmem:[#allocation16 + $0x6c] sm:$0xf]
        %v2897 = vld [vmem:[#allocation16 + $0x70] sm:$0xf]
        %v2898 = vld [vmem:[#allocation16 + $0x74] sm:$0xf]
        %v2899 = vld [vmem:[#allocation16 + $0x78] sm:$0xf]
        %v2900 = vld [vmem:[#allocation16 + $0x7c] sm:$0xf]
        %v2901 = vld [vmem:[#allocation16 + $0x80] sm:$0xf]
        %v2902 = vld [vmem:[#allocation16 + $0x84] sm:$0xf]
        %v2903 = vld [vmem:[#allocation16 + $0x88] sm:$0xf]
        %v2904 = vld [vmem:[#allocation16 + $0x8c] sm:$0xf]
        %v2905 = vld [vmem:[#allocation16 + $0x90] sm:$0xf]
        %v2906 = vld [vmem:[#allocation16 + $0x94] sm:$0xf]
        %v2907 = vld [vmem:[#allocation16 + $0x98] sm:$0xf]
        %v2908 = vld [vmem:[#allocation16 + $0x9c] sm:$0xf]
        %v2909 = vld [vmem:[#allocation16 + $0xa0] sm:$0xf]
        %v2910 = vld [vmem:[#allocation16 + $0xa4] sm:$0xf]
        %v2911 = vld [vmem:[#allocation16 + $0xa8] sm:$0xf]
        %v2912 = vld [vmem:[#allocation16 + $0xac] sm:$0xf]
        %v2913 = vld [vmem:[#allocation16 + $0xb0] sm:$0xf]
        %v2914 = vld [vmem:[#allocation16 + $0xb4] sm:$0xf]
        %v2915 = vld [vmem:[#allocation16 + $0xb8] sm:$0xf]
        %v2916 = vld [vmem:[#allocation16 + $0xbc] sm:$0xf]
        %v2917 = vld [vmem:[#allocation16 + $0xc0] sm:$0xf]
        %v2918 = vld [vmem:[#allocation16 + $0xc4] sm:$0xf]
        %v2919 = vld [vmem:[#allocation16 + $0xc8] sm:$0xf]
        %v2920 = vld [vmem:[#allocation16 + $0xcc] sm:$0xf]
        %v2921 = vld [vmem:[#allocation16 + $0xd0] sm:$0xf]
        %v2922 = vld [vmem:[#allocation16 + $0xd4] sm:$0xf]
        %v2923 = vld [vmem:[#allocation16 + $0xd8] sm:$0xf]
        %v2924 = vld [vmem:[#allocation16 + $0xdc] sm:$0xf]
        %v2925 = vld [vmem:[#allocation16 + $0xe0] sm:$0xf]
        %v2926 = vld [vmem:[#allocation16 + $0xe4] sm:$0xf]
        %v2927 = vld [vmem:[#allocation16 + $0xe8] sm:$0xf]
        %v2928 = vld [vmem:[#allocation16 + $0xec] sm:$0xf]
        %v2929 = vld [vmem:[#allocation16 + $0xf0] sm:$0xf]
        %v2930 = vld [vmem:[#allocation16 + $0xf4] sm:$0xf]
        %v2931 = vld [vmem:[#allocation16 + $0xf8] sm:$0xf]
        %v2932 = vld [vmem:[#allocation16 + $0xfc] sm:$0xf]
        %v2933 = vld [vmem:[#allocation5 + $0x27] ss:$0 sm:$0xff]
        %v2998 = vunpack.c.l.b16 %v2869
        %v2999 = vunpack.c.l.b16 %v2870
        %v3000 = vunpack.c.l.b16 %v2871
        %v3001 = vunpack.c.l.b16 %v2872
        %v3002 = vunpack.c.l.b16 %v2873
        %v3003 = vunpack.c.l.b16 %v2874
        %v3004 = vunpack.c.l.b16 %v2875
        %v3005 = vunpack.c.l.b16 %v2876
        %v3006 = vunpack.c.l.b16 %v2877
        %v3007 = vunpack.c.l.b16 %v2878
        %v3008 = vunpack.c.l.b16 %v2879
        %v3009 = vunpack.c.l.b16 %v2880
        %v3010 = vunpack.c.l.b16 %v2881
        %v3011 = vunpack.c.l.b16 %v2882
        %v3012 = vunpack.c.l.b16 %v2883
        %v3013 = vunpack.c.l.b16 %v2884
        %v3014 = vunpack.c.l.b16 %v2885
        %v3015 = vunpack.c.l.b16 %v2886
        %v3016 = vunpack.c.l.b16 %v2887
        %v3017 = vunpack.c.l.b16 %v2888
        %v3018 = vunpack.c.l.b16 %v2889
        %v3019 = vunpack.c.l.b16 %v2890
        %v3020 = vunpack.c.l.b16 %v2891
        %v3021 = vunpack.c.l.b16 %v2892
        %v3022 = vunpack.c.l.b16 %v2893
        %v3023 = vunpack.c.l.b16 %v2894
        %v3024 = vunpack.c.l.b16 %v2895
        %v3025 = vunpack.c.l.b16 %v2896
        %v3026 = vunpack.c.l.b16 %v2897
        %v3027 = vunpack.c.l.b16 %v2898
        %v3028 = vunpack.c.l.b16 %v2899
        %v3029 = vunpack.c.l.b16 %v2900
        %v3030 = vunpack.c.l.b16 %v2901
        %v3031 = vunpack.c.l.b16 %v2902
        %v3032 = vunpack.c.l.b16 %v2903
        %v3033 = vunpack.c.l.b16 %v2904
        %v3034 = vunpack.c.l.b16 %v2905
        %v3035 = vunpack.c.l.b16 %v2906
        %v3036 = vunpack.c.l.b16 %v2907
        %v3037 = vunpack.c.l.b16 %v2908
        %v3038 = vunpack.c.l.b16 %v2909
        %v3039 = vunpack.c.l.b16 %v2910
        %v3040 = vunpack.c.l.b16 %v2911
        %v3041 = vunpack.c.l.b16 %v2912
        %v3042 = vunpack.c.l.b16 %v2913
        %v3043 = vunpack.c.l.b16 %v2914
        %v3044 = vunpack.c.l.b16 %v2915
        %v3045 = vunpack.c.l.b16 %v2916
        %v3046 = vunpack.c.l.b16 %v2917
        %v3047 = vunpack.c.l.b16 %v2918
        %v3048 = vunpack.c.l.b16 %v2919
        %v3049 = vunpack.c.l.b16 %v2920
        %v3050 = vunpack.c.l.b16 %v2921
        %v3051 = vunpack.c.l.b16 %v2922
        %v3052 = vunpack.c.l.b16 %v2923
        %v3053 = vunpack.c.l.b16 %v2924
        %v3054 = vunpack.c.l.b16 %v2925
        %v3055 = vunpack.c.l.b16 %v2926
        %v3056 = vunpack.c.l.b16 %v2927
        %v3057 = vunpack.c.l.b16 %v2928
        %v3058 = vunpack.c.l.b16 %v2929
        %v3059 = vunpack.c.l.b16 %v2930
        %v3060 = vunpack.c.l.b16 %v2931
        %v3061 = vunpack.c.l.b16 %v2932
        %v3062 = vpack.c.b16 %v2999, %v2998
        %v3063 = vpack.c.b16 %v3001, %v3000
        %v3064 = vpack.c.b16 %v3003, %v3002
        %v3065 = vpack.c.b16 %v3005, %v3004
        %v3066 = vpack.c.b16 %v3007, %v3006
        %v3067 = vpack.c.b16 %v3009, %v3008
        %v3068 = vpack.c.b16 %v3011, %v3010
        %v3069 = vpack.c.b16 %v3013, %v3012
        %v3070 = vpack.c.b16 %v3015, %v3014
        %v3071 = vpack.c.b16 %v3017, %v3016
        %v3072 = vpack.c.b16 %v3019, %v3018
        %v3073 = vpack.c.b16 %v3021, %v3020
        %v3074 = vpack.c.b16 %v3023, %v3022
        %v3075 = vpack.c.b16 %v3025, %v3024
        %v3076 = vpack.c.b16 %v3027, %v3026
        %v3077 = vpack.c.b16 %v3029, %v3028
        %v3078 = vpack.c.b16 %v3031, %v3030
        %v3079 = vpack.c.b16 %v3033, %v3032
        %v3080 = vpack.c.b16 %v3035, %v3034
        %v3081 = vpack.c.b16 %v3037, %v3036
        %v3082 = vpack.c.b16 %v3039, %v3038
        %v3083 = vpack.c.b16 %v3041, %v3040
        %v3084 = vpack.c.b16 %v3043, %v3042
        %v3085 = vpack.c.b16 %v3045, %v3044
        %v3086 = vpack.c.b16 %v3047, %v3046
        %v3087 = vpack.c.b16 %v3049, %v3048
        %v3088 = vpack.c.b16 %v3051, %v3050
        %v3089 = vpack.c.b16 %v3053, %v3052
        %v3090 = vpack.c.b16 %v3055, %v3054
        %v3091 = vpack.c.b16 %v3057, %v3056
        %v3092 = vpack.c.b16 %v3059, %v3058
        %v3093 = vpack.c.b16 %v3061, %v3060
        %3126 = vmatprep.subr.bf16.mxu0 0
        %3127 = vmatpush1.bf16.msra.mxu0 %v3062
        %3128 = vmatprep.subr.bf16.mxu0 0
        %3129 = vmatpush1.bf16.msra.mxu0 %v3063
        %3130 = vmatprep.subr.bf16.mxu0 0
        %3131 = vmatpush1.bf16.msra.mxu0 %v3064
        %3132 = vmatprep.subr.bf16.mxu0 0
        %3133 = vmatpush1.bf16.msra.mxu0 %v3065
        %3134 = vmatprep.subr.bf16.mxu0 0
        %3135 = vmatpush1.bf16.msra.mxu0 %v3066
        %3136 = vmatprep.subr.bf16.mxu0 0
        %3137 = vmatpush1.bf16.msra.mxu0 %v3067
        %3138 = vmatprep.subr.bf16.mxu0 0
        %3139 = vmatpush1.bf16.msra.mxu0 %v3068
        %3140 = vmatprep.subr.bf16.mxu0 0
        %3141 = vmatpush1.bf16.msra.mxu0 %v3069
        %3142 = vmatprep.subr.bf16.mxu0 0
        %3143 = vmatpush1.bf16.msra.mxu0 %v3070
        %3144 = vmatprep.subr.bf16.mxu0 0
        %3145 = vmatpush1.bf16.msra.mxu0 %v3071
        %3146 = vmatprep.subr.bf16.mxu0 0
        %3147 = vmatpush1.bf16.msra.mxu0 %v3072
        %3148 = vmatprep.subr.bf16.mxu0 0
        %3149 = vmatpush1.bf16.msra.mxu0 %v3073
        %3150 = vmatprep.subr.bf16.mxu0 0
        %3151 = vmatpush1.bf16.msra.mxu0 %v3074
        %3152 = vmatprep.subr.bf16.mxu0 0
        %3153 = vmatpush1.bf16.msra.mxu0 %v3075
        %3154 = vmatprep.subr.bf16.mxu0 0
        %3155 = vmatpush1.bf16.msra.mxu0 %v3076
        %3156 = vmatprep.subr.bf16.mxu0 0
        %3157 = vmatpush1.bf16.msra.mxu0 %v3077
        %3158 = vmatprep.mubr.bf16.mxu0 %v2866
        %3159 = vmatmul.mubr.bf16.gmra.mrb[0].mxu0 %v2865
        %v3160 = vpop.f32.mrb[0].mxu0
        %v3161 = vadd.f32 %v2933, %v3160
        %v3162 = vpop.f32.mrb[0].mxu0
        %v3163 = vpop.f32.mrb[0].mxu0
        %v3164 = vpop.f32.mrb[0].mxu0
        %3165 = vdwg.mxu0
        %3166 = vmatprep.subr.bf16.mxu0 0
        %3167 = vmatpush1.bf16.msra.mxu0 %v3078
        %3168 = vmatprep.subr.bf16.mxu0 0
        %3169 = vmatpush1.bf16.msra.mxu0 %v3079
        %3170 = vmatprep.subr.bf16.mxu0 0
        %3171 = vmatpush1.bf16.msra.mxu0 %v3080
        %3172 = vmatprep.subr.bf16.mxu0 0
        %3173 = vmatpush1.bf16.msra.mxu0 %v3081
        %3174 = vmatprep.subr.bf16.mxu0 0
        %3175 = vmatpush1.bf16.msra.mxu0 %v3082
        %3176 = vmatprep.subr.bf16.mxu0 0
        %3177 = vmatpush1.bf16.msra.mxu0 %v3083
        %3178 = vmatprep.subr.bf16.mxu0 0
        %3179 = vmatpush1.bf16.msra.mxu0 %v3084
        %3180 = vmatprep.subr.bf16.mxu0 0
        %3181 = vmatpush1.bf16.msra.mxu0 %v3085
        %3182 = vmatprep.subr.bf16.mxu0 0
        %3183 = vmatpush1.bf16.msra.mxu0 %v3086
        %3184 = vmatprep.subr.bf16.mxu0 0
        %3185 = vmatpush1.bf16.msra.mxu0 %v3087
        %3186 = vmatprep.subr.bf16.mxu0 0
        %3187 = vmatpush1.bf16.msra.mxu0 %v3088
        %3188 = vmatprep.subr.bf16.mxu0 0
        %3189 = vmatpush1.bf16.msra.mxu0 %v3089
        %3190 = vmatprep.subr.bf16.mxu0 0
        %3191 = vmatpush1.bf16.msra.mxu0 %v3090
        %3192 = vmatprep.subr.bf16.mxu0 0
        %3193 = vmatpush1.bf16.msra.mxu0 %v3091
        %3194 = vmatprep.subr.bf16.mxu0 0
        %3195 = vmatpush1.bf16.msra.mxu0 %v3092
        %3196 = vmatprep.subr.bf16.mxu0 0
        %3197 = vmatpush1.bf16.msra.mxu0 %v3093
        %3198 = vmatprep.mubr.bf16.mxu0 %v2868
        %3199 = vmatmul.mubr.bf16.gmra.mrb[0].mxu0 %v2867
        %v3200 = vpop.f32.mrb[0].mxu0
        %v3201 = vadd.f32 %v3161, %v3200
        %v3202 = vpop.f32.mrb[0].mxu0
        %v3203 = vpop.f32.mrb[0].mxu0
        %v3204 = vpop.f32.mrb[0].mxu0
        %3205 = vdwg.mxu0
        %v3206 = vadd.f32 %v3201, %v2546
        %v3207 = vld [vmem:[#allocation5 + $0x40] ss:$0 sm:$0xff]
        %v3208 = vld [vmem:[#allocation5 + $0x41] ss:$0 sm:$0xff]
        %3209 = vadd.xlane.f32.xlu0 %v3206
        %v3210 = vpop.xlane.xlu0 %3209
        %v3211 = vmul.f32 %v3210, %v629
        %v3212 = vsub.f32 %v3206, %v3211
        %v3213 = vmul.f32 %v3212, %v3212
        %3214 = vadd.xlane.f32.xlu0 %v3213
        %v3215 = vpop.xlane.xlu0 %3214
        %v3216 = vmul.f32 %v3215, %v629
        %v3217 = vadd.f32 %v3216, 1e-12
        %v3218 = vrsqrt.pop %v3217
        %v3219 = vmul.f32 %v3212, %v3218
        %v3220 = vmul.f32 %v3219, %v3207
        %v3221 = vadd.f32 %v3220, %v3208
        %v3222 = vpack.c.bf16 %v3221, %v3221
        %v3223 = vld [vmem:[#allocation17] sm:$0xf]
        %v3224 = vld [vmem:[#allocation17 + $0x4] sm:$0xf]
        %v3225 = vld [vmem:[#allocation17 + $0x8] sm:$0xf]
        %v3226 = vld [vmem:[#allocation17 + $0xc] sm:$0xf]
        %v3227 = vld [vmem:[#allocation17 + $0x10] sm:$0xf]
        %v3228 = vld [vmem:[#allocation17 + $0x14] sm:$0xf]
        %v3229 = vld [vmem:[#allocation17 + $0x18] sm:$0xf]
        %v3230 = vld [vmem:[#allocation17 + $0x1c] sm:$0xf]
        %v3231 = vld [vmem:[#allocation17 + $0x20] sm:$0xf]
        %v3232 = vld [vmem:[#allocation17 + $0x24] sm:$0xf]
        %v3233 = vld [vmem:[#allocation17 + $0x28] sm:$0xf]
        %v3234 = vld [vmem:[#allocation17 + $0x2c] sm:$0xf]
        %v3235 = vld [vmem:[#allocation17 + $0x30] sm:$0xf]
        %v3236 = vld [vmem:[#allocation17 + $0x34] sm:$0xf]
        %v3237 = vld [vmem:[#allocation17 + $0x38] sm:$0xf]
        %v3238 = vld [vmem:[#allocation17 + $0x3c] sm:$0xf]
        %v3239 = vld [vmem:[#allocation5 + $0x42] ss:$0 sm:$0xff]
        %v3256 = vunpack.c.l.b16 %v3223
        %v3257 = vunpack.c.l.b16 %v3224
        %v3258 = vunpack.c.l.b16 %v3225
        %v3259 = vunpack.c.l.b16 %v3226
        %v3260 = vunpack.c.l.b16 %v3227
        %v3261 = vunpack.c.l.b16 %v3228
        %v3262 = vunpack.c.l.b16 %v3229
        %v3263 = vunpack.c.l.b16 %v3230
        %v3264 = vunpack.c.l.b16 %v3231
        %v3265 = vunpack.c.l.b16 %v3232
        %v3266 = vunpack.c.l.b16 %v3233
        %v3267 = vunpack.c.l.b16 %v3234
        %v3268 = vunpack.c.l.b16 %v3235
        %v3269 = vunpack.c.l.b16 %v3236
        %v3270 = vunpack.c.l.b16 %v3237
        %v3271 = vunpack.c.l.b16 %v3238
        %v3272 = vpack.c.b16 %v3257, %v3256
        %v3273 = vpack.c.b16 %v3259, %v3258
        %v3274 = vpack.c.b16 %v3261, %v3260
        %v3275 = vpack.c.b16 %v3263, %v3262
        %v3276 = vpack.c.b16 %v3265, %v3264
        %v3277 = vpack.c.b16 %v3267, %v3266
        %v3278 = vpack.c.b16 %v3269, %v3268
        %v3279 = vpack.c.b16 %v3271, %v3270
        %3288 = vmatprep.subr.bf16.mxu0 0
        %3289 = vmatpush1.bf16.msra.mxu0 %v3272
        %3290 = vmatprep.subr.bf16.mxu0 0
        %3291 = vmatpush1.bf16.msra.mxu0 %v3273
        %3292 = vmatprep.subr.bf16.mxu0 0
        %3293 = vmatpush1.bf16.msra.mxu0 %v3274
        %3294 = vmatprep.subr.bf16.mxu0 0
        %3295 = vmatpush1.bf16.msra.mxu0 %v3275
        %3296 = vmatprep.subr.bf16.mxu0 0
        %3297 = vmatpush1.bf16.msra.mxu0 %v3276
        %3298 = vmatprep.subr.bf16.mxu0 0
        %3299 = vmatpush1.bf16.msra.mxu0 %v3277
        %3300 = vmatprep.subr.bf16.mxu0 0
        %3301 = vmatpush1.bf16.msra.mxu0 %v3278
        %3302 = vmatprep.subr.bf16.mxu0 0
        %3303 = vmatpush1.bf16.msra.mxu0 %v3279
        %3304 = vmatprep.subr.bf16.mxu0 0
        %3305 = vmatpush1.bf16.msra.mxu0 0
        %3306 = vmatprep.subr.bf16.mxu0 0
        %3307 = vmatpush1.bf16.msra.mxu0 0
        %3308 = vmatprep.subr.bf16.mxu0 0
        %3309 = vmatpush1.bf16.msra.mxu0 0
        %3310 = vmatprep.subr.bf16.mxu0 0
        %3311 = vmatpush1.bf16.msra.mxu0 0
        %3312 = vmatprep.subr.bf16.mxu0 0
        %3313 = vmatpush1.bf16.msra.mxu0 0
        %3314 = vmatprep.subr.bf16.mxu0 0
        %3315 = vmatpush1.bf16.msra.mxu0 0
        %3316 = vmatprep.subr.bf16.mxu0 0
        %3317 = vmatpush1.bf16.msra.mxu0 0
        %3318 = vmatprep.subr.bf16.mxu0 0
        %3319 = vmatpush1.bf16.msra.mxu0 0
        %3320 = vmatprep.mubr.bf16.mxu0 0
        %3321 = vmatmul.mubr.bf16.gmra.mrb[0].mxu0 %v3222
        %v3322 = vpop.f32.mrb[0].mxu0
        %v3323 = vadd.f32 %v3239, %v3322
        %v3324 = vpop.f32.mrb[0].mxu0
        %v3325 = vpop.f32.mrb[0].mxu0
        %v3326 = vpop.f32.mrb[0].mxu0
        %3327 = vdwg.mxu0
        %v3328 = vtanh.pop %v3323
        %v3329 = vpack.c.bf16 %v3328, %v3328
        %v3330 = vld [vmem:[%s13] sm:$0xf]
        %v3331 = vld [vmem:[%s13 + $0x4] sm:$0xf]
        %v3332 = vld [vmem:[%s13 + $0x8] sm:$0xf]
        %v3333 = vld [vmem:[%s13 + $0xc] sm:$0xf]
        %v3334 = vld [vmem:[%s13 + $0x10] sm:$0xf]
        %v3335 = vld [vmem:[%s13 + $0x14] sm:$0xf]
        %v3336 = vld [vmem:[%s13 + $0x18] sm:$0xf]
        %v3337 = vld [vmem:[%s13 + $0x1c] sm:$0xf]
        %v3338 = vld [vmem:[%s13 + $0x20] sm:$0xf]
        %v3339 = vld [vmem:[%s13 + $0x24] sm:$0xf]
        %v3340 = vld [vmem:[%s13 + $0x28] sm:$0xf]
        %v3341 = vld [vmem:[%s13 + $0x2c] sm:$0xf]
        %v3342 = vld [vmem:[%s13 + $0x30] sm:$0xf]
        %v3343 = vld [vmem:[%s13 + $0x34] sm:$0xf]
        %v3344 = vld [vmem:[%s13 + $0x38] sm:$0xf]
        %v3345 = vld [vmem:[%s13 + $0x3c] sm:$0xf]
        %v3346 = vld [vmem:[#allocation5 + $0x43] ss:$0 sm:$0xff]
        %v3363 = vunpack.c.l.b16 %v3330
        %v3364 = vunpack.c.l.b16 %v3331
        %v3365 = vunpack.c.l.b16 %v3332
        %v3366 = vunpack.c.l.b16 %v3333
        %v3367 = vunpack.c.l.b16 %v3334
        %v3368 = vunpack.c.l.b16 %v3335
        %v3369 = vunpack.c.l.b16 %v3336
        %v3370 = vunpack.c.l.b16 %v3337
        %v3371 = vunpack.c.l.b16 %v3338
        %v3372 = vunpack.c.l.b16 %v3339
        %v3373 = vunpack.c.l.b16 %v3340
        %v3374 = vunpack.c.l.b16 %v3341
        %v3375 = vunpack.c.l.b16 %v3342
        %v3376 = vunpack.c.l.b16 %v3343
        %v3377 = vunpack.c.l.b16 %v3344
        %v3378 = vunpack.c.l.b16 %v3345
        %v3379 = vpack.c.b16 %v3364, %v3363
        %v3380 = vpack.c.b16 %v3366, %v3365
        %v3381 = vpack.c.b16 %v3368, %v3367
        %v3382 = vpack.c.b16 %v3370, %v3369
        %v3383 = vpack.c.b16 %v3372, %v3371
        %v3384 = vpack.c.b16 %v3374, %v3373
        %v3385 = vpack.c.b16 %v3376, %v3375
        %v3386 = vpack.c.b16 %v3378, %v3377
        %3395 = vmatprep.subr.bf16.mxu0 0
        %3396 = vmatpush1.bf16.msra.mxu0 %v3379
        %3397 = vmatprep.subr.bf16.mxu0 0
        %3398 = vmatpush1.bf16.msra.mxu0 %v3380
        %3399 = vmatprep.subr.bf16.mxu0 0
        %3400 = vmatpush1.bf16.msra.mxu0 %v3381
        %3401 = vmatprep.subr.bf16.mxu0 0
        %3402 = vmatpush1.bf16.msra.mxu0 %v3382
        %3403 = vmatprep.subr.bf16.mxu0 0
        %3404 = vmatpush1.bf16.msra.mxu0 %v3383
        %3405 = vmatprep.subr.bf16.mxu0 0
        %3406 = vmatpush1.bf16.msra.mxu0 %v3384
        %3407 = vmatprep.subr.bf16.mxu0 0
        %3408 = vmatpush1.bf16.msra.mxu0 %v3385
        %3409 = vmatprep.subr.bf16.mxu0 0
        %3410 = vmatpush1.bf16.msra.mxu0 %v3386
        %3411 = vmatprep.subr.bf16.mxu0 0
        %3412 = vmatpush1.bf16.msra.mxu0 0
        %3413 = vmatprep.subr.bf16.mxu0 0
        %3414 = vmatpush1.bf16.msra.mxu0 0
        %3415 = vmatprep.subr.bf16.mxu0 0
        %3416 = vmatpush1.bf16.msra.mxu0 0
        %3417 = vmatprep.subr.bf16.mxu0 0
        %3418 = vmatpush1.bf16.msra.mxu0 0
        %3419 = vmatprep.subr.bf16.mxu0 0
        %3420 = vmatpush1.bf16.msra.mxu0 0
        %3421 = vmatprep.subr.bf16.mxu0 0
        %3422 = vmatpush1.bf16.msra.mxu0 0
        %3423 = vmatprep.subr.bf16.mxu0 0
        %3424 = vmatpush1.bf16.msra.mxu0 0
        %3425 = vmatprep.subr.bf16.mxu0 0
        %3426 = vmatpush1.bf16.msra.mxu0 0
        %3427 = vmatprep.mubr.bf16.mxu0 0
        %3428 = vmatmul.mubr.bf16.gmra.mrb[0].mxu0 %v3329
        %v3429 = vpop.f32.mrb[0].mxu0
        %v3430 = vadd.f32 %v3346, %v3429
        %v3431 = vpop.f32.mrb[0].mxu0
        %v3432 = vpop.f32.mrb[0].mxu0
        %v3433 = vpop.f32.mrb[0].mxu0
        %3434 = vdwg.mxu0
        %vm3435 = vcmask 24576
        %3436 = vst.msk [vmem:[%s612] sm:$0x1] %vm3435, %v3430
        %s3437 = sand.u32 %s346, 1
        %s3438 = scalar_lea.sflag [#allocation4], %s3437
        %s3439 = sand.u32 %s346, 1
        %s3440 = scalar_lea.vmem [#allocation19], %s3439
        // Predicated region
        $region117: #{tpu_custom_call.1} parent=75 // pred_check
          %p3441 = pneg %p356
        $region118: #{tpu_custom_call.1} parent=75 // pred_check_branch
          %3443 = sbr.rel (%p3441) target = $region120
        $region119: #{tpu_custom_call.1} parent=75 // pred_region
          %s3445 = ssub.s32 16, 16
          %3446 = vsyncadd %s3438, %s3445
          %s3447 = smul.addr %s34, 16
          %s3448 = scalar_lea.hbm %s14, %s3447
          %s3450 = sshll.u32 %s3440, 4
          %s3451 = int_to_ptr.vmem [resolvable:$true] %s3450
          %3453 = dma.vmem_to_hbm [thread:$0]  %s3451, 16, %s3448, %s3438
        $region120: #{tpu_custom_call.1} parent=75 // pred_fallthru
          _
      $region76: #{tpu_custom_call.1} parent=5 // pred_fallthru
        _
      %p3454 = scmp.le.s32.totalorder 2, %s29
      // Predicated region
      $region121: #{tpu_custom_call.1} parent=5 // pred_check
        %p3455 = pneg %p3454
      $region122: #{tpu_custom_call.1} parent=5 // pred_check_branch
        %3457 = sbr.rel (%p3455) target = $region124
      $region123: #{tpu_custom_call.1} parent=5 // pred_region
        %s3458 = ssub.s32 %s29, 2
        // Predicated region
        $region125: #{tpu_custom_call.1} parent=123 // pred_check
          %p3459 = pneg %p362
        $region126: #{tpu_custom_call.1} parent=123 // pred_check_branch
          %3461 = sbr.rel (%p3459) target = $region128
        $region127: #{tpu_custom_call.1} parent=123 // pred_region
          %s3462 = sand.u32 %s347, 1
          %s3463 = scalar_lea.sflag [#allocation4], %s3462
          %s3464 = sand.u32 %s347, 1
          %s3465 = scalar_lea.vmem [#allocation19], %s3464
          %3466 = dma.done %s3463, 16
        $region128: #{tpu_custom_call.1} parent=123 // pred_fallthru
          _
      $region124: #{tpu_custom_call.1} parent=5 // pred_fallthru
        _
    $region6: #{tpu_custom_call.1} parent=1 // loop_footer
      %s33 = sadd.s32 1, %s29
    $region7: #{tpu_custom_call.1} parent=1 // loop_footer_branch
      %28 = sbr.rel target = $region3
    $region8: #{tpu_custom_call.1} parent=1 // loop_exit
      _
    %3467 = vsyncpa [#allocation3], 1
    %s3468 = scalar_lea.sflag [#allocation3], 1
    %3469 = vsyncpa %s3468, 1
    %3470 = vsyncpa [#allocation6], 1
    %3471 = vsyncpa [#allocation9], 1
    %3472 = vsyncpa [#allocation12], 1
    %3473 = vsyncpa [#allocation15], 1
    %3474 = vsyncpa [#allocation18], 1
    %3475 = vsyncpa [#allocation4], 1
    %s3476 = scalar_lea.sflag [#allocation4], 1
    %3477 = vsyncpa %s3476, 1

</llo_original>
